<compile_context>
chip_gen: v5e
topology: v5e:2x2
jax: 0.10.0
libtpu: 0.0.40
codegen_flags: <defaults>
</compile_context>

<pallas_src>
import jax
import jax.numpy as jnp
from jax.experimental import pallas as pl
from jax.experimental.pallas import tpu as pltpu


_WEIGHT_ORDER = (
    "wc", "bc", "w1", "b1", "w2", "b2", "w3", "b3",
    "wp", "bp", "wq", "bq",
    "wf1", "bf1", "wf2", "bf2", "wf3", "bf3",
    "wemb", "bemb",
)


# ----------------------------------------------------------------------------
# The fused kernel: one grid step == block_b batch elements' full sequences.
# ----------------------------------------------------------------------------
def _et_fused_kernel(
    # data blocks
    esm_ref, pldd_ref,
    # esm branch weights (conv merged, BN folded into w1, w1 rows reordered)
    wc_ref, bc_ref, w1_ref, b1_ref, w2_ref, b2_ref, w3_ref, b3_ref,
    # pldd branch weights
    wp_ref, bp_ref, wq_ref, bq_ref,
    wf1_ref, bf1_ref, wf2_ref, bf2_ref, wf3_ref, bf3_ref,
    # head weights (column-padded so the packed output is lane-dense)
    wemb_ref, bemb_ref,
    # single packed lane-dense output block
    out_ref,
):
    Bt, L, e1 = esm_ref.shape
    ec1 = pldd_ref.shape[2]
    N = Bt * L
    out_w = out_ref.shape[2]

    def mm(a, w_ref):
        w = w_ref[...]
        # Cast the activation to the weight's dtype (no-op for f32 weights,
        # bf16 MXU path when the weight was pre-cast), accumulate in f32.
        return jnp.dot(a.astype(w.dtype), w, preferred_element_type=jnp.float32)

    def relu(v):
        return jnp.maximum(v, 0.0)

    # Flatten (Bt, L, C) -> (Bt*L, C): rows of all matmuls, fills MXU M dim.
    x_esm = esm_ref[...].reshape(N, e1)
    x_pldd = pldd_ref[...].reshape(N, ec1)

    # Per-sequence boundary masks (conv zero padding + no leakage across the
    # Bt flattened sequences).  Scalar/VPU int work only.
    row = jax.lax.broadcasted_iota(jnp.int32, (N, 1), 0)
    if Bt > 1:
        row = row % L
    is_first = row == 0
    is_last = row == (L - 1)

    def taps3(x):
        # [x[l-1] | x[l] | x[l+1]] on the lane axis, zero-padded at sequence
        # boundaries.  roll goes to the XLU slot; no halo scratch, no vst.
        xp = jnp.where(is_first, 0.0, pltpu.roll(x, shift=1, axis=0))
        xn = jnp.where(is_last, 0.0, pltpu.roll(x, shift=N - 1, axis=0))
        return jnp.concatenate([xp, x, xn], axis=-1)

    # ------------------ esm branch ------------------
    # Merged 4x TextCNN Conv1d(k=3,pad=1)+ReLU as ONE matmul.
    conv = relu(mm(taps3(x_esm), wc_ref) + bc_ref[...])      # (N, f2+f1+f3+f4)
    # torch.cat + BatchNorm + Linear(bn_size,512) -> one dot (BN folded, w1
    # rows pre-reordered to [conv cols | raw esm cols]).
    cat1 = jnp.concatenate([conv, x_esm], axis=-1)            # (N, bn_size)
    h = relu(mm(cat1, w1_ref) + b1_ref[...])                  # (N, 512)
    h = relu(mm(h, w2_ref) + b2_ref[...])                     # (N, 128)
    esm_out = mm(h, w3_ref) + b3_ref[...]                     # (N, 32)

    # ------------------ pldd branch ------------------
    # CNNBLK1: q = [relu(conv(x)) | x]
    c1 = relu(mm(taps3(x_pldd), wp_ref) + bp_ref[...])        # (N, fc1)
    q = jnp.concatenate([c1, x_pldd], axis=-1)                # (N, fc1+ec1)
    # CNNBLK2: q2 = [relu(conv(q)) | q]
    c2 = relu(mm(taps3(q), wq_ref) + bq_ref[...])             # (N, fc2)
    q2 = jnp.concatenate([c2, q], axis=-1)                    # (N, fc2+fc1+ec1)
    # conf MLP
    g = jnp.tanh(mm(q2, wf1_ref) + bf1_ref[...])
    g = jnp.tanh(mm(g, wf2_ref) + bf2_ref[...])
    pldd_out = mm(g, wf3_ref) + bf3_ref[...]                  # (N, 32)

    # ------------------ head + packed lane-dense store ------------------
    head = mm(jnp.concatenate([esm_out, pldd_out], axis=-1), wemb_ref) + bemb_ref[...]
    packed = jnp.concatenate([esm_out, pldd_out, head], axis=-1)   # (N, out_w)
    out_ref[...] = packed.reshape(Bt, L, out_w).astype(out_ref.dtype)


# ----------------------------------------------------------------------------
# Weight preparation (run ONCE, outside the per-call jitted path):
# BN fold, conv merge, PyTorch conv-layout flattening, head column padding.
# ----------------------------------------------------------------------------
def _flatten_conv_w(w_oik):
    """PyTorch Conv1d weight (Cout, Cin, K) -> (K*Cin, Cout), tap-major rows."""
    cout, cin, k = w_oik.shape
    return jnp.transpose(w_oik, (2, 1, 0)).reshape(k * cin, cout)


def prepare_fused_params(p, *, use_bf16=False, out_lane_width=128):
    eps = 1e-5
    scale = p["bn_gamma"] / jnp.sqrt(p["bn_var"] + eps)
    shift = p["bn_beta"] - p["bn_mean"] * scale

    f2 = p["cnn2_w"].shape[0]
    e1 = p["cnn2_w"].shape[1]

    # Merged TextCNN conv: output columns ordered [cnn2 | cnn | cnn3 | cnn4].
    wc = jnp.concatenate(
        [_flatten_conv_w(p["cnn2_w"]), _flatten_conv_w(p["cnn_w"]),
         _flatten_conv_w(p["cnn3_w"]), _flatten_conv_w(p["cnn4_w"])], axis=1)
    bc = jnp.concatenate([p["cnn2_b"], p["cnn_b"], p["cnn3_b"], p["cnn4_b"]])

    # Fold eval-mode BN:  (x*scale + shift) @ W1 + b1 = x @ (scale*W1) + (shift@W1 + b1)
    w1f = p["esm_w1"] * scale[:, None]
    b1f = p["esm_b1"] + shift @ p["esm_w1"]
    # torch cat order is [cnn2(f2) | esm(e1) | cnn | cnn3 | cnn4]; the kernel
    # builds [cnn2 | cnn | cnn3 | cnn4 | esm], so reorder W1 rows to match.
    w1 = jnp.concatenate([w1f[:f2], w1f[f2 + e1:], w1f[f2:f2 + e1]], axis=0)

    w2 = p["esm_w2"]
    if use_bf16:
        # Only the two FLOP-significant matmuls (48->512, 512->128) go bf16.
        w1 = w1.astype(jnp.bfloat16)
        w2 = w2.astype(jnp.bfloat16)

    # Head weight column-padded so [esm_out|pldd_out|head] is exactly
    # out_lane_width lanes -> one unmasked 128-wide store in the kernel.
    n_esm = p["esm_w3"].shape[1]
    n_pldd = p["conf_w3"].shape[1]
    n_tags = p["emb_w"].shape[1]
    head_w = out_lane_width - n_esm - n_pldd
    assert out_lane_width % 128 == 0 and head_w >= n_tags
    wemb = jnp.zeros((n_esm + n_pldd, head_w), jnp.float32).at[:, :n_tags].set(p["emb_w"])
    bemb = jnp.zeros((1, head_w), jnp.float32).at[0, :n_tags].set(p["emb_b"])

    def row(b):
        return b.reshape(1, -1)

    return {
        "wc": wc, "bc": row(bc),
        "w1": w1, "b1": row(b1f),
        "w2": w2, "b2": row(p["esm_b2"]),
        "w3": p["esm_w3"], "b3": row(p["esm_b3"]),
        "wp": _flatten_conv_w(p["cblk1_w"]), "bp": row(p["cblk1_b"]),
        "wq": _flatten_conv_w(p["cblk2_w"]), "bq": row(p["cblk2_b"]),
        "wf1": p["conf_w1"], "bf1": row(p["conf_b1"]),
        "wf2": p["conf_w2"], "bf2": row(p["conf_b2"]),
        "wf3": p["conf_w3"], "bf3": row(p["conf_b3"]),
        "wemb": wemb, "bemb": bemb,
    }


# ----------------------------------------------------------------------------
# Wrapper
# ----------------------------------------------------------------------------
def _pick_block_b(B):
    # Largest batch tile that still leaves >= 2 grid steps (so both v7x
    # TensorCores get work on the "parallel" batch axis); 1 if B < 2.
    for d in range(B // 2, 0, -1):
        if B % d == 0:
            return d
    return 1


def et_forward_pallas(fused_weights, esm, pldd, *, num_tags=2, block_b=None):
    B, L, e1 = esm.shape
    ec1 = pldd.shape[-1]
    fw = fused_weights
    weights = [fw[k] for k in _WEIGHT_ORDER]

    n_esm = fw["w3"].shape[1]
    n_pldd = fw["wf3"].shape[1]
    out_w = n_esm + n_pldd + fw["wemb"].shape[1]     # lane-dense packed width

    if block_b is None:
        block_b = _pick_block_b(B)
    assert B % block_b == 0
    grid = (B // block_b,)

    in_specs = [
        pl.BlockSpec((block_b, L, e1), lambda b: (b, 0, 0)),
        pl.BlockSpec((block_b, L, ec1), lambda b: (b, 0, 0)),
    ] + [pl.BlockSpec(w.shape, lambda b: (0, 0)) for w in weights]

    out_specs = pl.BlockSpec((block_b, L, out_w), lambda b: (b, 0, 0))
    out_shape = jax.ShapeDtypeStruct((B, L, out_w), jnp.float32)

    packed = pl.pallas_call(
        _et_fused_kernel,
        out_shape=out_shape,
        grid_spec=pltpu.PrefetchScalarGridSpec(
            num_scalar_prefetch=0,
            grid=grid,
            in_specs=in_specs,
            out_specs=out_specs,
        ),
        compiler_params=pltpu.CompilerParams(
            dimension_semantics=("parallel",),
        ),
    )(esm, pldd, *weights)

    esm_out = packed[..., :n_esm]
    pldd_out = packed[..., n_esm:n_esm + n_pldd]
    model = packed[..., n_esm + n_pldd:n_esm + n_pldd + num_tags]
    return model, esm_out, pldd_out


# ----------------------------------------------------------------------------
# Pure-jnp reference of the original PyTorch forward (unfused, unfolded)
# ----------------------------------------------------------------------------
def _ref_conv1d_same(x, w_oik, b):
    B, L, _ = x.shape
    xp = jnp.pad(x, ((0, 0), (1, 1), (0, 0)))
    cols = jnp.concatenate([xp[:, 0:L], xp[:, 1:L + 1], xp[:, 2:L + 2]], axis=-1)
    wf = jnp.transpose(w_oik, (2, 1, 0)).reshape(-1, w_oik.shape[0])
    return cols @ wf + b


def et_forward_reference(p, esm, pldd):
    relu = lambda v: jnp.maximum(v, 0.0)

    esm_copy = esm
    esm_copy2 = relu(_ref_conv1d_same(esm, p["cnn_w"], p["cnn_b"]))
    esm_copy3 = relu(_ref_conv1d_same(esm, p["cnn3_w"], p["cnn3_b"]))
    esm_copy4 = relu(_ref_conv1d_same(esm, p["cnn4_w"], p["cnn4_b"]))
    esm_main = relu(_ref_conv1d_same(esm, p["cnn2_w"], p["cnn2_b"]))
    cat = jnp.concatenate([esm_main, esm_copy, esm_copy2, esm_copy3, esm_copy4],
                          axis=-1)

    eps = 1e-5
    scale = p["bn_gamma"] / jnp.sqrt(p["bn_var"] + eps)
    shift = p["bn_beta"] - p["bn_mean"] * scale
    x = cat * scale + shift

    h = relu(x @ p["esm_w1"] + p["esm_b1"])
    h = relu(h @ p["esm_w2"] + p["esm_b2"])
    esm_out = h @ p["esm_w3"] + p["esm_b3"]

    def cnnblk(z, w, b):
        return jnp.concatenate([relu(_ref_conv1d_same(z, w, b)), z], axis=-1)

    q = cnnblk(pldd, p["cblk1_w"], p["cblk1_b"])
    q = cnnblk(q, p["cblk2_w"], p["cblk2_b"])
    g = jnp.tanh(q @ p["conf_w1"] + p["conf_b1"])
    g = jnp.tanh(g @ p["conf_w2"] + p["conf_b2"])
    pldd_out = g @ p["conf_w3"] + p["conf_b3"]

    inp = jnp.concatenate([esm_out, pldd_out], axis=-1)
    model = inp @ p["emb_w"] + p["emb_b"]
    return model, esm_out, pldd_out


# ----------------------------------------------------------------------------
# Deterministic parameter init (PyTorch-equivalent layouts)
# ----------------------------------------------------------------------------
def init_params(key, cfg1, cfg2, cfg3, cfg4, cfgc1, cfgc2):
    keys = iter(jax.random.split(key, 40))

    def rnd(shape, scale=0.05):
        return (scale * jax.random.normal(next(keys), shape)).astype(jnp.float32)

    E1 = cfg1["embedding_size"]
    bn_size = (cfg1["feature_size"] + E1 + cfg2["feature_size"]
               + cfg3["feature_size"] + cfg4["feature_size"])
    bn_size2 = cfgc2["feature_size"] + cfgc2["embedding_size"]

    p = {}
    # TextCNN conv weights, PyTorch layout (Cout, Cin, 3)
    p["cnn_w"] = rnd((cfg1["feature_size"], E1, 3)); p["cnn_b"] = rnd((cfg1["feature_size"],))
    p["cnn2_w"] = rnd((cfg2["feature_size"], E1, 3)); p["cnn2_b"] = rnd((cfg2["feature_size"],))
    p["cnn3_w"] = rnd((cfg3["feature_size"], E1, 3)); p["cnn3_b"] = rnd((cfg3["feature_size"],))
    p["cnn4_w"] = rnd((cfg4["feature_size"], E1, 3)); p["cnn4_b"] = rnd((cfg4["feature_size"],))
    # BatchNorm1d(bn_size) — eval-mode running stats + affine
    p["bn_gamma"] = 1.0 + rnd((bn_size,))
    p["bn_beta"] = rnd((bn_size,))
    p["bn_mean"] = rnd((bn_size,))
    p["bn_var"] = jnp.abs(1.0 + rnd((bn_size,)))
    # esm MLP
    p["esm_w1"] = rnd((bn_size, 512)); p["esm_b1"] = rnd((512,))
    p["esm_w2"] = rnd((512, 128)); p["esm_b2"] = rnd((128,))
    p["esm_w3"] = rnd((128, 32)); p["esm_b3"] = rnd((32,))
    # CNNBLKs
    p["cblk1_w"] = rnd((cfgc1["feature_size"], cfgc1["embedding_size"], 3))
    p["cblk1_b"] = rnd((cfgc1["feature_size"],))
    p["cblk2_w"] = rnd((cfgc2["feature_size"], cfgc2["embedding_size"], 3))
    p["cblk2_b"] = rnd((cfgc2["feature_size"],))
    # conf MLP
    p["conf_w1"] = rnd((bn_size2, 64)); p["conf_b1"] = rnd((64,))
    p["conf_w2"] = rnd((64, 64)); p["conf_b2"] = rnd((64,))
    p["conf_w3"] = rnd((64, 32)); p["conf_b3"] = rnd((32,))
    # embedding: Linear(32 + 32, num_tags=2)
    p["emb_w"] = rnd((64, 2)); p["emb_b"] = rnd((2,))
    return p


# ----------------------------------------------------------------------------
# Main
# ----------------------------------------------------------------------------
if __name__ == "__main__":
    key = jax.random.PRNGKey(0)
    k_params, k_esm, k_pldd, k_esm4, k_pldd4 = jax.random.split(key, 5)

    B, L = 2, 128
    cfg1 = {"embedding_size": 16, "feature_size": 8}
    cfg2 = {"embedding_size": 16, "feature_size": 8}
    cfg3 = {"embedding_size": 16, "feature_size": 8}
    cfg4 = {"embedding_size": 16, "feature_size": 8}
    cfgc1 = {"embedding_size": 4, "feature_size": 4}
    # CNNBLK concatenates its input, so configc2.embedding = fc1 + ec1 = 8
    cfgc2 = {"embedding_size": 8, "feature_size": 8}

    params = init_params(k_params, cfg1, cfg2, cfg3, cfg4, cfgc1, cfgc2)
    esm = jax.random.normal(k_esm, (B, L, cfg1["embedding_size"]), dtype=jnp.float32)
    pldd = jax.random.normal(k_pldd, (B, L, cfgc1["embedding_size"]), dtype=jnp.float32)

    # Weight prep (BN fold, conv merge/flatten, head column padding) runs once
    # here, OUTSIDE the jitted per-call forward path.
    fw_f32 = prepare_fused_params(params, use_bf16=False)
    fw_bf16 = prepare_fused_params(params, use_bf16=True)

    fwd = jax.jit(et_forward_pallas)
    ref_model, ref_esm, ref_pldd = et_forward_reference(params, esm, pldd)

    # --- f32 path: B=2 -> block_b=1 -> 2 "parallel" grid steps (v7x 2-TC) ---
    model32, esm32, pldd32 = fwd(fw_f32, esm, pldd)
    jax.block_until_ready((model32, esm32, pldd32))
    assert model32.shape == (B, L, 2)
    assert esm32.shape == (B, L, 32)
    assert pldd32.shape == (B, L, 32)
    assert jnp.allclose(esm32, ref_esm, atol=2e-3, rtol=1e-2), \
        float(jnp.max(jnp.abs(esm32 - ref_esm)))
    assert jnp.allclose(pldd32, ref_pldd, atol=2e-3, rtol=1e-2), \
        float(jnp.max(jnp.abs(pldd32 - ref_pldd)))
    assert jnp.allclose(model32, ref_model, atol=2e-3, rtol=1e-2), \
        float(jnp.max(jnp.abs(model32 - ref_model)))

    # --- bf16 MXU path for the two wide MLP matmuls (v6e/v7x-native) ---
    model_bf, esm_bf, pldd_bf = fwd(fw_bf16, esm, pldd)
    jax.block_until_ready((model_bf, esm_bf, pldd_bf))
    assert jnp.allclose(pldd_bf, ref_pldd, atol=2e-3, rtol=1e-2)   # pldd branch stays f32
    assert jnp.allclose(esm_bf, ref_esm, atol=3e-2, rtol=5e-2), \
        float(jnp.max(jnp.abs(esm_bf - ref_esm)))
    assert jnp.allclose(model_bf, ref_model, atol=3e-2, rtol=5e-2), \
        float(jnp.max(jnp.abs(model_bf - ref_model)))

    # --- batched grid step (B=4 -> block_b=2): exercises the flattened
    #     (Bt*L) conv with per-sequence boundary masks ---
    B4 = 4
    esm4 = jax.random.normal(k_esm4, (B4, L, cfg1["embedding_size"]), dtype=jnp.float32)
    pldd4 = jax.random.normal(k_pldd4, (B4, L, cfgc1["embedding_size"]), dtype=jnp.float32)
    model4, esm_o4, pldd_o4 = fwd(fw_f32, esm4, pldd4)
    jax.block_until_ready((model4, esm_o4, pldd_o4))
    r_model4, r_esm4, r_pldd4 = et_forward_reference(params, esm4, pldd4)
    assert jnp.allclose(esm_o4, r_esm4, atol=2e-3, rtol=1e-2), \
        float(jnp.max(jnp.abs(esm_o4 - r_esm4)))
    assert jnp.allclose(pldd_o4, r_pldd4, atol=2e-3, rtol=1e-2), \
        float(jnp.max(jnp.abs(pldd_o4 - r_pldd4)))
    assert jnp.allclose(model4, r_model4, atol=2e-3, rtol=1e-2), \
        float(jnp.max(jnp.abs(model4 - r_model4)))

    print("KERNEL_OK")
</pallas_src>

<mosaic_0001>
module attributes {stable_mosaic.version = 11 : i64} {
  func.func @_et_fused_kernel(%arg0: i32, %arg1: memref<1x128x16xf32, #tpu.memory_space<vmem>>, %arg2: memref<1x128x4xf32, #tpu.memory_space<vmem>>, %arg3: memref<48x32xf32, #tpu.memory_space<vmem>>, %arg4: memref<1x32xf32, #tpu.memory_space<vmem>>, %arg5: memref<48x512xf32, #tpu.memory_space<vmem>>, %arg6: memref<1x512xf32, #tpu.memory_space<vmem>>, %arg7: memref<512x128xf32, #tpu.memory_space<vmem>>, %arg8: memref<1x128xf32, #tpu.memory_space<vmem>>, %arg9: memref<128x32xf32, #tpu.memory_space<vmem>>, %arg10: memref<1x32xf32, #tpu.memory_space<vmem>>, %arg11: memref<12x4xf32, #tpu.memory_space<vmem>>, %arg12: memref<1x4xf32, #tpu.memory_space<vmem>>, %arg13: memref<24x8xf32, #tpu.memory_space<vmem>>, %arg14: memref<1x8xf32, #tpu.memory_space<vmem>>, %arg15: memref<16x64xf32, #tpu.memory_space<vmem>>, %arg16: memref<1x64xf32, #tpu.memory_space<vmem>>, %arg17: memref<64x64xf32, #tpu.memory_space<vmem>>, %arg18: memref<1x64xf32, #tpu.memory_space<vmem>>, %arg19: memref<64x32xf32, #tpu.memory_space<vmem>>, %arg20: memref<1x32xf32, #tpu.memory_space<vmem>>, %arg21: memref<64x64xf32, #tpu.memory_space<vmem>>, %arg22: memref<1x64xf32, #tpu.memory_space<vmem>>, %arg23: memref<1x128x128xf32, #tpu.memory_space<vmem>>) attributes {dimension_semantics = [#tpu.dimension_semantics<parallel>], iteration_bounds = array<i64: 2>, scalar_prefetch = 0 : i64, scratch_operands = 0 : i64, tpu.core_type = #tpu.core_type<tc>, window_params = [{transform_indices = @transform_0, window_bounds = array<i64: 1, 128, 16>}, {transform_indices = @transform_1, window_bounds = array<i64: 1, 128, 4>}, {pipeline_mode = #tpu.pipeline_mode<synchronous>, transform_indices = @transform_2, window_bounds = array<i64: 48, 32>}, {pipeline_mode = #tpu.pipeline_mode<synchronous>, transform_indices = @transform_3, window_bounds = array<i64: 1, 32>}, {pipeline_mode = #tpu.pipeline_mode<synchronous>, transform_indices = @transform_4, window_bounds = array<i64: 48, 512>}, {pipeline_mode = #tpu.pipeline_mode<synchronous>, transform_indices = @transform_5, window_bounds = array<i64: 1, 512>}, {pipeline_mode = #tpu.pipeline_mode<synchronous>, transform_indices = @transform_6, window_bounds = array<i64: 512, 128>}, {pipeline_mode = #tpu.pipeline_mode<synchronous>, transform_indices = @transform_7, window_bounds = array<i64: 1, 128>}, {pipeline_mode = #tpu.pipeline_mode<synchronous>, transform_indices = @transform_8, window_bounds = array<i64: 128, 32>}, {pipeline_mode = #tpu.pipeline_mode<synchronous>, transform_indices = @transform_9, window_bounds = array<i64: 1, 32>}, {pipeline_mode = #tpu.pipeline_mode<synchronous>, transform_indices = @transform_10, window_bounds = array<i64: 12, 4>}, {pipeline_mode = #tpu.pipeline_mode<synchronous>, transform_indices = @transform_11, window_bounds = array<i64: 1, 4>}, {pipeline_mode = #tpu.pipeline_mode<synchronous>, transform_indices = @transform_12, window_bounds = array<i64: 24, 8>}, {pipeline_mode = #tpu.pipeline_mode<synchronous>, transform_indices = @transform_13, window_bounds = array<i64: 1, 8>}, {pipeline_mode = #tpu.pipeline_mode<synchronous>, transform_indices = @transform_14, window_bounds = array<i64: 16, 64>}, {pipeline_mode = #tpu.pipeline_mode<synchronous>, transform_indices = @transform_15, window_bounds = array<i64: 1, 64>}, {pipeline_mode = #tpu.pipeline_mode<synchronous>, transform_indices = @transform_16, window_bounds = array<i64: 64, 64>}, {pipeline_mode = #tpu.pipeline_mode<synchronous>, transform_indices = @transform_17, window_bounds = array<i64: 1, 64>}, {pipeline_mode = #tpu.pipeline_mode<synchronous>, transform_indices = @transform_18, window_bounds = array<i64: 64, 32>}, {pipeline_mode = #tpu.pipeline_mode<synchronous>, transform_indices = @transform_19, window_bounds = array<i64: 1, 32>}, {pipeline_mode = #tpu.pipeline_mode<synchronous>, transform_indices = @transform_20, window_bounds = array<i64: 64, 64>}, {pipeline_mode = #tpu.pipeline_mode<synchronous>, transform_indices = @transform_21, window_bounds = array<i64: 1, 64>}, {transform_indices = @transform_22, window_bounds = array<i64: 1, 128, 128>}]} {
    %c0 = arith.constant 0 : index
    %c0_0 = arith.constant 0 : index
    %c0_1 = arith.constant 0 : index
    %0 = vector.load %arg1[%c0, %c0_0, %c0_1] : memref<1x128x16xf32, #tpu.memory_space<vmem>>, vector<1x128x16xf32>
    %1 = vector.shape_cast %0 : vector<1x128x16xf32> to vector<128x16xf32>
    %c0_2 = arith.constant 0 : index
    %c0_3 = arith.constant 0 : index
    %c0_4 = arith.constant 0 : index
    %2 = vector.load %arg2[%c0_2, %c0_3, %c0_4] : memref<1x128x4xf32, #tpu.memory_space<vmem>>, vector<1x128x4xf32>
    %3 = vector.shape_cast %2 : vector<1x128x4xf32> to vector<128x4xf32>
    %4 = tpu.iota {dimensions = array<i32: 0>} : vector<128x1xi32>
    %c0_i32 = arith.constant 0 : i32
    %5 = vector.broadcast %c0_i32 : i32 to vector<128x1xi32>
    %6 = arith.cmpi eq, %4, %5 : vector<128x1xi32>
    %c127_i32 = arith.constant 127 : i32
    %7 = vector.broadcast %c127_i32 : i32 to vector<128x1xi32>
    %8 = arith.cmpi eq, %4, %7 : vector<128x1xi32>
    %c1_i32 = arith.constant 1 : i32
    %9 = tpu.dynamic_rotate %1 by %c1_i32 dim 0 : vector<128x16xf32>, i32 -> vector<128x16xf32>
    %cst = arith.constant 0.000000e+00 : f32
    %10 = vector.shape_cast %6 : vector<128x1xi1> to vector<128x1xi1>
    %11 = vector.broadcast %10 : vector<128x1xi1> to vector<128x16xi1>
    %12 = vector.broadcast %cst : f32 to vector<128x16xf32>
    %13 = arith.select %11, %12, %9 : vector<128x16xi1>, vector<128x16xf32>
    %c127_i32_5 = arith.constant 127 : i32
    %14 = tpu.dynamic_rotate %1 by %c127_i32_5 dim 0 : vector<128x16xf32>, i32 -> vector<128x16xf32>
    %cst_6 = arith.constant 0.000000e+00 : f32
    %15 = vector.shape_cast %8 : vector<128x1xi1> to vector<128x1xi1>
    %16 = vector.broadcast %15 : vector<128x1xi1> to vector<128x16xi1>
    %17 = vector.broadcast %cst_6 : f32 to vector<128x16xf32>
    %18 = arith.select %16, %17, %14 : vector<128x16xi1>, vector<128x16xf32>
    %19 = tpu.concatenate %13, %1, %18 in 1 : vector<128x16xf32>, vector<128x16xf32>, vector<128x16xf32> -> vector<128x48xf32>
    %c0_7 = arith.constant 0 : index
    %c0_8 = arith.constant 0 : index
    %20 = vector.load %arg3[%c0_7, %c0_8] : memref<48x32xf32, #tpu.memory_space<vmem>>, vector<48x32xf32>
    %cst_9 = arith.constant dense<0.000000e+00> : vector<128x32xf32>
    %21 = tpu.matmul %19, %20, %cst_9 {dimension_numbers = #tpu.dot_dimension_numbers<[1], [0], [0], [1], [0, 0, 1, 1], [], []>} : vector<128x48xf32>, vector<48x32xf32>, vector<128x32xf32> -> vector<128x32xf32>
    %c0_10 = arith.constant 0 : index
    %c0_11 = arith.constant 0 : index
    %22 = vector.load %arg4[%c0_10, %c0_11] : memref<1x32xf32, #tpu.memory_space<vmem>>, vector<1x32xf32>
    %23 = vector.broadcast %22 : vector<1x32xf32> to vector<128x32xf32>
    %24 = arith.addf %21, %23 : vector<128x32xf32>
    %cst_12 = arith.constant 0.000000e+00 : f32
    %25 = vector.broadcast %cst_12 : f32 to vector<128x32xf32>
    %26 = arith.maximumf %24, %25 : vector<128x32xf32>
    %27 = tpu.concatenate %26, %1 in 1 : vector<128x32xf32>, vector<128x16xf32> -> vector<128x48xf32>
    %c0_13 = arith.constant 0 : index
    %c0_14 = arith.constant 0 : index
    %28 = vector.load %arg5[%c0_13, %c0_14] : memref<48x512xf32, #tpu.memory_space<vmem>>, vector<48x512xf32>
    %cst_15 = arith.constant dense<0.000000e+00> : vector<128x512xf32>
    %29 = tpu.matmul %27, %28, %cst_15 {dimension_numbers = #tpu.dot_dimension_numbers<[1], [0], [0], [1], [0, 0, 1, 1], [], []>} : vector<128x48xf32>, vector<48x512xf32>, vector<128x512xf32> -> vector<128x512xf32>
    %c0_16 = arith.constant 0 : index
    %c0_17 = arith.constant 0 : index
    %30 = vector.load %arg6[%c0_16, %c0_17] : memref<1x512xf32, #tpu.memory_space<vmem>>, vector<1x512xf32>
    %31 = vector.broadcast %30 : vector<1x512xf32> to vector<128x512xf32>
    %32 = arith.addf %29, %31 : vector<128x512xf32>
    %cst_18 = arith.constant 0.000000e+00 : f32
    %33 = vector.broadcast %cst_18 : f32 to vector<128x512xf32>
    %34 = arith.maximumf %32, %33 : vector<128x512xf32>
    %c0_19 = arith.constant 0 : index
    %c0_20 = arith.constant 0 : index
    %35 = vector.load %arg7[%c0_19, %c0_20] : memref<512x128xf32, #tpu.memory_space<vmem>>, vector<512x128xf32>
    %cst_21 = arith.constant dense<0.000000e+00> : vector<128x128xf32>
    %36 = tpu.matmul %34, %35, %cst_21 {dimension_numbers = #tpu.dot_dimension_numbers<[1], [0], [0], [1], [0, 0, 1, 1], [], []>} : vector<128x512xf32>, vector<512x128xf32>, vector<128x128xf32> -> vector<128x128xf32>
    %c0_22 = arith.constant 0 : index
    %c0_23 = arith.constant 0 : index
    %37 = vector.load %arg8[%c0_22, %c0_23] : memref<1x128xf32, #tpu.memory_space<vmem>>, vector<1x128xf32>
    %38 = vector.broadcast %37 : vector<1x128xf32> to vector<128x128xf32>
    %39 = arith.addf %36, %38 : vector<128x128xf32>
    %cst_24 = arith.constant 0.000000e+00 : f32
    %40 = vector.broadcast %cst_24 : f32 to vector<128x128xf32>
    %41 = arith.maximumf %39, %40 : vector<128x128xf32>
    %c0_25 = arith.constant 0 : index
    %c0_26 = arith.constant 0 : index
    %42 = vector.load %arg9[%c0_25, %c0_26] : memref<128x32xf32, #tpu.memory_space<vmem>>, vector<128x32xf32>
    %cst_27 = arith.constant dense<0.000000e+00> : vector<128x32xf32>
    %43 = tpu.matmul %41, %42, %cst_27 {dimension_numbers = #tpu.dot_dimension_numbers<[1], [0], [0], [1], [0, 0, 1, 1], [], []>} : vector<128x128xf32>, vector<128x32xf32>, vector<128x32xf32> -> vector<128x32xf32>
    %c0_28 = arith.constant 0 : index
    %c0_29 = arith.constant 0 : index
    %44 = vector.load %arg10[%c0_28, %c0_29] : memref<1x32xf32, #tpu.memory_space<vmem>>, vector<1x32xf32>
    %45 = vector.broadcast %44 : vector<1x32xf32> to vector<128x32xf32>
    %46 = arith.addf %43, %45 : vector<128x32xf32>
    %c1_i32_30 = arith.constant 1 : i32
    %47 = tpu.dynamic_rotate %3 by %c1_i32_30 dim 0 : vector<128x4xf32>, i32 -> vector<128x4xf32>
    %cst_31 = arith.constant 0.000000e+00 : f32
    %48 = vector.shape_cast %6 : vector<128x1xi1> to vector<128x1xi1>
    %49 = vector.broadcast %48 : vector<128x1xi1> to vector<128x4xi1>
    %50 = vector.broadcast %cst_31 : f32 to vector<128x4xf32>
    %51 = arith.select %49, %50, %47 : vector<128x4xi1>, vector<128x4xf32>
    %c127_i32_32 = arith.constant 127 : i32
    %52 = tpu.dynamic_rotate %3 by %c127_i32_32 dim 0 : vector<128x4xf32>, i32 -> vector<128x4xf32>
    %cst_33 = arith.constant 0.000000e+00 : f32
    %53 = vector.shape_cast %8 : vector<128x1xi1> to vector<128x1xi1>
    %54 = vector.broadcast %53 : vector<128x1xi1> to vector<128x4xi1>
    %55 = vector.broadcast %cst_33 : f32 to vector<128x4xf32>
    %56 = arith.select %54, %55, %52 : vector<128x4xi1>, vector<128x4xf32>
    %57 = tpu.concatenate %51, %3, %56 in 1 : vector<128x4xf32>, vector<128x4xf32>, vector<128x4xf32> -> vector<128x12xf32>
    %c0_34 = arith.constant 0 : index
    %c0_35 = arith.constant 0 : index
    %58 = vector.load %arg11[%c0_34, %c0_35] : memref<12x4xf32, #tpu.memory_space<vmem>>, vector<12x4xf32>
    %cst_36 = arith.constant dense<0.000000e+00> : vector<128x4xf32>
    %59 = tpu.matmul %57, %58, %cst_36 {dimension_numbers = #tpu.dot_dimension_numbers<[1], [0], [0], [1], [0, 0, 1, 1], [], []>} : vector<128x12xf32>, vector<12x4xf32>, vector<128x4xf32> -> vector<128x4xf32>
    %c0_37 = arith.constant 0 : index
    %c0_38 = arith.constant 0 : index
    %60 = vector.load %arg12[%c0_37, %c0_38] : memref<1x4xf32, #tpu.memory_space<vmem>>, vector<1x4xf32>
    %61 = vector.broadcast %60 : vector<1x4xf32> to vector<128x4xf32>
    %62 = arith.addf %59, %61 : vector<128x4xf32>
    %cst_39 = arith.constant 0.000000e+00 : f32
    %63 = vector.broadcast %cst_39 : f32 to vector<128x4xf32>
    %64 = arith.maximumf %62, %63 : vector<128x4xf32>
    %65 = tpu.concatenate %64, %3 in 1 : vector<128x4xf32>, vector<128x4xf32> -> vector<128x8xf32>
    %c1_i32_40 = arith.constant 1 : i32
    %66 = tpu.dynamic_rotate %65 by %c1_i32_40 dim 0 : vector<128x8xf32>, i32 -> vector<128x8xf32>
    %cst_41 = arith.constant 0.000000e+00 : f32
    %67 = vector.shape_cast %6 : vector<128x1xi1> to vector<128x1xi1>
    %68 = vector.broadcast %67 : vector<128x1xi1> to vector<128x8xi1>
    %69 = vector.broadcast %cst_41 : f32 to vector<128x8xf32>
    %70 = arith.select %68, %69, %66 : vector<128x8xi1>, vector<128x8xf32>
    %c127_i32_42 = arith.constant 127 : i32
    %71 = tpu.dynamic_rotate %65 by %c127_i32_42 dim 0 : vector<128x8xf32>, i32 -> vector<128x8xf32>
    %cst_43 = arith.constant 0.000000e+00 : f32
    %72 = vector.shape_cast %8 : vector<128x1xi1> to vector<128x1xi1>
    %73 = vector.broadcast %72 : vector<128x1xi1> to vector<128x8xi1>
    %74 = vector.broadcast %cst_43 : f32 to vector<128x8xf32>
    %75 = arith.select %73, %74, %71 : vector<128x8xi1>, vector<128x8xf32>
    %76 = tpu.concatenate %70, %65, %75 in 1 : vector<128x8xf32>, vector<128x8xf32>, vector<128x8xf32> -> vector<128x24xf32>
    %c0_44 = arith.constant 0 : index
    %c0_45 = arith.constant 0 : index
    %77 = vector.load %arg13[%c0_44, %c0_45] : memref<24x8xf32, #tpu.memory_space<vmem>>, vector<24x8xf32>
    %cst_46 = arith.constant dense<0.000000e+00> : vector<128x8xf32>
    %78 = tpu.matmul %76, %77, %cst_46 {dimension_numbers = #tpu.dot_dimension_numbers<[1], [0], [0], [1], [0, 0, 1, 1], [], []>} : vector<128x24xf32>, vector<24x8xf32>, vector<128x8xf32> -> vector<128x8xf32>
    %c0_47 = arith.constant 0 : index
    %c0_48 = arith.constant 0 : index
    %79 = vector.load %arg14[%c0_47, %c0_48] : memref<1x8xf32, #tpu.memory_space<vmem>>, vector<1x8xf32>
    %80 = vector.broadcast %79 : vector<1x8xf32> to vector<128x8xf32>
    %81 = arith.addf %78, %80 : vector<128x8xf32>
    %cst_49 = arith.constant 0.000000e+00 : f32
    %82 = vector.broadcast %cst_49 : f32 to vector<128x8xf32>
    %83 = arith.maximumf %81, %82 : vector<128x8xf32>
    %84 = tpu.concatenate %83, %65 in 1 : vector<128x8xf32>, vector<128x8xf32> -> vector<128x16xf32>
    %c0_50 = arith.constant 0 : index
    %c0_51 = arith.constant 0 : index
    %85 = vector.load %arg15[%c0_50, %c0_51] : memref<16x64xf32, #tpu.memory_space<vmem>>, vector<16x64xf32>
    %cst_52 = arith.constant dense<0.000000e+00> : vector<128x64xf32>
    %86 = tpu.matmul %84, %85, %cst_52 {dimension_numbers = #tpu.dot_dimension_numbers<[1], [0], [0], [1], [0, 0, 1, 1], [], []>} : vector<128x16xf32>, vector<16x64xf32>, vector<128x64xf32> -> vector<128x64xf32>
    %c0_53 = arith.constant 0 : index
    %c0_54 = arith.constant 0 : index
    %87 = vector.load %arg16[%c0_53, %c0_54] : memref<1x64xf32, #tpu.memory_space<vmem>>, vector<1x64xf32>
    %88 = vector.broadcast %87 : vector<1x64xf32> to vector<128x64xf32>
    %89 = arith.addf %86, %88 : vector<128x64xf32>
    %90 = math.tanh %89 : vector<128x64xf32>
    %c0_55 = arith.constant 0 : index
    %c0_56 = arith.constant 0 : index
    %91 = vector.load %arg17[%c0_55, %c0_56] : memref<64x64xf32, #tpu.memory_space<vmem>>, vector<64x64xf32>
    %cst_57 = arith.constant dense<0.000000e+00> : vector<128x64xf32>
    %92 = tpu.matmul %90, %91, %cst_57 {dimension_numbers = #tpu.dot_dimension_numbers<[1], [0], [0], [1], [0, 0, 1, 1], [], []>} : vector<128x64xf32>, vector<64x64xf32>, vector<128x64xf32> -> vector<128x64xf32>
    %c0_58 = arith.constant 0 : index
    %c0_59 = arith.constant 0 : index
    %93 = vector.load %arg18[%c0_58, %c0_59] : memref<1x64xf32, #tpu.memory_space<vmem>>, vector<1x64xf32>
    %94 = vector.broadcast %93 : vector<1x64xf32> to vector<128x64xf32>
    %95 = arith.addf %92, %94 : vector<128x64xf32>
    %96 = math.tanh %95 : vector<128x64xf32>
    %c0_60 = arith.constant 0 : index
    %c0_61 = arith.constant 0 : index
    %97 = vector.load %arg19[%c0_60, %c0_61] : memref<64x32xf32, #tpu.memory_space<vmem>>, vector<64x32xf32>
    %cst_62 = arith.constant dense<0.000000e+00> : vector<128x32xf32>
    %98 = tpu.matmul %96, %97, %cst_62 {dimension_numbers = #tpu.dot_dimension_numbers<[1], [0], [0], [1], [0, 0, 1, 1], [], []>} : vector<128x64xf32>, vector<64x32xf32>, vector<128x32xf32> -> vector<128x32xf32>
    %c0_63 = arith.constant 0 : index
    %c0_64 = arith.constant 0 : index
    %99 = vector.load %arg20[%c0_63, %c0_64] : memref<1x32xf32, #tpu.memory_space<vmem>>, vector<1x32xf32>
    %100 = vector.broadcast %99 : vector<1x32xf32> to vector<128x32xf32>
    %101 = arith.addf %98, %100 : vector<128x32xf32>
    %102 = tpu.concatenate %46, %101 in 1 : vector<128x32xf32>, vector<128x32xf32> -> vector<128x64xf32>
    %c0_65 = arith.constant 0 : index
    %c0_66 = arith.constant 0 : index
    %103 = vector.load %arg21[%c0_65, %c0_66] : memref<64x64xf32, #tpu.memory_space<vmem>>, vector<64x64xf32>
    %cst_67 = arith.constant dense<0.000000e+00> : vector<128x64xf32>
    %104 = tpu.matmul %102, %103, %cst_67 {dimension_numbers = #tpu.dot_dimension_numbers<[1], [0], [0], [1], [0, 0, 1, 1], [], []>} : vector<128x64xf32>, vector<64x64xf32>, vector<128x64xf32> -> vector<128x64xf32>
    %c0_68 = arith.constant 0 : index
    %c0_69 = arith.constant 0 : index
    %105 = vector.load %arg22[%c0_68, %c0_69] : memref<1x64xf32, #tpu.memory_space<vmem>>, vector<1x64xf32>
    %106 = vector.broadcast %105 : vector<1x64xf32> to vector<128x64xf32>
    %107 = arith.addf %104, %106 : vector<128x64xf32>
    %108 = tpu.concatenate %46, %101, %107 in 1 : vector<128x32xf32>, vector<128x32xf32>, vector<128x64xf32> -> vector<128x128xf32>
    %109 = vector.shape_cast %108 : vector<128x128xf32> to vector<1x128x128xf32>
    %c0_70 = arith.constant 0 : index
    %c0_71 = arith.constant 0 : index
    %c0_72 = arith.constant 0 : index
    %110 = vector.load %arg23[%c0_70, %c0_71, %c0_72] : memref<1x128x128xf32, #tpu.memory_space<vmem>>, vector<1x128x128xf32>
    tpu.vector_store %arg23[%c0_70, %c0_71, %c0_72], %109 {strides = array<i32>} : memref<1x128x128xf32, #tpu.memory_space<vmem>>, vector<1x128x128xf32>,
    return
  }
  func.func @transform_0(%arg0: i32) -> (i32, i32, i32) {
    %c0_i32 = arith.constant 0 : i32
    %c0_i32_0 = arith.constant 0 : i32
    %c0_i32_1 = arith.constant 0 : i32
    return %arg0, %c0_i32, %c0_i32_0 : i32, i32, i32
  }
  func.func @transform_1(%arg0: i32) -> (i32, i32, i32) {
    %c0_i32 = arith.constant 0 : i32
    %c0_i32_0 = arith.constant 0 : i32
    %c0_i32_1 = arith.constant 0 : i32
    return %arg0, %c0_i32, %c0_i32_0 : i32, i32, i32
  }
  func.func @transform_2(%arg0: i32) -> (i32, i32) {
    %c0_i32 = arith.constant 0 : i32
    %c0_i32_0 = arith.constant 0 : i32
    %c0_i32_1 = arith.constant 0 : i32
    return %c0_i32, %c0_i32_0 : i32, i32
  }
  func.func @transform_3(%arg0: i32) -> (i32, i32) {
    %c0_i32 = arith.constant 0 : i32
    %c0_i32_0 = arith.constant 0 : i32
    %c0_i32_1 = arith.constant 0 : i32
    return %c0_i32, %c0_i32_0 : i32, i32
  }
  func.func @transform_4(%arg0: i32) -> (i32, i32) {
    %c0_i32 = arith.constant 0 : i32
    %c0_i32_0 = arith.constant 0 : i32
    %c0_i32_1 = arith.constant 0 : i32
    return %c0_i32, %c0_i32_0 : i32, i32
  }
  func.func @transform_5(%arg0: i32) -> (i32, i32) {
    %c0_i32 = arith.constant 0 : i32
    %c0_i32_0 = arith.constant 0 : i32
    %c0_i32_1 = arith.constant 0 : i32
    return %c0_i32, %c0_i32_0 : i32, i32
  }
  func.func @transform_6(%arg0: i32) -> (i32, i32) {
    %c0_i32 = arith.constant 0 : i32
    %c0_i32_0 = arith.constant 0 : i32
    %c0_i32_1 = arith.constant 0 : i32
    return %c0_i32, %c0_i32_0 : i32, i32
  }
  func.func @transform_7(%arg0: i32) -> (i32, i32) {
    %c0_i32 = arith.constant 0 : i32
    %c0_i32_0 = arith.constant 0 : i32
    %c0_i32_1 = arith.constant 0 : i32
    return %c0_i32, %c0_i32_0 : i32, i32
  }
  func.func @transform_8(%arg0: i32) -> (i32, i32) {
    %c0_i32 = arith.constant 0 : i32
    %c0_i32_0 = arith.constant 0 : i32
    %c0_i32_1 = arith.constant 0 : i32
    return %c0_i32, %c0_i32_0 : i32, i32
  }
  func.func @transform_9(%arg0: i32) -> (i32, i32) {
    %c0_i32 = arith.constant 0 : i32
    %c0_i32_0 = arith.constant 0 : i32
    %c0_i32_1 = arith.constant 0 : i32
    return %c0_i32, %c0_i32_0 : i32, i32
  }
  func.func @transform_10(%arg0: i32) -> (i32, i32) {
    %c0_i32 = arith.constant 0 : i32
    %c0_i32_0 = arith.constant 0 : i32
    %c0_i32_1 = arith.constant 0 : i32
    return %c0_i32, %c0_i32_0 : i32, i32
  }
  func.func @transform_11(%arg0: i32) -> (i32, i32) {
    %c0_i32 = arith.constant 0 : i32
    %c0_i32_0 = arith.constant 0 : i32
    %c0_i32_1 = arith.constant 0 : i32
    return %c0_i32, %c0_i32_0 : i32, i32
  }
  func.func @transform_12(%arg0: i32) -> (i32, i32) {
    %c0_i32 = arith.constant 0 : i32
    %c0_i32_0 = arith.constant 0 : i32
    %c0_i32_1 = arith.constant 0 : i32
    return %c0_i32, %c0_i32_0 : i32, i32
  }
  func.func @transform_13(%arg0: i32) -> (i32, i32) {
    %c0_i32 = arith.constant 0 : i32
    %c0_i32_0 = arith.constant 0 : i32
    %c0_i32_1 = arith.constant 0 : i32
    return %c0_i32, %c0_i32_0 : i32, i32
  }
  func.func @transform_14(%arg0: i32) -> (i32, i32) {
    %c0_i32 = arith.constant 0 : i32
    %c0_i32_0 = arith.constant 0 : i32
    %c0_i32_1 = arith.constant 0 : i32
    return %c0_i32, %c0_i32_0 : i32, i32
  }
  func.func @transform_15(%arg0: i32) -> (i32, i32) {
    %c0_i32 = arith.constant 0 : i32
    %c0_i32_0 = arith.constant 0 : i32
    %c0_i32_1 = arith.constant 0 : i32
    return %c0_i32, %c0_i32_0 : i32, i32
  }
  func.func @transform_16(%arg0: i32) -> (i32, i32) {
    %c0_i32 = arith.constant 0 : i32
    %c0_i32_0 = arith.constant 0 : i32
    %c0_i32_1 = arith.constant 0 : i32
    return %c0_i32, %c0_i32_0 : i32, i32
  }
  func.func @transform_17(%arg0: i32) -> (i32, i32) {
    %c0_i32 = arith.constant 0 : i32
    %c0_i32_0 = arith.constant 0 : i32
    %c0_i32_1 = arith.constant 0 : i32
    return %c0_i32, %c0_i32_0 : i32, i32
  }
  func.func @transform_18(%arg0: i32) -> (i32, i32) {
    %c0_i32 = arith.constant 0 : i32
    %c0_i32_0 = arith.constant 0 : i32
    %c0_i32_1 = arith.constant 0 : i32
    return %c0_i32, %c0_i32_0 : i32, i32
  }
  func.func @transform_19(%arg0: i32) -> (i32, i32) {
    %c0_i32 = arith.constant 0 : i32
    %c0_i32_0 = arith.constant 0 : i32
    %c0_i32_1 = arith.constant 0 : i32
    return %c0_i32, %c0_i32_0 : i32, i32
  }
  func.func @transform_20(%arg0: i32) -> (i32, i32) {
    %c0_i32 = arith.constant 0 : i32
    %c0_i32_0 = arith.constant 0 : i32
    %c0_i32_1 = arith.constant 0 : i32
    return %c0_i32, %c0_i32_0 : i32, i32
  }
  func.func @transform_21(%arg0: i32) -> (i32, i32) {
    %c0_i32 = arith.constant 0 : i32
    %c0_i32_0 = arith.constant 0 : i32
    %c0_i32_1 = arith.constant 0 : i32
    return %c0_i32, %c0_i32_0 : i32, i32
  }
  func.func @transform_22(%arg0: i32) -> (i32, i32, i32) {
    %c0_i32 = arith.constant 0 : i32
    %c0_i32_0 = arith.constant 0 : i32
    %c0_i32_1 = arith.constant 0 : i32
    return %arg0, %c0_i32, %c0_i32_0 : i32, i32, i32
  }
}

</mosaic_0001>

<llo_original>
// kernel: et_forward_pallas.1
$region0: #{et_forward_pallas.1}
  #allocation0 [shape = 'u32[]', space=smem, size = 0x4, offset = 0x4, fixed_abs, tag = 'smem constant byte address 0x4 - core index']
  #allocation1 [shape = 'u32[72,128]{1,0:T(1,128)}', space=vmem, size = 0x9000, scoped, tag = 'internal scratch']
  %s0 = inlined_call_operand.vmem [shape: f32[2,128,16], index: 0, kind: input, shape index: {}]
  %s1 = inlined_call_operand.vmem [shape: f32[2,128,4], index: 1, kind: input, shape index: {}]
  %s2 = inlined_call_operand.vmem [shape: f32[48,32], index: 2, kind: input, shape index: {}]
  %s3 = inlined_call_operand.vmem [shape: f32[1,32], index: 3, kind: input, shape index: {}]
  %s4 = inlined_call_operand.vmem [shape: f32[48,512], index: 4, kind: input, shape index: {}]
  %s5 = inlined_call_operand.vmem [shape: f32[1,512], index: 5, kind: input, shape index: {}]
  %s6 = inlined_call_operand.vmem [shape: f32[512,128], index: 6, kind: input, shape index: {}]
  %s7 = inlined_call_operand.vmem [shape: f32[1,128], index: 7, kind: input, shape index: {}]
  %s8 = inlined_call_operand.vmem [shape: f32[128,32], index: 8, kind: input, shape index: {}]
  %s9 = inlined_call_operand.vmem [shape: f32[1,32], index: 9, kind: input, shape index: {}]
  %s10 = inlined_call_operand.vmem [shape: f32[12,4], index: 10, kind: input, shape index: {}]
  %s11 = inlined_call_operand.vmem [shape: f32[1,4], index: 11, kind: input, shape index: {}]
  %s12 = inlined_call_operand.vmem [shape: f32[24,8], index: 12, kind: input, shape index: {}]
  %s13 = inlined_call_operand.vmem [shape: f32[1,8], index: 13, kind: input, shape index: {}]
  %s14 = inlined_call_operand.vmem [shape: f32[16,64], index: 14, kind: input, shape index: {}]
  %s15 = inlined_call_operand.vmem [shape: f32[1,64], index: 15, kind: input, shape index: {}]
  %s16 = inlined_call_operand.vmem [shape: f32[64,64], index: 16, kind: input, shape index: {}]
  %s17 = inlined_call_operand.vmem [shape: f32[1,64], index: 17, kind: input, shape index: {}]
  %s18 = inlined_call_operand.vmem [shape: f32[64,32], index: 18, kind: input, shape index: {}]
  %s19 = inlined_call_operand.vmem [shape: f32[1,32], index: 19, kind: input, shape index: {}]
  %s20 = inlined_call_operand.hbm [shape: f32[64,64], index: 20, kind: input, shape index: {}]
  %s21 = inlined_call_operand.vmem [shape: f32[1,64], index: 21, kind: input, shape index: {}]
  %s22 = inlined_call_operand.vmem [shape: f32[2,128,128], index: 22, kind: output, shape index: {}]
  %s23 = sld [smem:[#allocation0]]
  $region125: #{et_forward_pallas.1} parent=0
    _
  %s25 = ssub.s32 1, %s23
  %s26 = scalar_select 0, %s25, %s23
  $region1: #{et_forward_pallas.1} parent=0
    #allocation2 [shape = 'u8[32768]{0}', space=vmem, size = 0x8000, scoped, tag = 'input window, operand 20, single buffered']
    #allocation3 [shape = 's32[2]{0}', space=sflag, size = 0x8, scoped, tag = 'scoped memory for et_forward_pallas.1']
    %27 = vsyncpa [#allocation3], 0
    loop: start=0, step=1, limit=4
    $region2: #{et_forward_pallas.1} parent=1 // loop_pre_header
      _
    $region3: #{et_forward_pallas.1} parent=1 // loop_header
      %s29 = sphi 0, %s33
      %p30 = scmp.ge.s32.totalorder %s29, 4
      %s39 = sphi 0, %s41
      %s42 = sphi 0, %s39
      %s43 = sphi 0, %s42
      %s59 = sphi 0, %s43
      %s65 = sphi 0, %s67
      %s68 = sphi 0, %s65
      %s69 = sphi 0, %s68
      %s85 = sphi 0, %s69
      %s89 = sphi 0, %s89
      %s91 = sphi 0, %s89
      %s92 = sphi 0, %s91
      %s106 = sphi 0, %s92
      %s110 = sphi 0, %s110
      %s112 = sphi 0, %s110
      %s113 = sphi 0, %s112
      %s127 = sphi 0, %s113
      %s131 = sphi 0, %s131
      %s133 = sphi 0, %s131
      %s134 = sphi 0, %s133
      %s148 = sphi 0, %s134
      %s152 = sphi 0, %s152
      %s154 = sphi 0, %s152
      %s155 = sphi 0, %s154
      %s169 = sphi 0, %s155
      %s173 = sphi 0, %s173
      %s175 = sphi 0, %s173
      %s176 = sphi 0, %s175
      %s190 = sphi 0, %s176
      %s194 = sphi 0, %s194
      %s196 = sphi 0, %s194
      %s197 = sphi 0, %s196
      %s211 = sphi 0, %s197
      %s215 = sphi 0, %s215
      %s217 = sphi 0, %s215
      %s218 = sphi 0, %s217
      %s232 = sphi 0, %s218
      %s236 = sphi 0, %s236
      %s238 = sphi 0, %s236
      %s239 = sphi 0, %s238
      %s253 = sphi 0, %s239
      %s257 = sphi 0, %s257
      %s259 = sphi 0, %s257
      %s260 = sphi 0, %s259
      %s274 = sphi 0, %s260
      %s278 = sphi 0, %s278
      %s280 = sphi 0, %s278
      %s281 = sphi 0, %s280
      %s295 = sphi 0, %s281
      %s299 = sphi 0, %s299
      %s301 = sphi 0, %s299
      %s302 = sphi 0, %s301
      %s316 = sphi 0, %s302
      %s320 = sphi 0, %s320
      %s322 = sphi 0, %s320
      %s323 = sphi 0, %s322
      %s337 = sphi 0, %s323
      %s341 = sphi 0, %s341
      %s343 = sphi 0, %s341
      %s344 = sphi 0, %s343
      %s358 = sphi 0, %s344
      %s362 = sphi 0, %s362
      %s364 = sphi 0, %s362
      %s365 = sphi 0, %s364
      %s379 = sphi 0, %s365
      %s383 = sphi 0, %s383
      %s385 = sphi 0, %s383
      %s386 = sphi 0, %s385
      %s400 = sphi 0, %s386
      %s404 = sphi 0, %s404
      %s406 = sphi 0, %s404
      %s407 = sphi 0, %s406
      %s421 = sphi 0, %s407
      %s425 = sphi 0, %s425
      %s427 = sphi 0, %s425
      %s428 = sphi 0, %s427
      %s442 = sphi 0, %s428
      %s446 = sphi 0, %s446
      %s448 = sphi 0, %s446
      %s449 = sphi 0, %s448
      %s463 = sphi 0, %s449
      %s467 = sphi 0, %s467
      %s469 = sphi 0, %s467
      %s470 = sphi 0, %s469
      %s484 = sphi 0, %s470
      %s488 = sphi 0, %s488
      %s490 = sphi 0, %s488
      %s491 = sphi 0, %s490
      %s505 = sphi 0, %s491
      %s511 = sphi 0, %s513
      %s514 = sphi 0, %s511
      %s515 = sphi 0, %s514
      %s531 = sphi 0, %s515
    $region4: #{et_forward_pallas.1} parent=1 // loop_header_branch
      %32 = sbr.rel (%p30) target = $region8
    $region5: #{et_forward_pallas.1} parent=1 // loop_body
      %s34 = ssub.s32 %s29, 1
      %s35 = ssub.s32 %s29, 2
      %s36 = sadd.s32 %s29, 1
      %s37 = ssub.s32 %s29, %s36
      %p38 = scmp.eq.s32.totalorder %s37, 0
      %s40 = sadd.s32 %s39, 1
      %s41 = scalar_select %p38, %s39, %s40
      %p44 = pneg %p38
      %p45 = scmp.eq.s32.totalorder %s29, 1
      %p46 = por %p44, %p45
      %p47 = scmp.ne.s32.totalorder %s39, %s42
      %p48 = scmp.eq.s32.totalorder %s29, 0
      %p49 = por %p47, %p48
      %p50 = scmp.ne.s32.totalorder %s39, %s42
      %p51 = scmp.eq.s32.totalorder %s34, 1
      %p52 = por %p50, %p51
      %p53 = scmp.ne.s32.totalorder %s42, %s43
      %p54 = scmp.eq.s32.totalorder %s34, 0
      %p55 = por %p53, %p54
      %p56 = scmp.ne.s32.totalorder %s42, %s43
      %p57 = scmp.eq.s32.totalorder %s35, 1
      %p58 = por %p56, %p57
      %p60 = scmp.ne.s32.totalorder %s43, %s59
      %p61 = scmp.eq.s32.totalorder %s35, 0
      %p62 = por %p60, %p61
      %s63 = ssub.s32 %s29, %s36
      %p64 = scmp.eq.s32.totalorder %s63, 0
      %s66 = sadd.s32 %s65, 1
      %s67 = scalar_select %p64, %s65, %s66
      %p70 = pneg %p64
      %p71 = scmp.eq.s32.totalorder %s29, 1
      %p72 = por %p70, %p71
      %p73 = scmp.ne.s32.totalorder %s65, %s68
      %p74 = scmp.eq.s32.totalorder %s29, 0
      %p75 = por %p73, %p74
      %p76 = scmp.ne.s32.totalorder %s65, %s68
      %p77 = scmp.eq.s32.totalorder %s34, 1
      %p78 = por %p76, %p77
      %p79 = scmp.ne.s32.totalorder %s68, %s69
      %p80 = scmp.eq.s32.totalorder %s34, 0
      %p81 = por %p79, %p80
      %p82 = scmp.ne.s32.totalorder %s68, %s69
      %p83 = scmp.eq.s32.totalorder %s35, 1
      %p84 = por %p82, %p83
      %p86 = scmp.ne.s32.totalorder %s69, %s85
      %p87 = scmp.eq.s32.totalorder %s35, 0
      %p88 = por %p86, %p87
      %s90 = sadd.s32 %s89, 1
      %p93 = scmp.eq.s32.totalorder %s29, 1
      %p94 = scmp.ne.s32.totalorder %s89, %s91
      %p95 = scmp.eq.s32.totalorder %s29, 0
      %p96 = por %p94, %p95
      %p97 = scmp.ne.s32.totalorder %s89, %s91
      %p98 = scmp.eq.s32.totalorder %s34, 1
      %p99 = por %p97, %p98
      %p100 = scmp.ne.s32.totalorder %s91, %s92
      %p101 = scmp.eq.s32.totalorder %s34, 0
      %p102 = por %p100, %p101
      %p103 = scmp.ne.s32.totalorder %s91, %s92
      %p104 = scmp.eq.s32.totalorder %s35, 1
      %p105 = por %p103, %p104
      %p107 = scmp.ne.s32.totalorder %s92, %s106
      %p108 = scmp.eq.s32.totalorder %s35, 0
      %p109 = por %p107, %p108
      %s111 = sadd.s32 %s110, 1
      %p114 = scmp.eq.s32.totalorder %s29, 1
      %p115 = scmp.ne.s32.totalorder %s110, %s112
      %p116 = scmp.eq.s32.totalorder %s29, 0
      %p117 = por %p115, %p116
      %p118 = scmp.ne.s32.totalorder %s110, %s112
      %p119 = scmp.eq.s32.totalorder %s34, 1
      %p120 = por %p118, %p119
      %p121 = scmp.ne.s32.totalorder %s112, %s113
      %p122 = scmp.eq.s32.totalorder %s34, 0
      %p123 = por %p121, %p122
      %p124 = scmp.ne.s32.totalorder %s112, %s113
      %p125 = scmp.eq.s32.totalorder %s35, 1
      %p126 = por %p124, %p125
      %p128 = scmp.ne.s32.totalorder %s113, %s127
      %p129 = scmp.eq.s32.totalorder %s35, 0
      %p130 = por %p128, %p129
      %s132 = sadd.s32 %s131, 1
      %p135 = scmp.eq.s32.totalorder %s29, 1
      %p136 = scmp.ne.s32.totalorder %s131, %s133
      %p137 = scmp.eq.s32.totalorder %s29, 0
      %p138 = por %p136, %p137
      %p139 = scmp.ne.s32.totalorder %s131, %s133
      %p140 = scmp.eq.s32.totalorder %s34, 1
      %p141 = por %p139, %p140
      %p142 = scmp.ne.s32.totalorder %s133, %s134
      %p143 = scmp.eq.s32.totalorder %s34, 0
      %p144 = por %p142, %p143
      %p145 = scmp.ne.s32.totalorder %s133, %s134
      %p146 = scmp.eq.s32.totalorder %s35, 1
      %p147 = por %p145, %p146
      %p149 = scmp.ne.s32.totalorder %s134, %s148
      %p150 = scmp.eq.s32.totalorder %s35, 0
      %p151 = por %p149, %p150
      %s153 = sadd.s32 %s152, 1
      %p156 = scmp.eq.s32.totalorder %s29, 1
      %p157 = scmp.ne.s32.totalorder %s152, %s154
      %p158 = scmp.eq.s32.totalorder %s29, 0
      %p159 = por %p157, %p158
      %p160 = scmp.ne.s32.totalorder %s152, %s154
      %p161 = scmp.eq.s32.totalorder %s34, 1
      %p162 = por %p160, %p161
      %p163 = scmp.ne.s32.totalorder %s154, %s155
      %p164 = scmp.eq.s32.totalorder %s34, 0
      %p165 = por %p163, %p164
      %p166 = scmp.ne.s32.totalorder %s154, %s155
      %p167 = scmp.eq.s32.totalorder %s35, 1
      %p168 = por %p166, %p167
      %p170 = scmp.ne.s32.totalorder %s155, %s169
      %p171 = scmp.eq.s32.totalorder %s35, 0
      %p172 = por %p170, %p171
      %s174 = sadd.s32 %s173, 1
      %p177 = scmp.eq.s32.totalorder %s29, 1
      %p178 = scmp.ne.s32.totalorder %s173, %s175
      %p179 = scmp.eq.s32.totalorder %s29, 0
      %p180 = por %p178, %p179
      %p181 = scmp.ne.s32.totalorder %s173, %s175
      %p182 = scmp.eq.s32.totalorder %s34, 1
      %p183 = por %p181, %p182
      %p184 = scmp.ne.s32.totalorder %s175, %s176
      %p185 = scmp.eq.s32.totalorder %s34, 0
      %p186 = por %p184, %p185
      %p187 = scmp.ne.s32.totalorder %s175, %s176
      %p188 = scmp.eq.s32.totalorder %s35, 1
      %p189 = por %p187, %p188
      %p191 = scmp.ne.s32.totalorder %s176, %s190
      %p192 = scmp.eq.s32.totalorder %s35, 0
      %p193 = por %p191, %p192
      %s195 = sadd.s32 %s194, 1
      %p198 = scmp.eq.s32.totalorder %s29, 1
      %p199 = scmp.ne.s32.totalorder %s194, %s196
      %p200 = scmp.eq.s32.totalorder %s29, 0
      %p201 = por %p199, %p200
      %p202 = scmp.ne.s32.totalorder %s194, %s196
      %p203 = scmp.eq.s32.totalorder %s34, 1
      %p204 = por %p202, %p203
      %p205 = scmp.ne.s32.totalorder %s196, %s197
      %p206 = scmp.eq.s32.totalorder %s34, 0
      %p207 = por %p205, %p206
      %p208 = scmp.ne.s32.totalorder %s196, %s197
      %p209 = scmp.eq.s32.totalorder %s35, 1
      %p210 = por %p208, %p209
      %p212 = scmp.ne.s32.totalorder %s197, %s211
      %p213 = scmp.eq.s32.totalorder %s35, 0
      %p214 = por %p212, %p213
      %s216 = sadd.s32 %s215, 1
      %p219 = scmp.eq.s32.totalorder %s29, 1
      %p220 = scmp.ne.s32.totalorder %s215, %s217
      %p221 = scmp.eq.s32.totalorder %s29, 0
      %p222 = por %p220, %p221
      %p223 = scmp.ne.s32.totalorder %s215, %s217
      %p224 = scmp.eq.s32.totalorder %s34, 1
      %p225 = por %p223, %p224
      %p226 = scmp.ne.s32.totalorder %s217, %s218
      %p227 = scmp.eq.s32.totalorder %s34, 0
      %p228 = por %p226, %p227
      %p229 = scmp.ne.s32.totalorder %s217, %s218
      %p230 = scmp.eq.s32.totalorder %s35, 1
      %p231 = por %p229, %p230
      %p233 = scmp.ne.s32.totalorder %s218, %s232
      %p234 = scmp.eq.s32.totalorder %s35, 0
      %p235 = por %p233, %p234
      %s237 = sadd.s32 %s236, 1
      %p240 = scmp.eq.s32.totalorder %s29, 1
      %p241 = scmp.ne.s32.totalorder %s236, %s238
      %p242 = scmp.eq.s32.totalorder %s29, 0
      %p243 = por %p241, %p242
      %p244 = scmp.ne.s32.totalorder %s236, %s238
      %p245 = scmp.eq.s32.totalorder %s34, 1
      %p246 = por %p244, %p245
      %p247 = scmp.ne.s32.totalorder %s238, %s239
      %p248 = scmp.eq.s32.totalorder %s34, 0
      %p249 = por %p247, %p248
      %p250 = scmp.ne.s32.totalorder %s238, %s239
      %p251 = scmp.eq.s32.totalorder %s35, 1
      %p252 = por %p250, %p251
      %p254 = scmp.ne.s32.totalorder %s239, %s253
      %p255 = scmp.eq.s32.totalorder %s35, 0
      %p256 = por %p254, %p255
      %s258 = sadd.s32 %s257, 1
      %p261 = scmp.eq.s32.totalorder %s29, 1
      %p262 = scmp.ne.s32.totalorder %s257, %s259
      %p263 = scmp.eq.s32.totalorder %s29, 0
      %p264 = por %p262, %p263
      %p265 = scmp.ne.s32.totalorder %s257, %s259
      %p266 = scmp.eq.s32.totalorder %s34, 1
      %p267 = por %p265, %p266
      %p268 = scmp.ne.s32.totalorder %s259, %s260
      %p269 = scmp.eq.s32.totalorder %s34, 0
      %p270 = por %p268, %p269
      %p271 = scmp.ne.s32.totalorder %s259, %s260
      %p272 = scmp.eq.s32.totalorder %s35, 1
      %p273 = por %p271, %p272
      %p275 = scmp.ne.s32.totalorder %s260, %s274
      %p276 = scmp.eq.s32.totalorder %s35, 0
      %p277 = por %p275, %p276
      %s279 = sadd.s32 %s278, 1
      %p282 = scmp.eq.s32.totalorder %s29, 1
      %p283 = scmp.ne.s32.totalorder %s278, %s280
      %p284 = scmp.eq.s32.totalorder %s29, 0
      %p285 = por %p283, %p284
      %p286 = scmp.ne.s32.totalorder %s278, %s280
      %p287 = scmp.eq.s32.totalorder %s34, 1
      %p288 = por %p286, %p287
      %p289 = scmp.ne.s32.totalorder %s280, %s281
      %p290 = scmp.eq.s32.totalorder %s34, 0
      %p291 = por %p289, %p290
      %p292 = scmp.ne.s32.totalorder %s280, %s281
      %p293 = scmp.eq.s32.totalorder %s35, 1
      %p294 = por %p292, %p293
      %p296 = scmp.ne.s32.totalorder %s281, %s295
      %p297 = scmp.eq.s32.totalorder %s35, 0
      %p298 = por %p296, %p297
      %s300 = sadd.s32 %s299, 1
      %p303 = scmp.eq.s32.totalorder %s29, 1
      %p304 = scmp.ne.s32.totalorder %s299, %s301
      %p305 = scmp.eq.s32.totalorder %s29, 0
      %p306 = por %p304, %p305
      %p307 = scmp.ne.s32.totalorder %s299, %s301
      %p308 = scmp.eq.s32.totalorder %s34, 1
      %p309 = por %p307, %p308
      %p310 = scmp.ne.s32.totalorder %s301, %s302
      %p311 = scmp.eq.s32.totalorder %s34, 0
      %p312 = por %p310, %p311
      %p313 = scmp.ne.s32.totalorder %s301, %s302
      %p314 = scmp.eq.s32.totalorder %s35, 1
      %p315 = por %p313, %p314
      %p317 = scmp.ne.s32.totalorder %s302, %s316
      %p318 = scmp.eq.s32.totalorder %s35, 0
      %p319 = por %p317, %p318
      %s321 = sadd.s32 %s320, 1
      %p324 = scmp.eq.s32.totalorder %s29, 1
      %p325 = scmp.ne.s32.totalorder %s320, %s322
      %p326 = scmp.eq.s32.totalorder %s29, 0
      %p327 = por %p325, %p326
      %p328 = scmp.ne.s32.totalorder %s320, %s322
      %p329 = scmp.eq.s32.totalorder %s34, 1
      %p330 = por %p328, %p329
      %p331 = scmp.ne.s32.totalorder %s322, %s323
      %p332 = scmp.eq.s32.totalorder %s34, 0
      %p333 = por %p331, %p332
      %p334 = scmp.ne.s32.totalorder %s322, %s323
      %p335 = scmp.eq.s32.totalorder %s35, 1
      %p336 = por %p334, %p335
      %p338 = scmp.ne.s32.totalorder %s323, %s337
      %p339 = scmp.eq.s32.totalorder %s35, 0
      %p340 = por %p338, %p339
      %s342 = sadd.s32 %s341, 1
      %p345 = scmp.eq.s32.totalorder %s29, 1
      %p346 = scmp.ne.s32.totalorder %s341, %s343
      %p347 = scmp.eq.s32.totalorder %s29, 0
      %p348 = por %p346, %p347
      %p349 = scmp.ne.s32.totalorder %s341, %s343
      %p350 = scmp.eq.s32.totalorder %s34, 1
      %p351 = por %p349, %p350
      %p352 = scmp.ne.s32.totalorder %s343, %s344
      %p353 = scmp.eq.s32.totalorder %s34, 0
      %p354 = por %p352, %p353
      %p355 = scmp.ne.s32.totalorder %s343, %s344
      %p356 = scmp.eq.s32.totalorder %s35, 1
      %p357 = por %p355, %p356
      %p359 = scmp.ne.s32.totalorder %s344, %s358
      %p360 = scmp.eq.s32.totalorder %s35, 0
      %p361 = por %p359, %p360
      %s363 = sadd.s32 %s362, 1
      %p366 = scmp.eq.s32.totalorder %s29, 1
      %p367 = scmp.ne.s32.totalorder %s362, %s364
      %p368 = scmp.eq.s32.totalorder %s29, 0
      %p369 = por %p367, %p368
      %p370 = scmp.ne.s32.totalorder %s362, %s364
      %p371 = scmp.eq.s32.totalorder %s34, 1
      %p372 = por %p370, %p371
      %p373 = scmp.ne.s32.totalorder %s364, %s365
      %p374 = scmp.eq.s32.totalorder %s34, 0
      %p375 = por %p373, %p374
      %p376 = scmp.ne.s32.totalorder %s364, %s365
      %p377 = scmp.eq.s32.totalorder %s35, 1
      %p378 = por %p376, %p377
      %p380 = scmp.ne.s32.totalorder %s365, %s379
      %p381 = scmp.eq.s32.totalorder %s35, 0
      %p382 = por %p380, %p381
      %s384 = sadd.s32 %s383, 1
      %p387 = scmp.eq.s32.totalorder %s29, 1
      %p388 = scmp.ne.s32.totalorder %s383, %s385
      %p389 = scmp.eq.s32.totalorder %s29, 0
      %p390 = por %p388, %p389
      %p391 = scmp.ne.s32.totalorder %s383, %s385
      %p392 = scmp.eq.s32.totalorder %s34, 1
      %p393 = por %p391, %p392
      %p394 = scmp.ne.s32.totalorder %s385, %s386
      %p395 = scmp.eq.s32.totalorder %s34, 0
      %p396 = por %p394, %p395
      %p397 = scmp.ne.s32.totalorder %s385, %s386
      %p398 = scmp.eq.s32.totalorder %s35, 1
      %p399 = por %p397, %p398
      %p401 = scmp.ne.s32.totalorder %s386, %s400
      %p402 = scmp.eq.s32.totalorder %s35, 0
      %p403 = por %p401, %p402
      %s405 = sadd.s32 %s404, 1
      %p408 = scmp.eq.s32.totalorder %s29, 1
      %p409 = scmp.ne.s32.totalorder %s404, %s406
      %p410 = scmp.eq.s32.totalorder %s29, 0
      %p411 = por %p409, %p410
      %p412 = scmp.ne.s32.totalorder %s404, %s406
      %p413 = scmp.eq.s32.totalorder %s34, 1
      %p414 = por %p412, %p413
      %p415 = scmp.ne.s32.totalorder %s406, %s407
      %p416 = scmp.eq.s32.totalorder %s34, 0
      %p417 = por %p415, %p416
      %p418 = scmp.ne.s32.totalorder %s406, %s407
      %p419 = scmp.eq.s32.totalorder %s35, 1
      %p420 = por %p418, %p419
      %p422 = scmp.ne.s32.totalorder %s407, %s421
      %p423 = scmp.eq.s32.totalorder %s35, 0
      %p424 = por %p422, %p423
      %s426 = sadd.s32 %s425, 1
      %p429 = scmp.eq.s32.totalorder %s29, 1
      %p430 = scmp.ne.s32.totalorder %s425, %s427
      %p431 = scmp.eq.s32.totalorder %s29, 0
      %p432 = por %p430, %p431
      %p433 = scmp.ne.s32.totalorder %s425, %s427
      %p434 = scmp.eq.s32.totalorder %s34, 1
      %p435 = por %p433, %p434
      %p436 = scmp.ne.s32.totalorder %s427, %s428
      %p437 = scmp.eq.s32.totalorder %s34, 0
      %p438 = por %p436, %p437
      %p439 = scmp.ne.s32.totalorder %s427, %s428
      %p440 = scmp.eq.s32.totalorder %s35, 1
      %p441 = por %p439, %p440
      %p443 = scmp.ne.s32.totalorder %s428, %s442
      %p444 = scmp.eq.s32.totalorder %s35, 0
      %p445 = por %p443, %p444
      %s447 = sadd.s32 %s446, 1
      %p450 = scmp.eq.s32.totalorder %s29, 1
      %p451 = scmp.ne.s32.totalorder %s446, %s448
      %p452 = scmp.eq.s32.totalorder %s29, 0
      %p453 = por %p451, %p452
      %p454 = scmp.ne.s32.totalorder %s446, %s448
      %p455 = scmp.eq.s32.totalorder %s34, 1
      %p456 = por %p454, %p455
      %p457 = scmp.ne.s32.totalorder %s448, %s449
      %p458 = scmp.eq.s32.totalorder %s34, 0
      %p459 = por %p457, %p458
      %p460 = scmp.ne.s32.totalorder %s448, %s449
      %p461 = scmp.eq.s32.totalorder %s35, 1
      %p462 = por %p460, %p461
      %p464 = scmp.ne.s32.totalorder %s449, %s463
      %p465 = scmp.eq.s32.totalorder %s35, 0
      %p466 = por %p464, %p465
      %s468 = sadd.s32 %s467, 1
      %p471 = scmp.eq.s32.totalorder %s29, 1
      %p472 = scmp.ne.s32.totalorder %s467, %s469
      %p473 = scmp.eq.s32.totalorder %s29, 0
      %p474 = por %p472, %p473
      %p475 = scmp.ne.s32.totalorder %s467, %s469
      %p476 = scmp.eq.s32.totalorder %s34, 1
      %p477 = por %p475, %p476
      %p478 = scmp.ne.s32.totalorder %s469, %s470
      %p479 = scmp.eq.s32.totalorder %s34, 0
      %p480 = por %p478, %p479
      %p481 = scmp.ne.s32.totalorder %s469, %s470
      %p482 = scmp.eq.s32.totalorder %s35, 1
      %p483 = por %p481, %p482
      %p485 = scmp.ne.s32.totalorder %s470, %s484
      %p486 = scmp.eq.s32.totalorder %s35, 0
      %p487 = por %p485, %p486
      %s489 = sadd.s32 %s488, 1
      %p492 = scmp.eq.s32.totalorder %s29, 1
      %p493 = scmp.ne.s32.totalorder %s488, %s490
      %p494 = scmp.eq.s32.totalorder %s29, 0
      %p495 = por %p493, %p494
      %p496 = scmp.ne.s32.totalorder %s488, %s490
      %p497 = scmp.eq.s32.totalorder %s34, 1
      %p498 = por %p496, %p497
      %p499 = scmp.ne.s32.totalorder %s490, %s491
      %p500 = scmp.eq.s32.totalorder %s34, 0
      %p501 = por %p499, %p500
      %p502 = scmp.ne.s32.totalorder %s490, %s491
      %p503 = scmp.eq.s32.totalorder %s35, 1
      %p504 = por %p502, %p503
      %p506 = scmp.ne.s32.totalorder %s491, %s505
      %p507 = scmp.eq.s32.totalorder %s35, 0
      %p508 = por %p506, %p507
      %s509 = ssub.s32 %s29, %s36
      %p510 = scmp.eq.s32.totalorder %s509, 0
      %s512 = sadd.s32 %s511, 1
      %s513 = scalar_select %p510, %s511, %s512
      %p516 = pneg %p510
      %p517 = scmp.eq.s32.totalorder %s29, 1
      %p518 = por %p516, %p517
      %p519 = scmp.ne.s32.totalorder %s511, %s514
      %p520 = scmp.eq.s32.totalorder %s29, 0
      %p521 = por %p519, %p520
      %p522 = scmp.ne.s32.totalorder %s511, %s514
      %p523 = scmp.eq.s32.totalorder %s34, 1
      %p524 = por %p522, %p523
      %p525 = scmp.ne.s32.totalorder %s514, %s515
      %p526 = scmp.eq.s32.totalorder %s34, 0
      %p527 = por %p525, %p526
      %p528 = scmp.ne.s32.totalorder %s514, %s515
      %p529 = scmp.eq.s32.totalorder %s35, 1
      %p530 = por %p528, %p529
      %p532 = scmp.ne.s32.totalorder %s515, %s531
      %p533 = scmp.eq.s32.totalorder %s35, 0
      %p534 = por %p532, %p533
      %p535 = scmp.le.s32.totalorder 1, %s29
      %p536 = scmp.lt.s32.totalorder %s29, 3
      %p537 = pnand %p535, %p536
      %p538 = pneg %p537
      // Predicated region
      $region9: #{et_forward_pallas.1} parent=5 // pred_check
        _
      $region10: #{et_forward_pallas.1} parent=5 // pred_check_branch
        %540 = sbr.rel (%p537) target = $region12
      $region11: #{et_forward_pallas.1} parent=5 // pred_region
        %s541 = ssub.s32 %s29, 1
        // Predicated region
        $region13: #{et_forward_pallas.1} parent=11 // pred_check
          %p542 = pneg %p102
        $region14: #{et_forward_pallas.1} parent=11 // pred_check_branch
          %544 = sbr.rel (%p542) target = $region16
        $region15: #{et_forward_pallas.1} parent=11 // pred_region
          _
        $region16: #{et_forward_pallas.1} parent=11 // pred_fallthru
          _
        // Predicated region
        $region17: #{et_forward_pallas.1} parent=11 // pred_check
          %p545 = pneg %p123
        $region18: #{et_forward_pallas.1} parent=11 // pred_check_branch
          %547 = sbr.rel (%p545) target = $region20
        $region19: #{et_forward_pallas.1} parent=11 // pred_region
          _
        $region20: #{et_forward_pallas.1} parent=11 // pred_fallthru
          _
        // Predicated region
        $region21: #{et_forward_pallas.1} parent=11 // pred_check
          %p548 = pneg %p144
        $region22: #{et_forward_pallas.1} parent=11 // pred_check_branch
          %550 = sbr.rel (%p548) target = $region24
        $region23: #{et_forward_pallas.1} parent=11 // pred_region
          _
        $region24: #{et_forward_pallas.1} parent=11 // pred_fallthru
          _
        // Predicated region
        $region25: #{et_forward_pallas.1} parent=11 // pred_check
          %p551 = pneg %p165
        $region26: #{et_forward_pallas.1} parent=11 // pred_check_branch
          %553 = sbr.rel (%p551) target = $region28
        $region27: #{et_forward_pallas.1} parent=11 // pred_region
          _
        $region28: #{et_forward_pallas.1} parent=11 // pred_fallthru
          _
        // Predicated region
        $region29: #{et_forward_pallas.1} parent=11 // pred_check
          %p554 = pneg %p186
        $region30: #{et_forward_pallas.1} parent=11 // pred_check_branch
          %556 = sbr.rel (%p554) target = $region32
        $region31: #{et_forward_pallas.1} parent=11 // pred_region
          _
        $region32: #{et_forward_pallas.1} parent=11 // pred_fallthru
          _
        // Predicated region
        $region33: #{et_forward_pallas.1} parent=11 // pred_check
          %p557 = pneg %p207
        $region34: #{et_forward_pallas.1} parent=11 // pred_check_branch
          %559 = sbr.rel (%p557) target = $region36
        $region35: #{et_forward_pallas.1} parent=11 // pred_region
          _
        $region36: #{et_forward_pallas.1} parent=11 // pred_fallthru
          _
        // Predicated region
        $region37: #{et_forward_pallas.1} parent=11 // pred_check
          %p560 = pneg %p228
        $region38: #{et_forward_pallas.1} parent=11 // pred_check_branch
          %562 = sbr.rel (%p560) target = $region40
        $region39: #{et_forward_pallas.1} parent=11 // pred_region
          _
        $region40: #{et_forward_pallas.1} parent=11 // pred_fallthru
          _
        // Predicated region
        $region41: #{et_forward_pallas.1} parent=11 // pred_check
          %p563 = pneg %p249
        $region42: #{et_forward_pallas.1} parent=11 // pred_check_branch
          %565 = sbr.rel (%p563) target = $region44
        $region43: #{et_forward_pallas.1} parent=11 // pred_region
          _
        $region44: #{et_forward_pallas.1} parent=11 // pred_fallthru
          _
        // Predicated region
        $region45: #{et_forward_pallas.1} parent=11 // pred_check
          %p566 = pneg %p270
        $region46: #{et_forward_pallas.1} parent=11 // pred_check_branch
          %568 = sbr.rel (%p566) target = $region48
        $region47: #{et_forward_pallas.1} parent=11 // pred_region
          _
        $region48: #{et_forward_pallas.1} parent=11 // pred_fallthru
          _
        // Predicated region
        $region49: #{et_forward_pallas.1} parent=11 // pred_check
          %p569 = pneg %p291
        $region50: #{et_forward_pallas.1} parent=11 // pred_check_branch
          %571 = sbr.rel (%p569) target = $region52
        $region51: #{et_forward_pallas.1} parent=11 // pred_region
          _
        $region52: #{et_forward_pallas.1} parent=11 // pred_fallthru
          _
        // Predicated region
        $region53: #{et_forward_pallas.1} parent=11 // pred_check
          %p572 = pneg %p312
        $region54: #{et_forward_pallas.1} parent=11 // pred_check_branch
          %574 = sbr.rel (%p572) target = $region56
        $region55: #{et_forward_pallas.1} parent=11 // pred_region
          _
        $region56: #{et_forward_pallas.1} parent=11 // pred_fallthru
          _
        // Predicated region
        $region57: #{et_forward_pallas.1} parent=11 // pred_check
          %p575 = pneg %p333
        $region58: #{et_forward_pallas.1} parent=11 // pred_check_branch
          %577 = sbr.rel (%p575) target = $region60
        $region59: #{et_forward_pallas.1} parent=11 // pred_region
          _
        $region60: #{et_forward_pallas.1} parent=11 // pred_fallthru
          _
        // Predicated region
        $region61: #{et_forward_pallas.1} parent=11 // pred_check
          %p578 = pneg %p354
        $region62: #{et_forward_pallas.1} parent=11 // pred_check_branch
          %580 = sbr.rel (%p578) target = $region64
        $region63: #{et_forward_pallas.1} parent=11 // pred_region
          _
        $region64: #{et_forward_pallas.1} parent=11 // pred_fallthru
          _
        // Predicated region
        $region65: #{et_forward_pallas.1} parent=11 // pred_check
          %p581 = pneg %p375
        $region66: #{et_forward_pallas.1} parent=11 // pred_check_branch
          %583 = sbr.rel (%p581) target = $region68
        $region67: #{et_forward_pallas.1} parent=11 // pred_region
          _
        $region68: #{et_forward_pallas.1} parent=11 // pred_fallthru
          _
        // Predicated region
        $region69: #{et_forward_pallas.1} parent=11 // pred_check
          %p584 = pneg %p396
        $region70: #{et_forward_pallas.1} parent=11 // pred_check_branch
          %586 = sbr.rel (%p584) target = $region72
        $region71: #{et_forward_pallas.1} parent=11 // pred_region
          _
        $region72: #{et_forward_pallas.1} parent=11 // pred_fallthru
          _
        // Predicated region
        $region73: #{et_forward_pallas.1} parent=11 // pred_check
          %p587 = pneg %p417
        $region74: #{et_forward_pallas.1} parent=11 // pred_check_branch
          %589 = sbr.rel (%p587) target = $region76
        $region75: #{et_forward_pallas.1} parent=11 // pred_region
          _
        $region76: #{et_forward_pallas.1} parent=11 // pred_fallthru
          _
        // Predicated region
        $region77: #{et_forward_pallas.1} parent=11 // pred_check
          %p590 = pneg %p438
        $region78: #{et_forward_pallas.1} parent=11 // pred_check_branch
          %592 = sbr.rel (%p590) target = $region80
        $region79: #{et_forward_pallas.1} parent=11 // pred_region
          _
        $region80: #{et_forward_pallas.1} parent=11 // pred_fallthru
          _
        // Predicated region
        $region81: #{et_forward_pallas.1} parent=11 // pred_check
          %p593 = pneg %p459
        $region82: #{et_forward_pallas.1} parent=11 // pred_check_branch
          %595 = sbr.rel (%p593) target = $region84
        $region83: #{et_forward_pallas.1} parent=11 // pred_region
          _
        $region84: #{et_forward_pallas.1} parent=11 // pred_fallthru
          _
        // Predicated region
        $region85: #{et_forward_pallas.1} parent=11 // pred_check
          %p596 = pneg %p480
        $region86: #{et_forward_pallas.1} parent=11 // pred_check_branch
          %598 = sbr.rel (%p596) target = $region88
        $region87: #{et_forward_pallas.1} parent=11 // pred_region
          %600 = vsyncadd [#allocation3], 0
          %s601 = sshll.u32 %s20, 4
          %s602 = int_to_ptr.hbm [resolvable:$true] %s601
          %s603 = sshll.u32 [#allocation2], 4
          %s604 = int_to_ptr.vmem [resolvable:$true] %s603
          %609 = dma.hbm_to_vmem [thread:$0]  %s602, 1024, %s604, [#allocation3], 128, 128, 8
        $region88: #{et_forward_pallas.1} parent=11 // pred_fallthru
          _
        // Predicated region
        $region89: #{et_forward_pallas.1} parent=11 // pred_check
          %p610 = pneg %p501
        $region90: #{et_forward_pallas.1} parent=11 // pred_check_branch
          %612 = sbr.rel (%p610) target = $region92
        $region91: #{et_forward_pallas.1} parent=11 // pred_region
          _
        $region92: #{et_forward_pallas.1} parent=11 // pred_fallthru
          _
      $region12: #{et_forward_pallas.1} parent=5 // pred_fallthru
        _
      %p613 = scmp.lt.s32.totalorder %s29, 2
      // Predicated region
      $region93: #{et_forward_pallas.1} parent=5 // pred_check
        %p614 = pneg %p613
      $region94: #{et_forward_pallas.1} parent=5 // pred_check_branch
        %616 = sbr.rel (%p614) target = $region96
      $region95: #{et_forward_pallas.1} parent=5 // pred_region
        // Predicated region
        $region97: #{et_forward_pallas.1} parent=95 // pred_check
          %p617 = pneg %p49
        $region98: #{et_forward_pallas.1} parent=95 // pred_check_branch
          %619 = sbr.rel (%p617) target = $region100
        $region99: #{et_forward_pallas.1} parent=95 // pred_region
          %p620 = scmp.lt.s32.totalorder %s29, 1
          %s621 = scalar_select %p620, %s29, 1
          %s622 = smul.addr %s621, 16
          %s623 = smul.addr %s622, 8
          %s624 = scalar_lea.vmem %s0, %s623
        $region100: #{et_forward_pallas.1} parent=95 // pred_fallthru
          _
        // Predicated region
        $region101: #{et_forward_pallas.1} parent=95 // pred_check
          %p625 = pneg %p75
        $region102: #{et_forward_pallas.1} parent=95 // pred_check_branch
          %627 = sbr.rel (%p625) target = $region104
        $region103: #{et_forward_pallas.1} parent=95 // pred_region
          %p628 = scmp.lt.s32.totalorder %s29, 1
          %s629 = scalar_select %p628, %s29, 1
          %s630 = smul.addr %s629, 16
          %s631 = smul.addr %s630, 8
          %s632 = scalar_lea.vmem %s1, %s631
        $region104: #{et_forward_pallas.1} parent=95 // pred_fallthru
          _
      $region96: #{et_forward_pallas.1} parent=5 // pred_fallthru
        _
      %p633 = scmp.le.s32.totalorder 1, %s29
      %p634 = scmp.lt.s32.totalorder %s29, 3
      %p635 = pnand %p633, %p634
      %p636 = pneg %p635
      // Predicated region
      $region105: #{et_forward_pallas.1} parent=5 // pred_check
        _
      $region106: #{et_forward_pallas.1} parent=5 // pred_check_branch
        %638 = sbr.rel (%p635) target = $region108
      $region107: #{et_forward_pallas.1} parent=5 // pred_region
        %s639 = ssub.s32 %s29, 1
        // Predicated region
        $region109: #{et_forward_pallas.1} parent=107 // pred_check
          %p640 = pneg %p480
        $region110: #{et_forward_pallas.1} parent=107 // pred_check_branch
          %642 = sbr.rel (%p640) target = $region112
        $region111: #{et_forward_pallas.1} parent=107 // pred_region
          %644 = dma.done [#allocation3], 1024
        $region112: #{et_forward_pallas.1} parent=107 // pred_fallthru
          _
        %p645 = scmp.lt.s32.totalorder %s34, 1
        %s646 = scalar_select %p645, %s34, 1
        %s647 = smul.addr %s646, 16
        %s648 = smul.addr %s647, 8
        %s649 = scalar_lea.vmem %s0, %s648
        %p650 = pneg %p55
        %p651 = pneg %p52
        %p652 = scmp.lt.s32.totalorder %s34, 1
        %s653 = scalar_select %p652, %s34, 1
        %s654 = smul.addr %s653, 16
        %s655 = smul.addr %s654, 8
        %s656 = scalar_lea.vmem %s1, %s655
        %p657 = pneg %p81
        %p658 = pneg %p78
        %p659 = pneg %p102
        %p660 = pneg %p99
        %p661 = pneg %p123
        %p662 = pneg %p120
        %p663 = pneg %p144
        %p664 = pneg %p141
        %p665 = pneg %p165
        %p666 = pneg %p162
        %p667 = pneg %p186
        %p668 = pneg %p183
        %p669 = pneg %p207
        %p670 = pneg %p204
        %p671 = pneg %p228
        %p672 = pneg %p225
        %p673 = pneg %p249
        %p674 = pneg %p246
        %p675 = pneg %p270
        %p676 = pneg %p267
        %p677 = pneg %p291
        %p678 = pneg %p288
        %p679 = pneg %p312
        %p680 = pneg %p309
        %p681 = pneg %p333
        %p682 = pneg %p330
        %p683 = pneg %p354
        %p684 = pneg %p351
        %p685 = pneg %p375
        %p686 = pneg %p372
        %p687 = pneg %p396
        %p688 = pneg %p393
        %p689 = pneg %p417
        %p690 = pneg %p414
        %p691 = pneg %p438
        %p692 = pneg %p435
        %p693 = pneg %p459
        %p694 = pneg %p456
        %p695 = pneg %p480
        %p696 = pneg %p477
        %p697 = pneg %p501
        %p698 = pneg %p498
        %p699 = pneg %p527
        %p700 = pneg %p524
        %p701 = scmp.lt.s32.totalorder %s34, 1
        %s702 = scalar_select %p701, %s34, 1
        %s703 = smul.addr %s702, 16
        %s704 = smul.addr %s703, 8
        %s705 = scalar_lea.vmem %s22, %s704
        %p706 = scmp.lt.s32.totalorder %s34, 1
        %s707 = scalar_select %p706, %s34, 1
        %s708 = smul.addr %s707, 16
        %s709 = smul.addr %s708, 8
        %s710 = scalar_lea.vmem %s0, %s709
        %p711 = scmp.lt.s32.totalorder %s34, 1
        %s712 = scalar_select %p711, %s34, 1
        %s713 = smul.addr %s712, 16
        %s714 = smul.addr %s713, 8
        %s715 = scalar_lea.vmem %s1, %s714
        %p716 = scmp.lt.s32.totalorder %s34, 1
        %s717 = scalar_select %p716, %s34, 1
        %s718 = smul.addr %s717, 16
        %s719 = smul.addr %s718, 8
        %s720 = scalar_lea.vmem %s22, %s719
        %v721 = vld [vmem:[%s710] sm:$0xff]
        %v722 = vld [vmem:[%s710 + $0x8] sm:$0xff]
        %v723 = vld [vmem:[%s710 + $0x10] sm:$0xff]
        %v724 = vld [vmem:[%s710 + $0x18] sm:$0xff]
        %v725 = vld [vmem:[%s710 + $0x20] sm:$0xff]
        %v726 = vld [vmem:[%s710 + $0x28] sm:$0xff]
        %v727 = vld [vmem:[%s710 + $0x30] sm:$0xff]
        %v728 = vld [vmem:[%s710 + $0x38] sm:$0xff]
        %v729 = vld [vmem:[%s710 + $0x40] sm:$0xff]
        %v730 = vld [vmem:[%s710 + $0x48] sm:$0xff]
        %v731 = vld [vmem:[%s710 + $0x50] sm:$0xff]
        %v732 = vld [vmem:[%s710 + $0x58] sm:$0xff]
        %v733 = vld [vmem:[%s710 + $0x60] sm:$0xff]
        %v734 = vld [vmem:[%s710 + $0x68] sm:$0xff]
        %v735 = vld [vmem:[%s710 + $0x70] sm:$0xff]
        %v736 = vld [vmem:[%s710 + $0x78] sm:$0xff]
        %v737 = vld [vmem:[%s715] sm:$0xff]
        %v738 = vld [vmem:[%s715 + $0x8] sm:$0xff]
        %v739 = vld [vmem:[%s715 + $0x10] sm:$0xff]
        %v740 = vld [vmem:[%s715 + $0x18] sm:$0xff]
        %v741 = vld [vmem:[%s715 + $0x20] sm:$0xff]
        %v742 = vld [vmem:[%s715 + $0x28] sm:$0xff]
        %v743 = vld [vmem:[%s715 + $0x30] sm:$0xff]
        %v744 = vld [vmem:[%s715 + $0x38] sm:$0xff]
        %v745 = vld [vmem:[%s715 + $0x40] sm:$0xff]
        %v746 = vld [vmem:[%s715 + $0x48] sm:$0xff]
        %v747 = vld [vmem:[%s715 + $0x50] sm:$0xff]
        %v748 = vld [vmem:[%s715 + $0x58] sm:$0xff]
        %v749 = vld [vmem:[%s715 + $0x60] sm:$0xff]
        %v750 = vld [vmem:[%s715 + $0x68] sm:$0xff]
        %v751 = vld [vmem:[%s715 + $0x70] sm:$0xff]
        %v752 = vld [vmem:[%s715 + $0x78] sm:$0xff]
        %v753 = vlaneseq
        %v754 = vshrl.u32 %v753, 7
        %v755 = vadd.s32 %v754, 8
        %v756 = vadd.s32 %v754, 16
        %v757 = vadd.s32 %v754, 24
        %v758 = vadd.s32 %v754, 32
        %v759 = vadd.s32 %v754, 40
        %v760 = vadd.s32 %v754, 48
        %v761 = vadd.s32 %v754, 56
        %v762 = vadd.s32 %v754, 64
        %v763 = vadd.s32 %v754, 72
        %v764 = vadd.s32 %v754, 80
        %v765 = vadd.s32 %v754, 88
        %v766 = vadd.s32 %v754, 96
        %v767 = vadd.s32 %v754, 104
        %v768 = vadd.s32 %v754, 112
        %v769 = vadd.s32 %v754, 120
        %vm770 = vcmp.eq.s32.totalorder %v754, 0
        %vm771 = vcmp.eq.s32.totalorder %v755, 0
        %vm772 = vcmp.eq.s32.totalorder %v756, 0
        %vm773 = vcmp.eq.s32.totalorder %v757, 0
        %vm774 = vcmp.eq.s32.totalorder %v758, 0
        %vm775 = vcmp.eq.s32.totalorder %v759, 0
        %vm776 = vcmp.eq.s32.totalorder %v760, 0
        %vm777 = vcmp.eq.s32.totalorder %v761, 0
        %vm778 = vcmp.eq.s32.totalorder %v762, 0
        %vm779 = vcmp.eq.s32.totalorder %v763, 0
        %vm780 = vcmp.eq.s32.totalorder %v764, 0
        %vm781 = vcmp.eq.s32.totalorder %v765, 0
        %vm782 = vcmp.eq.s32.totalorder %v766, 0
        %vm783 = vcmp.eq.s32.totalorder %v767, 0
        %vm784 = vcmp.eq.s32.totalorder %v768, 0
        %vm785 = vcmp.eq.s32.totalorder %v769, 0
        %vm786 = vcmp.eq.s32.totalorder %v754, 127
        %vm787 = vcmp.eq.s32.totalorder %v755, 127
        %vm788 = vcmp.eq.s32.totalorder %v756, 127
        %vm789 = vcmp.eq.s32.totalorder %v757, 127
        %vm790 = vcmp.eq.s32.totalorder %v758, 127
        %vm791 = vcmp.eq.s32.totalorder %v759, 127
        %vm792 = vcmp.eq.s32.totalorder %v760, 127
        %vm793 = vcmp.eq.s32.totalorder %v761, 127
        %vm794 = vcmp.eq.s32.totalorder %v762, 127
        %vm795 = vcmp.eq.s32.totalorder %v763, 127
        %vm796 = vcmp.eq.s32.totalorder %v764, 127
        %vm797 = vcmp.eq.s32.totalorder %v765, 127
        %vm798 = vcmp.eq.s32.totalorder %v766, 127
        %vm799 = vcmp.eq.s32.totalorder %v767, 127
        %vm800 = vcmp.eq.s32.totalorder %v768, 127
        %vm801 = vcmp.eq.s32.totalorder %v769, 127
        %v802 = vrot.slane %v721, 7
        %v803 = vrot.slane %v722, 7
        %v804 = vrot.slane %v723, 7
        %v805 = vrot.slane %v724, 7
        %v806 = vrot.slane %v725, 7
        %v807 = vrot.slane %v726, 7
        %v808 = vrot.slane %v727, 7
        %v809 = vrot.slane %v728, 7
        %v810 = vrot.slane %v729, 7
        %v811 = vrot.slane %v730, 7
        %v812 = vrot.slane %v731, 7
        %v813 = vrot.slane %v732, 7
        %v814 = vrot.slane %v733, 7
        %v815 = vrot.slane %v734, 7
        %v816 = vrot.slane %v735, 7
        %v817 = vrot.slane %v736, 7
        %vm818 = vcmp.lt.s32.totalorder %v754, 1
        %v819 = vsel %vm818, %v816, %v817
        %v820 = vsel %vm818, %v815, %v816
        %v821 = vsel %vm818, %v814, %v815
        %v822 = vsel %vm818, %v813, %v814
        %v823 = vsel %vm818, %v812, %v813
        %v824 = vsel %vm818, %v811, %v812
        %v825 = vsel %vm818, %v810, %v811
        %v826 = vsel %vm818, %v809, %v810
        %v827 = vsel %vm818, %v808, %v809
        %v828 = vsel %vm818, %v807, %v808
        %v829 = vsel %vm818, %v806, %v807
        %v830 = vsel %vm818, %v805, %v806
        %v831 = vsel %vm818, %v804, %v805
        %v832 = vsel %vm818, %v803, %v804
        %v833 = vsel %vm818, %v802, %v803
        %v834 = vsel %vm818, %v817, %v802
        %v835 = vsel %vm770, 1, 0
        %v836 = vsel %vm771, 1, 0
        %v837 = vsel %vm772, 1, 0
        %v838 = vsel %vm773, 1, 0
        %v839 = vsel %vm774, 1, 0
        %v840 = vsel %vm775, 1, 0
        %v841 = vsel %vm776, 1, 0
        %v842 = vsel %vm777, 1, 0
        %v843 = vsel %vm778, 1, 0
        %v844 = vsel %vm779, 1, 0
        %v845 = vsel %vm780, 1, 0
        %v846 = vsel %vm781, 1, 0
        %v847 = vsel %vm782, 1, 0
        %v848 = vsel %vm783, 1, 0
        %v849 = vsel %vm784, 1, 0
        %v850 = vsel %vm785, 1, 0
        %vm851 = vcmp.eq.s32.totalorder %v835, 1
        %vm852 = vcmp.eq.s32.totalorder %v836, 1
        %vm853 = vcmp.eq.s32.totalorder %v837, 1
        %vm854 = vcmp.eq.s32.totalorder %v838, 1
        %vm855 = vcmp.eq.s32.totalorder %v839, 1
        %vm856 = vcmp.eq.s32.totalorder %v840, 1
        %vm857 = vcmp.eq.s32.totalorder %v841, 1
        %vm858 = vcmp.eq.s32.totalorder %v842, 1
        %vm859 = vcmp.eq.s32.totalorder %v843, 1
        %vm860 = vcmp.eq.s32.totalorder %v844, 1
        %vm861 = vcmp.eq.s32.totalorder %v845, 1
        %vm862 = vcmp.eq.s32.totalorder %v846, 1
        %vm863 = vcmp.eq.s32.totalorder %v847, 1
        %vm864 = vcmp.eq.s32.totalorder %v848, 1
        %vm865 = vcmp.eq.s32.totalorder %v849, 1
        %vm866 = vcmp.eq.s32.totalorder %v850, 1
        %v867 = vsel %vm851, 0.0, %v834
        %v868 = vsel %vm852, 0.0, %v833
        %v869 = vsel %vm853, 0.0, %v832
        %v870 = vsel %vm854, 0.0, %v831
        %v871 = vsel %vm855, 0.0, %v830
        %v872 = vsel %vm856, 0.0, %v829
        %v873 = vsel %vm857, 0.0, %v828
        %v874 = vsel %vm858, 0.0, %v827
        %v875 = vsel %vm859, 0.0, %v826
        %v876 = vsel %vm860, 0.0, %v825
        %v877 = vsel %vm861, 0.0, %v824
        %v878 = vsel %vm862, 0.0, %v823
        %v879 = vsel %vm863, 0.0, %v822
        %v880 = vsel %vm864, 0.0, %v821
        %v881 = vsel %vm865, 0.0, %v820
        %v882 = vsel %vm866, 0.0, %v819
        %v883 = vrot.slane %v721, 1
        %v884 = vrot.slane %v722, 1
        %v885 = vrot.slane %v723, 1
        %v886 = vrot.slane %v724, 1
        %v887 = vrot.slane %v725, 1
        %v888 = vrot.slane %v726, 1
        %v889 = vrot.slane %v727, 1
        %v890 = vrot.slane %v728, 1
        %v891 = vrot.slane %v729, 1
        %v892 = vrot.slane %v730, 1
        %v893 = vrot.slane %v731, 1
        %v894 = vrot.slane %v732, 1
        %v895 = vrot.slane %v733, 1
        %v896 = vrot.slane %v734, 1
        %v897 = vrot.slane %v735, 1
        %v898 = vrot.slane %v736, 1
        %vm899 = vcmp.lt.s32.totalorder %v754, 7
        %v900 = vsel %vm899, %v897, %v898
        %v901 = vsel %vm899, %v896, %v897
        %v902 = vsel %vm899, %v895, %v896
        %v903 = vsel %vm899, %v894, %v895
        %v904 = vsel %vm899, %v893, %v894
        %v905 = vsel %vm899, %v892, %v893
        %v906 = vsel %vm899, %v891, %v892
        %v907 = vsel %vm899, %v890, %v891
        %v908 = vsel %vm899, %v889, %v890
        %v909 = vsel %vm899, %v888, %v889
        %v910 = vsel %vm899, %v887, %v888
        %v911 = vsel %vm899, %v886, %v887
        %v912 = vsel %vm899, %v885, %v886
        %v913 = vsel %vm899, %v884, %v885
        %v914 = vsel %vm899, %v883, %v884
        %v915 = vsel %vm899, %v898, %v883
        %v916 = vsel %vm786, 1, 0
        %v917 = vsel %vm787, 1, 0
        %v918 = vsel %vm788, 1, 0
        %v919 = vsel %vm789, 1, 0
        %v920 = vsel %vm790, 1, 0
        %v921 = vsel %vm791, 1, 0
        %v922 = vsel %vm792, 1, 0
        %v923 = vsel %vm793, 1, 0
        %v924 = vsel %vm794, 1, 0
        %v925 = vsel %vm795, 1, 0
        %v926 = vsel %vm796, 1, 0
        %v927 = vsel %vm797, 1, 0
        %v928 = vsel %vm798, 1, 0
        %v929 = vsel %vm799, 1, 0
        %v930 = vsel %vm800, 1, 0
        %v931 = vsel %vm801, 1, 0
        %vm932 = vcmp.eq.s32.totalorder %v916, 1
        %vm933 = vcmp.eq.s32.totalorder %v917, 1
        %vm934 = vcmp.eq.s32.totalorder %v918, 1
        %vm935 = vcmp.eq.s32.totalorder %v919, 1
        %vm936 = vcmp.eq.s32.totalorder %v920, 1
        %vm937 = vcmp.eq.s32.totalorder %v921, 1
        %vm938 = vcmp.eq.s32.totalorder %v922, 1
        %vm939 = vcmp.eq.s32.totalorder %v923, 1
        %vm940 = vcmp.eq.s32.totalorder %v924, 1
        %vm941 = vcmp.eq.s32.totalorder %v925, 1
        %vm942 = vcmp.eq.s32.totalorder %v926, 1
        %vm943 = vcmp.eq.s32.totalorder %v927, 1
        %vm944 = vcmp.eq.s32.totalorder %v928, 1
        %vm945 = vcmp.eq.s32.totalorder %v929, 1
        %vm946 = vcmp.eq.s32.totalorder %v930, 1
        %vm947 = vcmp.eq.s32.totalorder %v931, 1
        %v948 = vsel %vm932, 0.0, %v914
        %v949 = vsel %vm933, 0.0, %v913
        %v950 = vsel %vm934, 0.0, %v912
        %v951 = vsel %vm935, 0.0, %v911
        %v952 = vsel %vm936, 0.0, %v910
        %v953 = vsel %vm937, 0.0, %v909
        %v954 = vsel %vm938, 0.0, %v908
        %v955 = vsel %vm939, 0.0, %v907
        %v956 = vsel %vm940, 0.0, %v906
        %v957 = vsel %vm941, 0.0, %v905
        %v958 = vsel %vm942, 0.0, %v904
        %v959 = vsel %vm943, 0.0, %v903
        %v960 = vsel %vm944, 0.0, %v902
        %v961 = vsel %vm945, 0.0, %v901
        %v962 = vsel %vm946, 0.0, %v900
        %v963 = vsel %vm947, 0.0, %v915
        %980 = vrot.lane.b32.xlu0 %v721, 16
        %v981 = vpop.permute.xlu0 %980
        %982 = vrot.lane.b32.xlu0 %v722, 16
        %v983 = vpop.permute.xlu0 %982
        %984 = vrot.lane.b32.xlu0 %v723, 16
        %v985 = vpop.permute.xlu0 %984
        %986 = vrot.lane.b32.xlu0 %v724, 16
        %v987 = vpop.permute.xlu0 %986
        %988 = vrot.lane.b32.xlu0 %v725, 16
        %v989 = vpop.permute.xlu0 %988
        %990 = vrot.lane.b32.xlu0 %v726, 16
        %v991 = vpop.permute.xlu0 %990
        %992 = vrot.lane.b32.xlu0 %v727, 16
        %v993 = vpop.permute.xlu0 %992
        %994 = vrot.lane.b32.xlu0 %v728, 16
        %v995 = vpop.permute.xlu0 %994
        %996 = vrot.lane.b32.xlu0 %v729, 16
        %v997 = vpop.permute.xlu0 %996
        %998 = vrot.lane.b32.xlu0 %v730, 16
        %v999 = vpop.permute.xlu0 %998
        %1000 = vrot.lane.b32.xlu0 %v731, 16
        %v1001 = vpop.permute.xlu0 %1000
        %1002 = vrot.lane.b32.xlu0 %v732, 16
        %v1003 = vpop.permute.xlu0 %1002
        %1004 = vrot.lane.b32.xlu0 %v733, 16
        %v1005 = vpop.permute.xlu0 %1004
        %1006 = vrot.lane.b32.xlu0 %v734, 16
        %v1007 = vpop.permute.xlu0 %1006
        %1008 = vrot.lane.b32.xlu0 %v735, 16
        %v1009 = vpop.permute.xlu0 %1008
        %1010 = vrot.lane.b32.xlu0 %v736, 16
        %v1011 = vpop.permute.xlu0 %1010
        %1044 = vrot.lane.b32.xlu0 %v948, 32
        %v1045 = vpop.permute.xlu0 %1044
        %1046 = vrot.lane.b32.xlu0 %v949, 32
        %v1047 = vpop.permute.xlu0 %1046
        %1048 = vrot.lane.b32.xlu0 %v950, 32
        %v1049 = vpop.permute.xlu0 %1048
        %1050 = vrot.lane.b32.xlu0 %v951, 32
        %v1051 = vpop.permute.xlu0 %1050
        %1052 = vrot.lane.b32.xlu0 %v952, 32
        %v1053 = vpop.permute.xlu0 %1052
        %1054 = vrot.lane.b32.xlu0 %v953, 32
        %v1055 = vpop.permute.xlu0 %1054
        %1056 = vrot.lane.b32.xlu0 %v954, 32
        %v1057 = vpop.permute.xlu0 %1056
        %1058 = vrot.lane.b32.xlu0 %v955, 32
        %v1059 = vpop.permute.xlu0 %1058
        %1060 = vrot.lane.b32.xlu0 %v956, 32
        %v1061 = vpop.permute.xlu0 %1060
        %1062 = vrot.lane.b32.xlu0 %v957, 32
        %v1063 = vpop.permute.xlu0 %1062
        %1064 = vrot.lane.b32.xlu0 %v958, 32
        %v1065 = vpop.permute.xlu0 %1064
        %1066 = vrot.lane.b32.xlu0 %v959, 32
        %v1067 = vpop.permute.xlu0 %1066
        %1068 = vrot.lane.b32.xlu0 %v960, 32
        %v1069 = vpop.permute.xlu0 %1068
        %1070 = vrot.lane.b32.xlu0 %v961, 32
        %v1071 = vpop.permute.xlu0 %1070
        %1072 = vrot.lane.b32.xlu0 %v962, 32
        %v1073 = vpop.permute.xlu0 %1072
        %1074 = vrot.lane.b32.xlu0 %v963, 32
        %v1075 = vpop.permute.xlu0 %1074
        %vm1092 = vcmask 130048
        %v1093 = vsel %vm1092, %v867, %v981
        %v1094 = vsel %vm1092, %v868, %v983
        %v1095 = vsel %vm1092, %v869, %v985
        %v1096 = vsel %vm1092, %v870, %v987
        %v1097 = vsel %vm1092, %v871, %v989
        %v1098 = vsel %vm1092, %v872, %v991
        %v1099 = vsel %vm1092, %v873, %v993
        %v1100 = vsel %vm1092, %v874, %v995
        %v1101 = vsel %vm1092, %v875, %v997
        %v1102 = vsel %vm1092, %v876, %v999
        %v1103 = vsel %vm1092, %v877, %v1001
        %v1104 = vsel %vm1092, %v878, %v1003
        %v1105 = vsel %vm1092, %v879, %v1005
        %v1106 = vsel %vm1092, %v880, %v1007
        %v1107 = vsel %vm1092, %v881, %v1009
        %v1108 = vsel %vm1092, %v882, %v1011
        %vm1109 = vcmask 261120
        %v1110 = vsel %vm1109, %v1093, %v1045
        %v1111 = vsel %vm1109, %v1094, %v1047
        %v1112 = vsel %vm1109, %v1095, %v1049
        %v1113 = vsel %vm1109, %v1096, %v1051
        %v1114 = vsel %vm1109, %v1097, %v1053
        %v1115 = vsel %vm1109, %v1098, %v1055
        %v1116 = vsel %vm1109, %v1099, %v1057
        %v1117 = vsel %vm1109, %v1100, %v1059
        %v1118 = vsel %vm1109, %v1101, %v1061
        %v1119 = vsel %vm1109, %v1102, %v1063
        %v1120 = vsel %vm1109, %v1103, %v1065
        %v1121 = vsel %vm1109, %v1104, %v1067
        %v1122 = vsel %vm1109, %v1105, %v1069
        %v1123 = vsel %vm1109, %v1106, %v1071
        %v1124 = vsel %vm1109, %v1107, %v1073
        %v1125 = vsel %vm1109, %v1108, %v1075
        %v1126 = vld [vmem:[%s2] sm:$0xff]
        %v1127 = vld [vmem:[%s2 + $0x8] sm:$0xff]
        %v1128 = vld [vmem:[%s2 + $0x10] sm:$0xff]
        %v1129 = vld [vmem:[%s2 + $0x18] sm:$0xff]
        %v1130 = vld [vmem:[%s2 + $0x20] sm:$0xff]
        %v1131 = vld [vmem:[%s2 + $0x28] sm:$0xff]
        %v1132 = vld [vmem:[%s3] sm:$0x1]
        %v1134 = vperm.slane %v1132, 0
        %vm1136 = vcmask 392192
        %v1138 = vsel %vm1136, %v1110, 0
        %v1141 = vsel %vm1136, %v1111, 0
        %v1144 = vsel %vm1136, %v1112, 0
        %v1147 = vsel %vm1136, %v1113, 0
        %v1150 = vsel %vm1136, %v1114, 0
        %v1153 = vsel %vm1136, %v1115, 0
        %v1156 = vsel %vm1136, %v1116, 0
        %v1159 = vsel %vm1136, %v1117, 0
        %v1162 = vsel %vm1136, %v1118, 0
        %v1165 = vsel %vm1136, %v1119, 0
        %v1168 = vsel %vm1136, %v1120, 0
        %v1171 = vsel %vm1136, %v1121, 0
        %v1174 = vsel %vm1136, %v1122, 0
        %v1177 = vsel %vm1136, %v1123, 0
        %v1180 = vsel %vm1136, %v1124, 0
        %v1183 = vsel %vm1136, %v1125, 0
        %1185 = vmatpush.msra.mxu0 0.0
        %1186 = vmatpush.msra.mxu0 0.0
        %1187 = vmatpush.msra.mxu0 0.0
        %1188 = vmatpush.msra.mxu0 0.0
        %1189 = vmatpush.msra.mxu0 0.0
        %1190 = vmatpush.msra.mxu0 0.0
        %1191 = vmatpush.msra.mxu0 0.0
        %1192 = vmatpush.msra.mxu0 0.0
        %1193 = vmatpush.msra.mxu0 0.0
        %1194 = vmatpush.msra.mxu0 0.0
        %1195 = vmatpush.msra.mxu0 %v1131
        %1196 = vmatpush.msra.mxu0 %v1130
        %1197 = vmatpush.msra.mxu0 %v1129
        %1198 = vmatpush.msra.mxu0 %v1128
        %1199 = vmatpush.msra.mxu0 %v1127
        %1200 = vmatpush.msra.mxu0 %v1126
        %1201 = vmatmul.f32.gmra.mxu0 %v1138
        %v1202 = vpop.f32.mrf.mxu0
        %v1203 = vadd.f32 %v1134, %v1202
        %1204 = vmatmul.f32.gmra.mxu0 %v1141
        %v1205 = vpop.f32.mrf.mxu0
        %v1206 = vadd.f32 %v1134, %v1205
        %1207 = vmatmul.f32.gmra.mxu0 %v1144
        %v1208 = vpop.f32.mrf.mxu0
        %v1209 = vadd.f32 %v1134, %v1208
        %1210 = vmatmul.f32.gmra.mxu0 %v1147
        %v1211 = vpop.f32.mrf.mxu0
        %v1212 = vadd.f32 %v1134, %v1211
        %1213 = vmatmul.f32.gmra.mxu0 %v1150
        %v1214 = vpop.f32.mrf.mxu0
        %v1215 = vadd.f32 %v1134, %v1214
        %1216 = vmatmul.f32.gmra.mxu0 %v1153
        %v1217 = vpop.f32.mrf.mxu0
        %v1218 = vadd.f32 %v1134, %v1217
        %1219 = vmatmul.f32.gmra.mxu0 %v1156
        %v1220 = vpop.f32.mrf.mxu0
        %v1221 = vadd.f32 %v1134, %v1220
        %1222 = vmatmul.f32.gmra.mxu0 %v1159
        %v1223 = vpop.f32.mrf.mxu0
        %v1224 = vadd.f32 %v1134, %v1223
        %1225 = vmatmul.f32.gmra.mxu0 %v1162
        %v1226 = vpop.f32.mrf.mxu0
        %v1227 = vadd.f32 %v1134, %v1226
        %1228 = vmatmul.f32.gmra.mxu0 %v1165
        %v1229 = vpop.f32.mrf.mxu0
        %v1230 = vadd.f32 %v1134, %v1229
        %1231 = vmatmul.f32.gmra.mxu0 %v1168
        %v1232 = vpop.f32.mrf.mxu0
        %v1233 = vadd.f32 %v1134, %v1232
        %1234 = vmatmul.f32.gmra.mxu0 %v1171
        %v1235 = vpop.f32.mrf.mxu0
        %v1236 = vadd.f32 %v1134, %v1235
        %1237 = vmatmul.f32.gmra.mxu0 %v1174
        %v1238 = vpop.f32.mrf.mxu0
        %v1239 = vadd.f32 %v1134, %v1238
        %1240 = vmatmul.f32.gmra.mxu0 %v1177
        %v1241 = vpop.f32.mrf.mxu0
        %v1242 = vadd.f32 %v1134, %v1241
        %1243 = vmatmul.f32.gmra.mxu0 %v1180
        %v1244 = vpop.f32.mrf.mxu0
        %v1245 = vadd.f32 %v1134, %v1244
        %1246 = vmatmul.f32.gmra.mxu0 %v1183
        %v1247 = vpop.f32.mrf.mxu0
        %v1248 = vadd.f32 %v1134, %v1247
        %1249 = vdwg.mxu0
        %v1250 = vmax.f32 %v1203, 0.0
        %v1251 = vmax.f32 %v1206, 0.0
        %v1252 = vmax.f32 %v1209, 0.0
        %v1253 = vmax.f32 %v1212, 0.0
        %v1254 = vmax.f32 %v1215, 0.0
        %v1255 = vmax.f32 %v1218, 0.0
        %v1256 = vmax.f32 %v1221, 0.0
        %v1257 = vmax.f32 %v1224, 0.0
        %v1258 = vmax.f32 %v1227, 0.0
        %v1259 = vmax.f32 %v1230, 0.0
        %v1260 = vmax.f32 %v1233, 0.0
        %v1261 = vmax.f32 %v1236, 0.0
        %v1262 = vmax.f32 %v1239, 0.0
        %v1263 = vmax.f32 %v1242, 0.0
        %v1264 = vmax.f32 %v1245, 0.0
        %v1265 = vmax.f32 %v1248, 0.0
        %1266 = vrot.lane.b32.xlu0 %v721, 32
        %v1267 = vpop.permute.xlu0 %1266
        %1268 = vrot.lane.b32.xlu0 %v722, 32
        %v1269 = vpop.permute.xlu0 %1268
        %1270 = vrot.lane.b32.xlu0 %v723, 32
        %v1271 = vpop.permute.xlu0 %1270
        %1272 = vrot.lane.b32.xlu0 %v724, 32
        %v1273 = vpop.permute.xlu0 %1272
        %1274 = vrot.lane.b32.xlu0 %v725, 32
        %v1275 = vpop.permute.xlu0 %1274
        %1276 = vrot.lane.b32.xlu0 %v726, 32
        %v1277 = vpop.permute.xlu0 %1276
        %1278 = vrot.lane.b32.xlu0 %v727, 32
        %v1279 = vpop.permute.xlu0 %1278
        %1280 = vrot.lane.b32.xlu0 %v728, 32
        %v1281 = vpop.permute.xlu0 %1280
        %1282 = vrot.lane.b32.xlu0 %v729, 32
        %v1283 = vpop.permute.xlu0 %1282
        %1284 = vrot.lane.b32.xlu0 %v730, 32
        %v1285 = vpop.permute.xlu0 %1284
        %1286 = vrot.lane.b32.xlu0 %v731, 32
        %v1287 = vpop.permute.xlu0 %1286
        %1288 = vrot.lane.b32.xlu0 %v732, 32
        %v1289 = vpop.permute.xlu0 %1288
        %1290 = vrot.lane.b32.xlu0 %v733, 32
        %v1291 = vpop.permute.xlu0 %1290
        %1292 = vrot.lane.b32.xlu0 %v734, 32
        %v1293 = vpop.permute.xlu0 %1292
        %1294 = vrot.lane.b32.xlu0 %v735, 32
        %v1295 = vpop.permute.xlu0 %1294
        %1296 = vrot.lane.b32.xlu0 %v736, 32
        %v1297 = vpop.permute.xlu0 %1296
        %v1314 = vsel %vm1109, %v1250, %v1267
        %v1315 = vsel %vm1109, %v1251, %v1269
        %v1316 = vsel %vm1109, %v1252, %v1271
        %v1317 = vsel %vm1109, %v1253, %v1273
        %v1318 = vsel %vm1109, %v1254, %v1275
        %v1319 = vsel %vm1109, %v1255, %v1277
        %v1320 = vsel %vm1109, %v1256, %v1279
        %v1321 = vsel %vm1109, %v1257, %v1281
        %v1322 = vsel %vm1109, %v1258, %v1283
        %v1323 = vsel %vm1109, %v1259, %v1285
        %v1324 = vsel %vm1109, %v1260, %v1287
        %v1325 = vsel %vm1109, %v1261, %v1289
        %v1326 = vsel %vm1109, %v1262, %v1291
        %v1327 = vsel %vm1109, %v1263, %v1293
        %v1328 = vsel %vm1109, %v1264, %v1295
        %v1329 = vsel %vm1109, %v1265, %v1297
        %v1330 = vld [vmem:[%s4] sm:$0xff]
        %v1331 = vld [vmem:[%s4 + $0x8] sm:$0xff]
        %v1332 = vld [vmem:[%s4 + $0x10] sm:$0xff]
        %v1333 = vld [vmem:[%s4 + $0x18] sm:$0xff]
        %v1334 = vld [vmem:[%s4 + $0x20] sm:$0xff]
        %v1335 = vld [vmem:[%s4 + $0x28] sm:$0xff]
        %v1336 = vld [vmem:[%s4 + $0x30] sm:$0xff]
        %v1337 = vld [vmem:[%s4 + $0x38] sm:$0xff]
        %v1338 = vld [vmem:[%s4 + $0x40] sm:$0xff]
        %v1339 = vld [vmem:[%s4 + $0x48] sm:$0xff]
        %v1340 = vld [vmem:[%s4 + $0x50] sm:$0xff]
        %v1341 = vld [vmem:[%s4 + $0x58] sm:$0xff]
        %v1342 = vld [vmem:[%s4 + $0x60] sm:$0xff]
        %v1343 = vld [vmem:[%s4 + $0x68] sm:$0xff]
        %v1344 = vld [vmem:[%s4 + $0x70] sm:$0xff]
        %v1345 = vld [vmem:[%s4 + $0x78] sm:$0xff]
        %v1346 = vld [vmem:[%s4 + $0x80] sm:$0xff]
        %v1347 = vld [vmem:[%s4 + $0x88] sm:$0xff]
        %v1348 = vld [vmem:[%s4 + $0x90] sm:$0xff]
        %v1349 = vld [vmem:[%s4 + $0x98] sm:$0xff]
        %v1350 = vld [vmem:[%s4 + $0xa0] sm:$0xff]
        %v1351 = vld [vmem:[%s4 + $0xa8] sm:$0xff]
        %v1352 = vld [vmem:[%s4 + $0xb0] sm:$0xff]
        %v1353 = vld [vmem:[%s4 + $0xb8] sm:$0xff]
        %v1354 = vld [vmem:[%s5] sm:$0xf]
        %v1356 = vperm.slane %v1354, 0
        %v1357 = vperm.slane %v1354, 1
        %v1358 = vperm.slane %v1354, 2
        %v1359 = vperm.slane %v1354, 3
        %v1365 = vsel %vm1136, %v1314, 0
        %v1368 = vsel %vm1136, %v1315, 0
        %v1371 = vsel %vm1136, %v1316, 0
        %v1374 = vsel %vm1136, %v1317, 0
        %v1377 = vsel %vm1136, %v1318, 0
        %v1380 = vsel %vm1136, %v1319, 0
        %v1383 = vsel %vm1136, %v1320, 0
        %v1386 = vsel %vm1136, %v1321, 0
        %v1389 = vsel %vm1136, %v1322, 0
        %v1392 = vsel %vm1136, %v1323, 0
        %v1395 = vsel %vm1136, %v1324, 0
        %v1398 = vsel %vm1136, %v1325, 0
        %v1401 = vsel %vm1136, %v1326, 0
        %v1404 = vsel %vm1136, %v1327, 0
        %v1407 = vsel %vm1136, %v1328, 0
        %v1410 = vsel %vm1136, %v1329, 0
        %1412 = vmatpush.msra.mxu0 0.0
        %1413 = vmatpush.msra.mxu0 0.0
        %1414 = vmatpush.msra.mxu0 0.0
        %1415 = vmatpush.msra.mxu0 0.0
        %1416 = vmatpush.msra.mxu0 0.0
        %1417 = vmatpush.msra.mxu0 0.0
        %1418 = vmatpush.msra.mxu0 0.0
        %1419 = vmatpush.msra.mxu0 0.0
        %1420 = vmatpush.msra.mxu0 0.0
        %1421 = vmatpush.msra.mxu0 0.0
        %1422 = vmatpush.msra.mxu0 %v1350
        %1423 = vmatpush.msra.mxu0 %v1346
        %1424 = vmatpush.msra.mxu0 %v1342
        %1425 = vmatpush.msra.mxu0 %v1338
        %1426 = vmatpush.msra.mxu0 %v1334
        %1427 = vmatpush.msra.mxu0 %v1330
        %1428 = vmatmul.f32.gmra.mxu0 %v1365
        %v1429 = vpop.f32.mrf.mxu0
        %v1430 = vadd.f32 %v1356, %v1429
        %1431 = vmatmul.f32.gmra.mxu0 %v1368
        %v1432 = vpop.f32.mrf.mxu0
        %v1433 = vadd.f32 %v1356, %v1432
        %1434 = vmatmul.f32.gmra.mxu0 %v1371
        %v1435 = vpop.f32.mrf.mxu0
        %v1436 = vadd.f32 %v1356, %v1435
        %1437 = vmatmul.f32.gmra.mxu0 %v1374
        %v1438 = vpop.f32.mrf.mxu0
        %v1439 = vadd.f32 %v1356, %v1438
        %1440 = vmatmul.f32.gmra.mxu0 %v1377
        %v1441 = vpop.f32.mrf.mxu0
        %v1442 = vadd.f32 %v1356, %v1441
        %1443 = vmatmul.f32.gmra.mxu0 %v1380
        %v1444 = vpop.f32.mrf.mxu0
        %v1445 = vadd.f32 %v1356, %v1444
        %1446 = vmatmul.f32.gmra.mxu0 %v1383
        %v1447 = vpop.f32.mrf.mxu0
        %v1448 = vadd.f32 %v1356, %v1447
        %1449 = vmatmul.f32.gmra.mxu0 %v1386
        %v1450 = vpop.f32.mrf.mxu0
        %v1451 = vadd.f32 %v1356, %v1450
        %1452 = vmatmul.f32.gmra.mxu0 %v1389
        %v1453 = vpop.f32.mrf.mxu0
        %v1454 = vadd.f32 %v1356, %v1453
        %1455 = vmatmul.f32.gmra.mxu0 %v1392
        %v1456 = vpop.f32.mrf.mxu0
        %v1457 = vadd.f32 %v1356, %v1456
        %1458 = vmatmul.f32.gmra.mxu0 %v1395
        %v1459 = vpop.f32.mrf.mxu0
        %v1460 = vadd.f32 %v1356, %v1459
        %1461 = vmatmul.f32.gmra.mxu0 %v1398
        %v1462 = vpop.f32.mrf.mxu0
        %v1463 = vadd.f32 %v1356, %v1462
        %1464 = vmatmul.f32.gmra.mxu0 %v1401
        %v1465 = vpop.f32.mrf.mxu0
        %v1466 = vadd.f32 %v1356, %v1465
        %1467 = vmatmul.f32.gmra.mxu0 %v1404
        %v1468 = vpop.f32.mrf.mxu0
        %v1469 = vadd.f32 %v1356, %v1468
        %1470 = vmatmul.f32.gmra.mxu0 %v1407
        %v1471 = vpop.f32.mrf.mxu0
        %v1472 = vadd.f32 %v1356, %v1471
        %1473 = vmatmul.f32.gmra.mxu0 %v1410
        %v1474 = vpop.f32.mrf.mxu0
        %v1475 = vadd.f32 %v1356, %v1474
        %1476 = vdwg.mxu0
        %1477 = vmatpush.msra.mxu0 0.0
        %1478 = vmatpush.msra.mxu0 0.0
        %1479 = vmatpush.msra.mxu0 0.0
        %1480 = vmatpush.msra.mxu0 0.0
        %1481 = vmatpush.msra.mxu0 0.0
        %1482 = vmatpush.msra.mxu0 0.0
        %1483 = vmatpush.msra.mxu0 0.0
        %1484 = vmatpush.msra.mxu0 0.0
        %1485 = vmatpush.msra.mxu0 0.0
        %1486 = vmatpush.msra.mxu0 0.0
        %1487 = vmatpush.msra.mxu0 %v1351
        %1488 = vmatpush.msra.mxu0 %v1347
        %1489 = vmatpush.msra.mxu0 %v1343
        %1490 = vmatpush.msra.mxu0 %v1339
        %1491 = vmatpush.msra.mxu0 %v1335
        %1492 = vmatpush.msra.mxu0 %v1331
        %1493 = vmatmul.f32.gmra.mxu0 %v1365
        %v1494 = vpop.f32.mrf.mxu0
        %v1495 = vadd.f32 %v1357, %v1494
        %1496 = vmatmul.f32.gmra.mxu0 %v1368
        %v1497 = vpop.f32.mrf.mxu0
        %v1498 = vadd.f32 %v1357, %v1497
        %1499 = vmatmul.f32.gmra.mxu0 %v1371
        %v1500 = vpop.f32.mrf.mxu0
        %v1501 = vadd.f32 %v1357, %v1500
        %1502 = vmatmul.f32.gmra.mxu0 %v1374
        %v1503 = vpop.f32.mrf.mxu0
        %v1504 = vadd.f32 %v1357, %v1503
        %1505 = vmatmul.f32.gmra.mxu0 %v1377
        %v1506 = vpop.f32.mrf.mxu0
        %v1507 = vadd.f32 %v1357, %v1506
        %1508 = vmatmul.f32.gmra.mxu0 %v1380
        %v1509 = vpop.f32.mrf.mxu0
        %v1510 = vadd.f32 %v1357, %v1509
        %1511 = vmatmul.f32.gmra.mxu0 %v1383
        %v1512 = vpop.f32.mrf.mxu0
        %v1513 = vadd.f32 %v1357, %v1512
        %1514 = vmatmul.f32.gmra.mxu0 %v1386
        %v1515 = vpop.f32.mrf.mxu0
        %v1516 = vadd.f32 %v1357, %v1515
        %1517 = vmatmul.f32.gmra.mxu0 %v1389
        %v1518 = vpop.f32.mrf.mxu0
        %v1519 = vadd.f32 %v1357, %v1518
        %1520 = vmatmul.f32.gmra.mxu0 %v1392
        %v1521 = vpop.f32.mrf.mxu0
        %v1522 = vadd.f32 %v1357, %v1521
        %1523 = vmatmul.f32.gmra.mxu0 %v1395
        %v1524 = vpop.f32.mrf.mxu0
        %v1525 = vadd.f32 %v1357, %v1524
        %1526 = vmatmul.f32.gmra.mxu0 %v1398
        %v1527 = vpop.f32.mrf.mxu0
        %v1528 = vadd.f32 %v1357, %v1527
        %1529 = vmatmul.f32.gmra.mxu0 %v1401
        %v1530 = vpop.f32.mrf.mxu0
        %v1531 = vadd.f32 %v1357, %v1530
        %1532 = vmatmul.f32.gmra.mxu0 %v1404
        %v1533 = vpop.f32.mrf.mxu0
        %v1534 = vadd.f32 %v1357, %v1533
        %1535 = vmatmul.f32.gmra.mxu0 %v1407
        %v1536 = vpop.f32.mrf.mxu0
        %v1537 = vadd.f32 %v1357, %v1536
        %1538 = vmatmul.f32.gmra.mxu0 %v1410
        %v1539 = vpop.f32.mrf.mxu0
        %v1540 = vadd.f32 %v1357, %v1539
        %1541 = vdwg.mxu0
        %1542 = vmatpush.msra.mxu0 0.0
        %1543 = vmatpush.msra.mxu0 0.0
        %1544 = vmatpush.msra.mxu0 0.0
        %1545 = vmatpush.msra.mxu0 0.0
        %1546 = vmatpush.msra.mxu0 0.0
        %1547 = vmatpush.msra.mxu0 0.0
        %1548 = vmatpush.msra.mxu0 0.0
        %1549 = vmatpush.msra.mxu0 0.0
        %1550 = vmatpush.msra.mxu0 0.0
        %1551 = vmatpush.msra.mxu0 0.0
        %1552 = vmatpush.msra.mxu0 %v1352
        %1553 = vmatpush.msra.mxu0 %v1348
        %1554 = vmatpush.msra.mxu0 %v1344
        %1555 = vmatpush.msra.mxu0 %v1340
        %1556 = vmatpush.msra.mxu0 %v1336
        %1557 = vmatpush.msra.mxu0 %v1332
        %1558 = vmatmul.f32.gmra.mxu0 %v1365
        %v1559 = vpop.f32.mrf.mxu0
        %v1560 = vadd.f32 %v1358, %v1559
        %1561 = vmatmul.f32.gmra.mxu0 %v1368
        %v1562 = vpop.f32.mrf.mxu0
        %v1563 = vadd.f32 %v1358, %v1562
        %1564 = vmatmul.f32.gmra.mxu0 %v1371
        %v1565 = vpop.f32.mrf.mxu0
        %v1566 = vadd.f32 %v1358, %v1565
        %1567 = vmatmul.f32.gmra.mxu0 %v1374
        %v1568 = vpop.f32.mrf.mxu0
        %v1569 = vadd.f32 %v1358, %v1568
        %1570 = vmatmul.f32.gmra.mxu0 %v1377
        %v1571 = vpop.f32.mrf.mxu0
        %v1572 = vadd.f32 %v1358, %v1571
        %1573 = vmatmul.f32.gmra.mxu0 %v1380
        %v1574 = vpop.f32.mrf.mxu0
        %v1575 = vadd.f32 %v1358, %v1574
        %1576 = vmatmul.f32.gmra.mxu0 %v1383
        %v1577 = vpop.f32.mrf.mxu0
        %v1578 = vadd.f32 %v1358, %v1577
        %1579 = vmatmul.f32.gmra.mxu0 %v1386
        %v1580 = vpop.f32.mrf.mxu0
        %v1581 = vadd.f32 %v1358, %v1580
        %1582 = vmatmul.f32.gmra.mxu0 %v1389
        %v1583 = vpop.f32.mrf.mxu0
        %v1584 = vadd.f32 %v1358, %v1583
        %1585 = vmatmul.f32.gmra.mxu0 %v1392
        %v1586 = vpop.f32.mrf.mxu0
        %v1587 = vadd.f32 %v1358, %v1586
        %1588 = vmatmul.f32.gmra.mxu0 %v1395
        %v1589 = vpop.f32.mrf.mxu0
        %v1590 = vadd.f32 %v1358, %v1589
        %1591 = vmatmul.f32.gmra.mxu0 %v1398
        %v1592 = vpop.f32.mrf.mxu0
        %v1593 = vadd.f32 %v1358, %v1592
        %1594 = vmatmul.f32.gmra.mxu0 %v1401
        %v1595 = vpop.f32.mrf.mxu0
        %v1596 = vadd.f32 %v1358, %v1595
        %1597 = vmatmul.f32.gmra.mxu0 %v1404
        %v1598 = vpop.f32.mrf.mxu0
        %v1599 = vadd.f32 %v1358, %v1598
        %1600 = vmatmul.f32.gmra.mxu0 %v1407
        %v1601 = vpop.f32.mrf.mxu0
        %v1602 = vadd.f32 %v1358, %v1601
        %1603 = vmatmul.f32.gmra.mxu0 %v1410
        %v1604 = vpop.f32.mrf.mxu0
        %v1605 = vadd.f32 %v1358, %v1604
        %1606 = vdwg.mxu0
        %1607 = vmatpush.msra.mxu0 0.0
        %1608 = vmatpush.msra.mxu0 0.0
        %1609 = vmatpush.msra.mxu0 0.0
        %1610 = vmatpush.msra.mxu0 0.0
        %1611 = vmatpush.msra.mxu0 0.0
        %1612 = vmatpush.msra.mxu0 0.0
        %1613 = vmatpush.msra.mxu0 0.0
        %1614 = vmatpush.msra.mxu0 0.0
        %1615 = vmatpush.msra.mxu0 0.0
        %1616 = vmatpush.msra.mxu0 0.0
        %1617 = vmatpush.msra.mxu0 %v1353
        %1618 = vmatpush.msra.mxu0 %v1349
        %1619 = vmatpush.msra.mxu0 %v1345
        %1620 = vmatpush.msra.mxu0 %v1341
        %1621 = vmatpush.msra.mxu0 %v1337
        %1622 = vmatpush.msra.mxu0 %v1333
        %1623 = vmatmul.f32.gmra.mxu0 %v1365
        %v1624 = vpop.f32.mrf.mxu0
        %v1625 = vadd.f32 %v1359, %v1624
        %1626 = vmatmul.f32.gmra.mxu0 %v1368
        %v1627 = vpop.f32.mrf.mxu0
        %v1628 = vadd.f32 %v1359, %v1627
        %1629 = vmatmul.f32.gmra.mxu0 %v1371
        %v1630 = vpop.f32.mrf.mxu0
        %v1631 = vadd.f32 %v1359, %v1630
        %1632 = vmatmul.f32.gmra.mxu0 %v1374
        %v1633 = vpop.f32.mrf.mxu0
        %v1634 = vadd.f32 %v1359, %v1633
        %1635 = vmatmul.f32.gmra.mxu0 %v1377
        %v1636 = vpop.f32.mrf.mxu0
        %v1637 = vadd.f32 %v1359, %v1636
        %1638 = vmatmul.f32.gmra.mxu0 %v1380
        %v1639 = vpop.f32.mrf.mxu0
        %v1640 = vadd.f32 %v1359, %v1639
        %1641 = vmatmul.f32.gmra.mxu0 %v1383
        %v1642 = vpop.f32.mrf.mxu0
        %v1643 = vadd.f32 %v1359, %v1642
        %1644 = vmatmul.f32.gmra.mxu0 %v1386
        %v1645 = vpop.f32.mrf.mxu0
        %v1646 = vadd.f32 %v1359, %v1645
        %1647 = vmatmul.f32.gmra.mxu0 %v1389
        %v1648 = vpop.f32.mrf.mxu0
        %v1649 = vadd.f32 %v1359, %v1648
        %1650 = vmatmul.f32.gmra.mxu0 %v1392
        %v1651 = vpop.f32.mrf.mxu0
        %v1652 = vadd.f32 %v1359, %v1651
        %1653 = vmatmul.f32.gmra.mxu0 %v1395
        %v1654 = vpop.f32.mrf.mxu0
        %v1655 = vadd.f32 %v1359, %v1654
        %1656 = vmatmul.f32.gmra.mxu0 %v1398
        %v1657 = vpop.f32.mrf.mxu0
        %v1658 = vadd.f32 %v1359, %v1657
        %1659 = vmatmul.f32.gmra.mxu0 %v1401
        %v1660 = vpop.f32.mrf.mxu0
        %v1661 = vadd.f32 %v1359, %v1660
        %1662 = vmatmul.f32.gmra.mxu0 %v1404
        %v1663 = vpop.f32.mrf.mxu0
        %v1664 = vadd.f32 %v1359, %v1663
        %1665 = vmatmul.f32.gmra.mxu0 %v1407
        %v1666 = vpop.f32.mrf.mxu0
        %v1667 = vadd.f32 %v1359, %v1666
        %1668 = vmatmul.f32.gmra.mxu0 %v1410
        %v1669 = vpop.f32.mrf.mxu0
        %v1670 = vadd.f32 %v1359, %v1669
        %1671 = vdwg.mxu0
        %v1672 = vmax.f32 %v1430, 0.0
        %v1673 = vmax.f32 %v1495, 0.0
        %v1674 = vmax.f32 %v1560, 0.0
        %v1675 = vmax.f32 %v1625, 0.0
        %v1676 = vmax.f32 %v1433, 0.0
        %v1677 = vmax.f32 %v1498, 0.0
        %v1678 = vmax.f32 %v1563, 0.0
        %v1679 = vmax.f32 %v1628, 0.0
        %v1680 = vmax.f32 %v1436, 0.0
        %v1681 = vmax.f32 %v1501, 0.0
        %v1682 = vmax.f32 %v1566, 0.0
        %v1683 = vmax.f32 %v1631, 0.0
        %v1684 = vmax.f32 %v1439, 0.0
        %v1685 = vmax.f32 %v1504, 0.0
        %v1686 = vmax.f32 %v1569, 0.0
        %v1687 = vmax.f32 %v1634, 0.0
        %v1688 = vmax.f32 %v1442, 0.0
        %v1689 = vmax.f32 %v1507, 0.0
        %v1690 = vmax.f32 %v1572, 0.0
        %v1691 = vmax.f32 %v1637, 0.0
        %v1692 = vmax.f32 %v1445, 0.0
        %v1693 = vmax.f32 %v1510, 0.0
        %v1694 = vmax.f32 %v1575, 0.0
        %v1695 = vmax.f32 %v1640, 0.0
        %v1696 = vmax.f32 %v1448, 0.0
        %v1697 = vmax.f32 %v1513, 0.0
        %v1698 = vmax.f32 %v1578, 0.0
        %v1699 = vmax.f32 %v1643, 0.0
        %v1700 = vmax.f32 %v1451, 0.0
        %v1701 = vmax.f32 %v1516, 0.0
        %v1702 = vmax.f32 %v1581, 0.0
        %v1703 = vmax.f32 %v1646, 0.0
        %v1704 = vmax.f32 %v1454, 0.0
        %v1705 = vmax.f32 %v1519, 0.0
        %v1706 = vmax.f32 %v1584, 0.0
        %v1707 = vmax.f32 %v1649, 0.0
        %v1708 = vmax.f32 %v1457, 0.0
        %v1709 = vmax.f32 %v1522, 0.0
        %v1710 = vmax.f32 %v1587, 0.0
        %v1711 = vmax.f32 %v1652, 0.0
        %v1712 = vmax.f32 %v1460, 0.0
        %v1713 = vmax.f32 %v1525, 0.0
        %v1714 = vmax.f32 %v1590, 0.0
        %v1715 = vmax.f32 %v1655, 0.0
        %v1716 = vmax.f32 %v1463, 0.0
        %v1717 = vmax.f32 %v1528, 0.0
        %v1718 = vmax.f32 %v1593, 0.0
        %v1719 = vmax.f32 %v1658, 0.0
        %v1720 = vmax.f32 %v1466, 0.0
        %v1721 = vmax.f32 %v1531, 0.0
        %v1722 = vmax.f32 %v1596, 0.0
        %v1723 = vmax.f32 %v1661, 0.0
        %v1724 = vmax.f32 %v1469, 0.0
        %v1725 = vmax.f32 %v1534, 0.0
        %v1726 = vmax.f32 %v1599, 0.0
        %v1727 = vmax.f32 %v1664, 0.0
        %v1728 = vmax.f32 %v1472, 0.0
        %v1729 = vmax.f32 %v1537, 0.0
        %v1730 = vmax.f32 %v1602, 0.0
        %v1731 = vmax.f32 %v1667, 0.0
        %v1732 = vmax.f32 %v1475, 0.0
        %v1733 = vmax.f32 %v1540, 0.0
        %v1734 = vmax.f32 %v1605, 0.0
        %v1735 = vmax.f32 %v1670, 0.0
        %v1736 = vld [vmem:[%s6] sm:$0xff]
        %v1737 = vld [vmem:[%s6 + $0x8] sm:$0xff]
        %v1738 = vld [vmem:[%s6 + $0x10] sm:$0xff]
        %v1739 = vld [vmem:[%s6 + $0x18] sm:$0xff]
        %v1740 = vld [vmem:[%s6 + $0x20] sm:$0xff]
        %v1741 = vld [vmem:[%s6 + $0x28] sm:$0xff]
        %v1742 = vld [vmem:[%s6 + $0x30] sm:$0xff]
        %v1743 = vld [vmem:[%s6 + $0x38] sm:$0xff]
        %v1744 = vld [vmem:[%s6 + $0x40] sm:$0xff]
        %v1745 = vld [vmem:[%s6 + $0x48] sm:$0xff]
        %v1746 = vld [vmem:[%s6 + $0x50] sm:$0xff]
        %v1747 = vld [vmem:[%s6 + $0x58] sm:$0xff]
        %v1748 = vld [vmem:[%s6 + $0x60] sm:$0xff]
        %v1749 = vld [vmem:[%s6 + $0x68] sm:$0xff]
        %v1750 = vld [vmem:[%s6 + $0x70] sm:$0xff]
        %v1751 = vld [vmem:[%s6 + $0x78] sm:$0xff]
        %v1752 = vld [vmem:[%s6 + $0x80] sm:$0xff]
        %v1753 = vld [vmem:[%s6 + $0x88] sm:$0xff]
        %v1754 = vld [vmem:[%s6 + $0x90] sm:$0xff]
        %v1755 = vld [vmem:[%s6 + $0x98] sm:$0xff]
        %v1756 = vld [vmem:[%s6 + $0xa0] sm:$0xff]
        %v1757 = vld [vmem:[%s6 + $0xa8] sm:$0xff]
        %v1758 = vld [vmem:[%s6 + $0xb0] sm:$0xff]
        %v1759 = vld [vmem:[%s6 + $0xb8] sm:$0xff]
        %v1760 = vld [vmem:[%s6 + $0xc0] sm:$0xff]
        %v1761 = vld [vmem:[%s6 + $0xc8] sm:$0xff]
        %v1762 = vld [vmem:[%s6 + $0xd0] sm:$0xff]
        %v1763 = vld [vmem:[%s6 + $0xd8] sm:$0xff]
        %v1764 = vld [vmem:[%s6 + $0xe0] sm:$0xff]
        %v1765 = vld [vmem:[%s6 + $0xe8] sm:$0xff]
        %v1766 = vld [vmem:[%s6 + $0xf0] sm:$0xff]
        %v1767 = vld [vmem:[%s6 + $0xf8] sm:$0xff]
        %v1768 = vld [vmem:[%s6 + $0x100] sm:$0xff]
        %v1769 = vld [vmem:[%s6 + $0x108] sm:$0xff]
        %v1770 = vld [vmem:[%s6 + $0x110] sm:$0xff]
        %v1771 = vld [vmem:[%s6 + $0x118] sm:$0xff]
        %v1772 = vld [vmem:[%s6 + $0x120] sm:$0xff]
        %v1773 = vld [vmem:[%s6 + $0x128] sm:$0xff]
        %v1774 = vld [vmem:[%s6 + $0x130] sm:$0xff]
        %v1775 = vld [vmem:[%s6 + $0x138] sm:$0xff]
        %v1776 = vld [vmem:[%s6 + $0x140] sm:$0xff]
        %v1777 = vld [vmem:[%s6 + $0x148] sm:$0xff]
        %v1778 = vld [vmem:[%s6 + $0x150] sm:$0xff]
        %v1779 = vld [vmem:[%s6 + $0x158] sm:$0xff]
        %v1780 = vld [vmem:[%s6 + $0x160] sm:$0xff]
        %v1781 = vld [vmem:[%s6 + $0x168] sm:$0xff]
        %v1782 = vld [vmem:[%s6 + $0x170] sm:$0xff]
        %v1783 = vld [vmem:[%s6 + $0x178] sm:$0xff]
        %v1784 = vld [vmem:[%s6 + $0x180] sm:$0xff]
        %v1785 = vld [vmem:[%s6 + $0x188] sm:$0xff]
        %v1786 = vld [vmem:[%s6 + $0x190] sm:$0xff]
        %v1787 = vld [vmem:[%s6 + $0x198] sm:$0xff]
        %v1788 = vld [vmem:[%s6 + $0x1a0] sm:$0xff]
        %v1789 = vld [vmem:[%s6 + $0x1a8] sm:$0xff]
        %v1790 = vld [vmem:[%s6 + $0x1b0] sm:$0xff]
        %v1791 = vld [vmem:[%s6 + $0x1b8] sm:$0xff]
        %v1792 = vld [vmem:[%s6 + $0x1c0] sm:$0xff]
        %v1793 = vld [vmem:[%s6 + $0x1c8] sm:$0xff]
        %v1794 = vld [vmem:[%s6 + $0x1d0] sm:$0xff]
        %v1795 = vld [vmem:[%s6 + $0x1d8] sm:$0xff]
        %v1796 = vld [vmem:[%s6 + $0x1e0] sm:$0xff]
        %v1797 = vld [vmem:[%s6 + $0x1e8] sm:$0xff]
        %v1798 = vld [vmem:[%s6 + $0x1f0] sm:$0xff]
        %v1799 = vld [vmem:[%s6 + $0x1f8] sm:$0xff]
        %v1800 = vld [vmem:[%s7] sm:$0x1]
        %v1802 = vperm.slane %v1800, 0
        %1804 = vmatpush.msra.mxu0 %v1751
        %1805 = vmatpush.msra.mxu0 %v1750
        %1806 = vmatpush.msra.mxu0 %v1749
        %1807 = vmatpush.msra.mxu0 %v1748
        %1808 = vmatpush.msra.mxu0 %v1747
        %1809 = vmatpush.msra.mxu0 %v1746
        %1810 = vmatpush.msra.mxu0 %v1745
        %1811 = vmatpush.msra.mxu0 %v1744
        %1812 = vmatpush.msra.mxu0 %v1743
        %1813 = vmatpush.msra.mxu0 %v1742
        %1814 = vmatpush.msra.mxu0 %v1741
        %1815 = vmatpush.msra.mxu0 %v1740
        %1816 = vmatpush.msra.mxu0 %v1739
        %1817 = vmatpush.msra.mxu0 %v1738
        %1818 = vmatpush.msra.mxu0 %v1737
        %1819 = vmatpush.msra.mxu0 %v1736
        %1820 = vmatmul.f32.gmra.mxu0 %v1672
        %v1821 = vpop.f32.mrf.mxu0
        %v1822 = vadd.f32 %v1802, %v1821
        %1823 = vmatmul.f32.gmra.mxu0 %v1676
        %v1824 = vpop.f32.mrf.mxu0
        %v1825 = vadd.f32 %v1802, %v1824
        %1826 = vmatmul.f32.gmra.mxu0 %v1680
        %v1827 = vpop.f32.mrf.mxu0
        %v1828 = vadd.f32 %v1802, %v1827
        %1829 = vmatmul.f32.gmra.mxu0 %v1684
        %v1830 = vpop.f32.mrf.mxu0
        %v1831 = vadd.f32 %v1802, %v1830
        %1832 = vmatmul.f32.gmra.mxu0 %v1688
        %v1833 = vpop.f32.mrf.mxu0
        %v1834 = vadd.f32 %v1802, %v1833
        %1835 = vmatmul.f32.gmra.mxu0 %v1692
        %v1836 = vpop.f32.mrf.mxu0
        %v1837 = vadd.f32 %v1802, %v1836
        %1838 = vmatmul.f32.gmra.mxu0 %v1696
        %v1839 = vpop.f32.mrf.mxu0
        %v1840 = vadd.f32 %v1802, %v1839
        %1841 = vmatmul.f32.gmra.mxu0 %v1700
        %v1842 = vpop.f32.mrf.mxu0
        %v1843 = vadd.f32 %v1802, %v1842
        %1844 = vmatmul.f32.gmra.mxu0 %v1704
        %v1845 = vpop.f32.mrf.mxu0
        %v1846 = vadd.f32 %v1802, %v1845
        %1847 = vmatmul.f32.gmra.mxu0 %v1708
        %v1848 = vpop.f32.mrf.mxu0
        %v1849 = vadd.f32 %v1802, %v1848
        %1850 = vmatmul.f32.gmra.mxu0 %v1712
        %v1851 = vpop.f32.mrf.mxu0
        %v1852 = vadd.f32 %v1802, %v1851
        %1853 = vmatmul.f32.gmra.mxu0 %v1716
        %v1854 = vpop.f32.mrf.mxu0
        %v1855 = vadd.f32 %v1802, %v1854
        %1856 = vmatmul.f32.gmra.mxu0 %v1720
        %v1857 = vpop.f32.mrf.mxu0
        %v1858 = vadd.f32 %v1802, %v1857
        %1859 = vmatmul.f32.gmra.mxu0 %v1724
        %v1860 = vpop.f32.mrf.mxu0
        %v1861 = vadd.f32 %v1802, %v1860
        %1862 = vmatmul.f32.gmra.mxu0 %v1728
        %v1863 = vpop.f32.mrf.mxu0
        %v1864 = vadd.f32 %v1802, %v1863
        %1865 = vmatmul.f32.gmra.mxu0 %v1732
        %v1866 = vpop.f32.mrf.mxu0
        %v1867 = vadd.f32 %v1802, %v1866
        %1868 = vdwg.mxu0
        %1869 = vmatpush.msra.mxu0 %v1767
        %1870 = vmatpush.msra.mxu0 %v1766
        %1871 = vmatpush.msra.mxu0 %v1765
        %1872 = vmatpush.msra.mxu0 %v1764
        %1873 = vmatpush.msra.mxu0 %v1763
        %1874 = vmatpush.msra.mxu0 %v1762
        %1875 = vmatpush.msra.mxu0 %v1761
        %1876 = vmatpush.msra.mxu0 %v1760
        %1877 = vmatpush.msra.mxu0 %v1759
        %1878 = vmatpush.msra.mxu0 %v1758
        %1879 = vmatpush.msra.mxu0 %v1757
        %1880 = vmatpush.msra.mxu0 %v1756
        %1881 = vmatpush.msra.mxu0 %v1755
        %1882 = vmatpush.msra.mxu0 %v1754
        %1883 = vmatpush.msra.mxu0 %v1753
        %1884 = vmatpush.msra.mxu0 %v1752
        %1885 = vmatmul.f32.gmra.mxu0 %v1673
        %v1886 = vpop.f32.mrf.mxu0
        %v1887 = vadd.f32 %v1822, %v1886
        %1888 = vmatmul.f32.gmra.mxu0 %v1677
        %v1889 = vpop.f32.mrf.mxu0
        %v1890 = vadd.f32 %v1825, %v1889
        %1891 = vmatmul.f32.gmra.mxu0 %v1681
        %v1892 = vpop.f32.mrf.mxu0
        %v1893 = vadd.f32 %v1828, %v1892
        %1894 = vmatmul.f32.gmra.mxu0 %v1685
        %v1895 = vpop.f32.mrf.mxu0
        %v1896 = vadd.f32 %v1831, %v1895
        %1897 = vmatmul.f32.gmra.mxu0 %v1689
        %v1898 = vpop.f32.mrf.mxu0
        %v1899 = vadd.f32 %v1834, %v1898
        %1900 = vmatmul.f32.gmra.mxu0 %v1693
        %v1901 = vpop.f32.mrf.mxu0
        %v1902 = vadd.f32 %v1837, %v1901
        %1903 = vmatmul.f32.gmra.mxu0 %v1697
        %v1904 = vpop.f32.mrf.mxu0
        %v1905 = vadd.f32 %v1840, %v1904
        %1906 = vmatmul.f32.gmra.mxu0 %v1701
        %v1907 = vpop.f32.mrf.mxu0
        %v1908 = vadd.f32 %v1843, %v1907
        %1909 = vmatmul.f32.gmra.mxu0 %v1705
        %v1910 = vpop.f32.mrf.mxu0
        %v1911 = vadd.f32 %v1846, %v1910
        %1912 = vmatmul.f32.gmra.mxu0 %v1709
        %v1913 = vpop.f32.mrf.mxu0
        %v1914 = vadd.f32 %v1849, %v1913
        %1915 = vmatmul.f32.gmra.mxu0 %v1713
        %v1916 = vpop.f32.mrf.mxu0
        %v1917 = vadd.f32 %v1852, %v1916
        %1918 = vmatmul.f32.gmra.mxu0 %v1717
        %v1919 = vpop.f32.mrf.mxu0
        %v1920 = vadd.f32 %v1855, %v1919
        %1921 = vmatmul.f32.gmra.mxu0 %v1721
        %v1922 = vpop.f32.mrf.mxu0
        %v1923 = vadd.f32 %v1858, %v1922
        %1924 = vmatmul.f32.gmra.mxu0 %v1725
        %v1925 = vpop.f32.mrf.mxu0
        %v1926 = vadd.f32 %v1861, %v1925
        %1927 = vmatmul.f32.gmra.mxu0 %v1729
        %v1928 = vpop.f32.mrf.mxu0
        %v1929 = vadd.f32 %v1864, %v1928
        %1930 = vmatmul.f32.gmra.mxu0 %v1733
        %v1931 = vpop.f32.mrf.mxu0
        %v1932 = vadd.f32 %v1867, %v1931
        %1933 = vdwg.mxu0
        %1934 = vmatpush.msra.mxu0 %v1783
        %1935 = vmatpush.msra.mxu0 %v1782
        %1936 = vmatpush.msra.mxu0 %v1781
        %1937 = vmatpush.msra.mxu0 %v1780
        %1938 = vmatpush.msra.mxu0 %v1779
        %1939 = vmatpush.msra.mxu0 %v1778
        %1940 = vmatpush.msra.mxu0 %v1777
        %1941 = vmatpush.msra.mxu0 %v1776
        %1942 = vmatpush.msra.mxu0 %v1775
        %1943 = vmatpush.msra.mxu0 %v1774
        %1944 = vmatpush.msra.mxu0 %v1773
        %1945 = vmatpush.msra.mxu0 %v1772
        %1946 = vmatpush.msra.mxu0 %v1771
        %1947 = vmatpush.msra.mxu0 %v1770
        %1948 = vmatpush.msra.mxu0 %v1769
        %1949 = vmatpush.msra.mxu0 %v1768
        %1950 = vmatmul.f32.gmra.mxu0 %v1674
        %v1951 = vpop.f32.mrf.mxu0
        %v1952 = vadd.f32 %v1887, %v1951
        %1953 = vmatmul.f32.gmra.mxu0 %v1678
        %v1954 = vpop.f32.mrf.mxu0
        %v1955 = vadd.f32 %v1890, %v1954
        %1956 = vmatmul.f32.gmra.mxu0 %v1682
        %v1957 = vpop.f32.mrf.mxu0
        %v1958 = vadd.f32 %v1893, %v1957
        %1959 = vmatmul.f32.gmra.mxu0 %v1686
        %v1960 = vpop.f32.mrf.mxu0
        %v1961 = vadd.f32 %v1896, %v1960
        %1962 = vmatmul.f32.gmra.mxu0 %v1690
        %v1963 = vpop.f32.mrf.mxu0
        %v1964 = vadd.f32 %v1899, %v1963
        %1965 = vmatmul.f32.gmra.mxu0 %v1694
        %v1966 = vpop.f32.mrf.mxu0
        %v1967 = vadd.f32 %v1902, %v1966
        %1968 = vmatmul.f32.gmra.mxu0 %v1698
        %v1969 = vpop.f32.mrf.mxu0
        %v1970 = vadd.f32 %v1905, %v1969
        %1971 = vmatmul.f32.gmra.mxu0 %v1702
        %v1972 = vpop.f32.mrf.mxu0
        %v1973 = vadd.f32 %v1908, %v1972
        %1974 = vmatmul.f32.gmra.mxu0 %v1706
        %v1975 = vpop.f32.mrf.mxu0
        %v1976 = vadd.f32 %v1911, %v1975
        %1977 = vmatmul.f32.gmra.mxu0 %v1710
        %v1978 = vpop.f32.mrf.mxu0
        %v1979 = vadd.f32 %v1914, %v1978
        %1980 = vmatmul.f32.gmra.mxu0 %v1714
        %v1981 = vpop.f32.mrf.mxu0
        %v1982 = vadd.f32 %v1917, %v1981
        %1983 = vmatmul.f32.gmra.mxu0 %v1718
        %v1984 = vpop.f32.mrf.mxu0
        %v1985 = vadd.f32 %v1920, %v1984
        %1986 = vmatmul.f32.gmra.mxu0 %v1722
        %v1987 = vpop.f32.mrf.mxu0
        %v1988 = vadd.f32 %v1923, %v1987
        %1989 = vmatmul.f32.gmra.mxu0 %v1726
        %v1990 = vpop.f32.mrf.mxu0
        %v1991 = vadd.f32 %v1926, %v1990
        %1992 = vmatmul.f32.gmra.mxu0 %v1730
        %v1993 = vpop.f32.mrf.mxu0
        %v1994 = vadd.f32 %v1929, %v1993
        %1995 = vmatmul.f32.gmra.mxu0 %v1734
        %v1996 = vpop.f32.mrf.mxu0
        %v1997 = vadd.f32 %v1932, %v1996
        %1998 = vdwg.mxu0
        %1999 = vmatpush.msra.mxu0 %v1799
        %2000 = vmatpush.msra.mxu0 %v1798
        %2001 = vmatpush.msra.mxu0 %v1797
        %2002 = vmatpush.msra.mxu0 %v1796
        %2003 = vmatpush.msra.mxu0 %v1795
        %2004 = vmatpush.msra.mxu0 %v1794
        %2005 = vmatpush.msra.mxu0 %v1793
        %2006 = vmatpush.msra.mxu0 %v1792
        %2007 = vmatpush.msra.mxu0 %v1791
        %2008 = vmatpush.msra.mxu0 %v1790
        %2009 = vmatpush.msra.mxu0 %v1789
        %2010 = vmatpush.msra.mxu0 %v1788
        %2011 = vmatpush.msra.mxu0 %v1787
        %2012 = vmatpush.msra.mxu0 %v1786
        %2013 = vmatpush.msra.mxu0 %v1785
        %2014 = vmatpush.msra.mxu0 %v1784
        %2015 = vmatmul.f32.gmra.mxu0 %v1675
        %v2016 = vpop.f32.mrf.mxu0
        %v2017 = vadd.f32 %v1952, %v2016
        %2018 = vmatmul.f32.gmra.mxu0 %v1679
        %v2019 = vpop.f32.mrf.mxu0
        %v2020 = vadd.f32 %v1955, %v2019
        %2021 = vmatmul.f32.gmra.mxu0 %v1683
        %v2022 = vpop.f32.mrf.mxu0
        %v2023 = vadd.f32 %v1958, %v2022
        %2024 = vmatmul.f32.gmra.mxu0 %v1687
        %v2025 = vpop.f32.mrf.mxu0
        %v2026 = vadd.f32 %v1961, %v2025
        %2027 = vmatmul.f32.gmra.mxu0 %v1691
        %v2028 = vpop.f32.mrf.mxu0
        %v2029 = vadd.f32 %v1964, %v2028
        %2030 = vmatmul.f32.gmra.mxu0 %v1695
        %v2031 = vpop.f32.mrf.mxu0
        %v2032 = vadd.f32 %v1967, %v2031
        %2033 = vmatmul.f32.gmra.mxu0 %v1699
        %v2034 = vpop.f32.mrf.mxu0
        %v2035 = vadd.f32 %v1970, %v2034
        %2036 = vmatmul.f32.gmra.mxu0 %v1703
        %v2037 = vpop.f32.mrf.mxu0
        %v2038 = vadd.f32 %v1973, %v2037
        %2039 = vmatmul.f32.gmra.mxu0 %v1707
        %v2040 = vpop.f32.mrf.mxu0
        %v2041 = vadd.f32 %v1976, %v2040
        %2042 = vmatmul.f32.gmra.mxu0 %v1711
        %v2043 = vpop.f32.mrf.mxu0
        %v2044 = vadd.f32 %v1979, %v2043
        %2045 = vmatmul.f32.gmra.mxu0 %v1715
        %v2046 = vpop.f32.mrf.mxu0
        %v2047 = vadd.f32 %v1982, %v2046
        %2048 = vmatmul.f32.gmra.mxu0 %v1719
        %v2049 = vpop.f32.mrf.mxu0
        %v2050 = vadd.f32 %v1985, %v2049
        %2051 = vmatmul.f32.gmra.mxu0 %v1723
        %v2052 = vpop.f32.mrf.mxu0
        %v2053 = vadd.f32 %v1988, %v2052
        %2054 = vmatmul.f32.gmra.mxu0 %v1727
        %v2055 = vpop.f32.mrf.mxu0
        %v2056 = vadd.f32 %v1991, %v2055
        %2057 = vmatmul.f32.gmra.mxu0 %v1731
        %v2058 = vpop.f32.mrf.mxu0
        %v2059 = vadd.f32 %v1994, %v2058
        %2060 = vmatmul.f32.gmra.mxu0 %v1735
        %v2061 = vpop.f32.mrf.mxu0
        %v2062 = vadd.f32 %v1997, %v2061
        %2063 = vdwg.mxu0
        %v2064 = vmax.f32 %v2017, 0.0
        %v2065 = vmax.f32 %v2020, 0.0
        %v2066 = vmax.f32 %v2023, 0.0
        %v2067 = vmax.f32 %v2026, 0.0
        %v2068 = vmax.f32 %v2029, 0.0
        %v2069 = vmax.f32 %v2032, 0.0
        %v2070 = vmax.f32 %v2035, 0.0
        %v2071 = vmax.f32 %v2038, 0.0
        %v2072 = vmax.f32 %v2041, 0.0
        %v2073 = vmax.f32 %v2044, 0.0
        %v2074 = vmax.f32 %v2047, 0.0
        %v2075 = vmax.f32 %v2050, 0.0
        %v2076 = vmax.f32 %v2053, 0.0
        %v2077 = vmax.f32 %v2056, 0.0
        %v2078 = vmax.f32 %v2059, 0.0
        %v2079 = vmax.f32 %v2062, 0.0
        %v2080 = vld [vmem:[%s8] sm:$0xff]
        %v2081 = vld [vmem:[%s8 + $0x8] sm:$0xff]
        %v2082 = vld [vmem:[%s8 + $0x10] sm:$0xff]
        %v2083 = vld [vmem:[%s8 + $0x18] sm:$0xff]
        %v2084 = vld [vmem:[%s8 + $0x20] sm:$0xff]
        %v2085 = vld [vmem:[%s8 + $0x28] sm:$0xff]
        %v2086 = vld [vmem:[%s8 + $0x30] sm:$0xff]
        %v2087 = vld [vmem:[%s8 + $0x38] sm:$0xff]
        %v2088 = vld [vmem:[%s8 + $0x40] sm:$0xff]
        %v2089 = vld [vmem:[%s8 + $0x48] sm:$0xff]
        %v2090 = vld [vmem:[%s8 + $0x50] sm:$0xff]
        %v2091 = vld [vmem:[%s8 + $0x58] sm:$0xff]
        %v2092 = vld [vmem:[%s8 + $0x60] sm:$0xff]
        %v2093 = vld [vmem:[%s8 + $0x68] sm:$0xff]
        %v2094 = vld [vmem:[%s8 + $0x70] sm:$0xff]
        %v2095 = vld [vmem:[%s8 + $0x78] sm:$0xff]
        %v2096 = vld [vmem:[%s9] sm:$0x1]
        %v2098 = vperm.slane %v2096, 0
        %2100 = vmatpush.msra.mxu0 %v2095
        %2101 = vmatpush.msra.mxu0 %v2094
        %2102 = vmatpush.msra.mxu0 %v2093
        %2103 = vmatpush.msra.mxu0 %v2092
        %2104 = vmatpush.msra.mxu0 %v2091
        %2105 = vmatpush.msra.mxu0 %v2090
        %2106 = vmatpush.msra.mxu0 %v2089
        %2107 = vmatpush.msra.mxu0 %v2088
        %2108 = vmatpush.msra.mxu0 %v2087
        %2109 = vmatpush.msra.mxu0 %v2086
        %2110 = vmatpush.msra.mxu0 %v2085
        %2111 = vmatpush.msra.mxu0 %v2084
        %2112 = vmatpush.msra.mxu0 %v2083
        %2113 = vmatpush.msra.mxu0 %v2082
        %2114 = vmatpush.msra.mxu0 %v2081
        %2115 = vmatpush.msra.mxu0 %v2080
        %2116 = vmatmul.f32.gmra.mxu0 %v2064
        %v2117 = vpop.f32.mrf.mxu0
        %v2118 = vadd.f32 %v2098, %v2117
        %2119 = vmatmul.f32.gmra.mxu0 %v2065
        %v2120 = vpop.f32.mrf.mxu0
        %v2121 = vadd.f32 %v2098, %v2120
        %2122 = vmatmul.f32.gmra.mxu0 %v2066
        %v2123 = vpop.f32.mrf.mxu0
        %v2124 = vadd.f32 %v2098, %v2123
        %2125 = vmatmul.f32.gmra.mxu0 %v2067
        %v2126 = vpop.f32.mrf.mxu0
        %v2127 = vadd.f32 %v2098, %v2126
        %2128 = vmatmul.f32.gmra.mxu0 %v2068
        %v2129 = vpop.f32.mrf.mxu0
        %v2130 = vadd.f32 %v2098, %v2129
        %2131 = vmatmul.f32.gmra.mxu0 %v2069
        %v2132 = vpop.f32.mrf.mxu0
        %v2133 = vadd.f32 %v2098, %v2132
        %2134 = vmatmul.f32.gmra.mxu0 %v2070
        %v2135 = vpop.f32.mrf.mxu0
        %v2136 = vadd.f32 %v2098, %v2135
        %2137 = vmatmul.f32.gmra.mxu0 %v2071
        %v2138 = vpop.f32.mrf.mxu0
        %v2139 = vadd.f32 %v2098, %v2138
        %2140 = vmatmul.f32.gmra.mxu0 %v2072
        %v2141 = vpop.f32.mrf.mxu0
        %v2142 = vadd.f32 %v2098, %v2141
        %2143 = vmatmul.f32.gmra.mxu0 %v2073
        %v2144 = vpop.f32.mrf.mxu0
        %v2145 = vadd.f32 %v2098, %v2144
        %2146 = vmatmul.f32.gmra.mxu0 %v2074
        %v2147 = vpop.f32.mrf.mxu0
        %v2148 = vadd.f32 %v2098, %v2147
        %2149 = vmatmul.f32.gmra.mxu0 %v2075
        %v2150 = vpop.f32.mrf.mxu0
        %v2151 = vadd.f32 %v2098, %v2150
        %2152 = vmatmul.f32.gmra.mxu0 %v2076
        %v2153 = vpop.f32.mrf.mxu0
        %v2154 = vadd.f32 %v2098, %v2153
        %2155 = vmatmul.f32.gmra.mxu0 %v2077
        %v2156 = vpop.f32.mrf.mxu0
        %v2157 = vadd.f32 %v2098, %v2156
        %2158 = vmatmul.f32.gmra.mxu0 %v2078
        %v2159 = vpop.f32.mrf.mxu0
        %v2160 = vadd.f32 %v2098, %v2159
        %2161 = vmatmul.f32.gmra.mxu0 %v2079
        %v2162 = vpop.f32.mrf.mxu0
        %v2163 = vadd.f32 %v2098, %v2162
        %2164 = vdwg.mxu0
        %v2165 = vrot.slane %v737, 7
        %v2166 = vrot.slane %v738, 7
        %v2167 = vrot.slane %v739, 7
        %v2168 = vrot.slane %v740, 7
        %v2169 = vrot.slane %v741, 7
        %v2170 = vrot.slane %v742, 7
        %v2171 = vrot.slane %v743, 7
        %v2172 = vrot.slane %v744, 7
        %v2173 = vrot.slane %v745, 7
        %v2174 = vrot.slane %v746, 7
        %v2175 = vrot.slane %v747, 7
        %v2176 = vrot.slane %v748, 7
        %v2177 = vrot.slane %v749, 7
        %v2178 = vrot.slane %v750, 7
        %v2179 = vrot.slane %v751, 7
        %v2180 = vrot.slane %v752, 7
        %v2181 = vsel %vm818, %v2179, %v2180
        %v2182 = vsel %vm818, %v2178, %v2179
        %v2183 = vsel %vm818, %v2177, %v2178
        %v2184 = vsel %vm818, %v2176, %v2177
        %v2185 = vsel %vm818, %v2175, %v2176
        %v2186 = vsel %vm818, %v2174, %v2175
        %v2187 = vsel %vm818, %v2173, %v2174
        %v2188 = vsel %vm818, %v2172, %v2173
        %v2189 = vsel %vm818, %v2171, %v2172
        %v2190 = vsel %vm818, %v2170, %v2171
        %v2191 = vsel %vm818, %v2169, %v2170
        %v2192 = vsel %vm818, %v2168, %v2169
        %v2193 = vsel %vm818, %v2167, %v2168
        %v2194 = vsel %vm818, %v2166, %v2167
        %v2195 = vsel %vm818, %v2165, %v2166
        %v2196 = vsel %vm818, %v2180, %v2165
        %v2197 = vsel %vm851, 0.0, %v2196
        %v2198 = vsel %vm852, 0.0, %v2195
        %v2199 = vsel %vm853, 0.0, %v2194
        %v2200 = vsel %vm854, 0.0, %v2193
        %v2201 = vsel %vm855, 0.0, %v2192
        %v2202 = vsel %vm856, 0.0, %v2191
        %v2203 = vsel %vm857, 0.0, %v2190
        %v2204 = vsel %vm858, 0.0, %v2189
        %v2205 = vsel %vm859, 0.0, %v2188
        %v2206 = vsel %vm860, 0.0, %v2187
        %v2207 = vsel %vm861, 0.0, %v2186
        %v2208 = vsel %vm862, 0.0, %v2185
        %v2209 = vsel %vm863, 0.0, %v2184
        %v2210 = vsel %vm864, 0.0, %v2183
        %v2211 = vsel %vm865, 0.0, %v2182
        %v2212 = vsel %vm866, 0.0, %v2181
        %v2213 = vrot.slane %v737, 1
        %v2214 = vrot.slane %v738, 1
        %v2215 = vrot.slane %v739, 1
        %v2216 = vrot.slane %v740, 1
        %v2217 = vrot.slane %v741, 1
        %v2218 = vrot.slane %v742, 1
        %v2219 = vrot.slane %v743, 1
        %v2220 = vrot.slane %v744, 1
        %v2221 = vrot.slane %v745, 1
        %v2222 = vrot.slane %v746, 1
        %v2223 = vrot.slane %v747, 1
        %v2224 = vrot.slane %v748, 1
        %v2225 = vrot.slane %v749, 1
        %v2226 = vrot.slane %v750, 1
        %v2227 = vrot.slane %v751, 1
        %v2228 = vrot.slane %v752, 1
        %v2229 = vsel %vm899, %v2227, %v2228
        %v2230 = vsel %vm899, %v2226, %v2227
        %v2231 = vsel %vm899, %v2225, %v2226
        %v2232 = vsel %vm899, %v2224, %v2225
        %v2233 = vsel %vm899, %v2223, %v2224
        %v2234 = vsel %vm899, %v2222, %v2223
        %v2235 = vsel %vm899, %v2221, %v2222
        %v2236 = vsel %vm899, %v2220, %v2221
        %v2237 = vsel %vm899, %v2219, %v2220
        %v2238 = vsel %vm899, %v2218, %v2219
        %v2239 = vsel %vm899, %v2217, %v2218
        %v2240 = vsel %vm899, %v2216, %v2217
        %v2241 = vsel %vm899, %v2215, %v2216
        %v2242 = vsel %vm899, %v2214, %v2215
        %v2243 = vsel %vm899, %v2213, %v2214
        %v2244 = vsel %vm899, %v2228, %v2213
        %v2245 = vsel %vm932, 0.0, %v2243
        %v2246 = vsel %vm933, 0.0, %v2242
        %v2247 = vsel %vm934, 0.0, %v2241
        %v2248 = vsel %vm935, 0.0, %v2240
        %v2249 = vsel %vm936, 0.0, %v2239
        %v2250 = vsel %vm937, 0.0, %v2238
        %v2251 = vsel %vm938, 0.0, %v2237
        %v2252 = vsel %vm939, 0.0, %v2236
        %v2253 = vsel %vm940, 0.0, %v2235
        %v2254 = vsel %vm941, 0.0, %v2234
        %v2255 = vsel %vm942, 0.0, %v2233
        %v2256 = vsel %vm943, 0.0, %v2232
        %v2257 = vsel %vm944, 0.0, %v2231
        %v2258 = vsel %vm945, 0.0, %v2230
        %v2259 = vsel %vm946, 0.0, %v2229
        %v2260 = vsel %vm947, 0.0, %v2244
        %2277 = vrot.lane.b32.xlu0 %v737, 4
        %v2278 = vpop.permute.xlu0 %2277
        %2279 = vrot.lane.b32.xlu0 %v738, 4
        %v2280 = vpop.permute.xlu0 %2279
        %2281 = vrot.lane.b32.xlu0 %v739, 4
        %v2282 = vpop.permute.xlu0 %2281
        %2283 = vrot.lane.b32.xlu0 %v740, 4
        %v2284 = vpop.permute.xlu0 %2283
        %2285 = vrot.lane.b32.xlu0 %v741, 4
        %v2286 = vpop.permute.xlu0 %2285
        %2287 = vrot.lane.b32.xlu0 %v742, 4
        %v2288 = vpop.permute.xlu0 %2287
        %2289 = vrot.lane.b32.xlu0 %v743, 4
        %v2290 = vpop.permute.xlu0 %2289
        %2291 = vrot.lane.b32.xlu0 %v744, 4
        %v2292 = vpop.permute.xlu0 %2291
        %2293 = vrot.lane.b32.xlu0 %v745, 4
        %v2294 = vpop.permute.xlu0 %2293
        %2295 = vrot.lane.b32.xlu0 %v746, 4
        %v2296 = vpop.permute.xlu0 %2295
        %2297 = vrot.lane.b32.xlu0 %v747, 4
        %v2298 = vpop.permute.xlu0 %2297
        %2299 = vrot.lane.b32.xlu0 %v748, 4
        %v2300 = vpop.permute.xlu0 %2299
        %2301 = vrot.lane.b32.xlu0 %v749, 4
        %v2302 = vpop.permute.xlu0 %2301
        %2303 = vrot.lane.b32.xlu0 %v750, 4
        %v2304 = vpop.permute.xlu0 %2303
        %2305 = vrot.lane.b32.xlu0 %v751, 4
        %v2306 = vpop.permute.xlu0 %2305
        %2307 = vrot.lane.b32.xlu0 %v752, 4
        %v2308 = vpop.permute.xlu0 %2307
        %2341 = vrot.lane.b32.xlu0 %v2245, 8
        %v2342 = vpop.permute.xlu0 %2341
        %2343 = vrot.lane.b32.xlu0 %v2246, 8
        %v2344 = vpop.permute.xlu0 %2343
        %2345 = vrot.lane.b32.xlu0 %v2247, 8
        %v2346 = vpop.permute.xlu0 %2345
        %2347 = vrot.lane.b32.xlu0 %v2248, 8
        %v2348 = vpop.permute.xlu0 %2347
        %2349 = vrot.lane.b32.xlu0 %v2249, 8
        %v2350 = vpop.permute.xlu0 %2349
        %2351 = vrot.lane.b32.xlu0 %v2250, 8
        %v2352 = vpop.permute.xlu0 %2351
        %2353 = vrot.lane.b32.xlu0 %v2251, 8
        %v2354 = vpop.permute.xlu0 %2353
        %2355 = vrot.lane.b32.xlu0 %v2252, 8
        %v2356 = vpop.permute.xlu0 %2355
        %2357 = vrot.lane.b32.xlu0 %v2253, 8
        %v2358 = vpop.permute.xlu0 %2357
        %2359 = vrot.lane.b32.xlu0 %v2254, 8
        %v2360 = vpop.permute.xlu0 %2359
        %2361 = vrot.lane.b32.xlu0 %v2255, 8
        %v2362 = vpop.permute.xlu0 %2361
        %2363 = vrot.lane.b32.xlu0 %v2256, 8
        %v2364 = vpop.permute.xlu0 %2363
        %2365 = vrot.lane.b32.xlu0 %v2257, 8
        %v2366 = vpop.permute.xlu0 %2365
        %2367 = vrot.lane.b32.xlu0 %v2258, 8
        %v2368 = vpop.permute.xlu0 %2367
        %2369 = vrot.lane.b32.xlu0 %v2259, 8
        %v2370 = vpop.permute.xlu0 %2369
        %2371 = vrot.lane.b32.xlu0 %v2260, 8
        %v2372 = vpop.permute.xlu0 %2371
        %vm2389 = vcmask 31744
        %v2390 = vsel %vm2389, %v2197, %v2278
        %v2391 = vsel %vm2389, %v2198, %v2280
        %v2392 = vsel %vm2389, %v2199, %v2282
        %v2393 = vsel %vm2389, %v2200, %v2284
        %v2394 = vsel %vm2389, %v2201, %v2286
        %v2395 = vsel %vm2389, %v2202, %v2288
        %v2396 = vsel %vm2389, %v2203, %v2290
        %v2397 = vsel %vm2389, %v2204, %v2292
        %v2398 = vsel %vm2389, %v2205, %v2294
        %v2399 = vsel %vm2389, %v2206, %v2296
        %v2400 = vsel %vm2389, %v2207, %v2298
        %v2401 = vsel %vm2389, %v2208, %v2300
        %v2402 = vsel %vm2389, %v2209, %v2302
        %v2403 = vsel %vm2389, %v2210, %v2304
        %v2404 = vsel %vm2389, %v2211, %v2306
        %v2405 = vsel %vm2389, %v2212, %v2308
        %vm2406 = vcmask 64512
        %v2407 = vsel %vm2406, %v2390, %v2342
        %v2408 = vsel %vm2406, %v2391, %v2344
        %v2409 = vsel %vm2406, %v2392, %v2346
        %v2410 = vsel %vm2406, %v2393, %v2348
        %v2411 = vsel %vm2406, %v2394, %v2350
        %v2412 = vsel %vm2406, %v2395, %v2352
        %v2413 = vsel %vm2406, %v2396, %v2354
        %v2414 = vsel %vm2406, %v2397, %v2356
        %v2415 = vsel %vm2406, %v2398, %v2358
        %v2416 = vsel %vm2406, %v2399, %v2360
        %v2417 = vsel %vm2406, %v2400, %v2362
        %v2418 = vsel %vm2406, %v2401, %v2364
        %v2419 = vsel %vm2406, %v2402, %v2366
        %v2420 = vsel %vm2406, %v2403, %v2368
        %v2421 = vsel %vm2406, %v2404, %v2370
        %v2422 = vsel %vm2406, %v2405, %v2372
        %v2423 = vld [vmem:[%s10] sm:$0xff]
        %v2424 = vld [vmem:[%s10 + $0x8] sm:$0xf]
        %v2425 = vld [vmem:[%s11] sm:$0x1]
        %v2427 = vperm.slane %v2425, 0
        %vm2429 = vcmask 97280
        %v2431 = vsel %vm2429, %v2407, 0
        %v2434 = vsel %vm2429, %v2408, 0
        %v2437 = vsel %vm2429, %v2409, 0
        %v2440 = vsel %vm2429, %v2410, 0
        %v2443 = vsel %vm2429, %v2411, 0
        %v2446 = vsel %vm2429, %v2412, 0
        %v2449 = vsel %vm2429, %v2413, 0
        %v2452 = vsel %vm2429, %v2414, 0
        %v2455 = vsel %vm2429, %v2415, 0
        %v2458 = vsel %vm2429, %v2416, 0
        %v2461 = vsel %vm2429, %v2417, 0
        %v2464 = vsel %vm2429, %v2418, 0
        %v2467 = vsel %vm2429, %v2419, 0
        %v2470 = vsel %vm2429, %v2420, 0
        %v2473 = vsel %vm2429, %v2421, 0
        %v2476 = vsel %vm2429, %v2422, 0
        %vm2478 = vcmask 1043456
        %v2480 = vsel %vm2478, %v2424, 0
        %2482 = vmatpush.msra.mxu0 0.0
        %2483 = vmatpush.msra.mxu0 0.0
        %2484 = vmatpush.msra.mxu0 0.0
        %2485 = vmatpush.msra.mxu0 0.0
        %2486 = vmatpush.msra.mxu0 0.0
        %2487 = vmatpush.msra.mxu0 0.0
        %2488 = vmatpush.msra.mxu0 0.0
        %2489 = vmatpush.msra.mxu0 0.0
        %2490 = vmatpush.msra.mxu0 0.0
        %2491 = vmatpush.msra.mxu0 0.0
        %2492 = vmatpush.msra.mxu0 0.0
        %2493 = vmatpush.msra.mxu0 0.0
        %2494 = vmatpush.msra.mxu0 0.0
        %2495 = vmatpush.msra.mxu0 0.0
        %2496 = vmatpush.msra.mxu0 %v2480
        %2497 = vmatpush.msra.mxu0 %v2423
        %2498 = vmatmul.f32.gmra.mxu0 %v2431
        %v2499 = vpop.f32.mrf.mxu0
        %v2500 = vadd.f32 %v2427, %v2499
        %2501 = vmatmul.f32.gmra.mxu0 %v2434
        %v2502 = vpop.f32.mrf.mxu0
        %v2503 = vadd.f32 %v2427, %v2502
        %2504 = vmatmul.f32.gmra.mxu0 %v2437
        %v2505 = vpop.f32.mrf.mxu0
        %v2506 = vadd.f32 %v2427, %v2505
        %2507 = vmatmul.f32.gmra.mxu0 %v2440
        %v2508 = vpop.f32.mrf.mxu0
        %v2509 = vadd.f32 %v2427, %v2508
        %2510 = vmatmul.f32.gmra.mxu0 %v2443
        %v2511 = vpop.f32.mrf.mxu0
        %v2512 = vadd.f32 %v2427, %v2511
        %2513 = vmatmul.f32.gmra.mxu0 %v2446
        %v2514 = vpop.f32.mrf.mxu0
        %v2515 = vadd.f32 %v2427, %v2514
        %2516 = vmatmul.f32.gmra.mxu0 %v2449
        %v2517 = vpop.f32.mrf.mxu0
        %v2518 = vadd.f32 %v2427, %v2517
        %2519 = vmatmul.f32.gmra.mxu0 %v2452
        %v2520 = vpop.f32.mrf.mxu0
        %v2521 = vadd.f32 %v2427, %v2520
        %2522 = vmatmul.f32.gmra.mxu0 %v2455
        %v2523 = vpop.f32.mrf.mxu0
        %v2524 = vadd.f32 %v2427, %v2523
        %2525 = vmatmul.f32.gmra.mxu0 %v2458
        %v2526 = vpop.f32.mrf.mxu0
        %v2527 = vadd.f32 %v2427, %v2526
        %2528 = vmatmul.f32.gmra.mxu0 %v2461
        %v2529 = vpop.f32.mrf.mxu0
        %v2530 = vadd.f32 %v2427, %v2529
        %2531 = vmatmul.f32.gmra.mxu0 %v2464
        %v2532 = vpop.f32.mrf.mxu0
        %v2533 = vadd.f32 %v2427, %v2532
        %2534 = vmatmul.f32.gmra.mxu0 %v2467
        %v2535 = vpop.f32.mrf.mxu0
        %v2536 = vadd.f32 %v2427, %v2535
        %2537 = vmatmul.f32.gmra.mxu0 %v2470
        %v2538 = vpop.f32.mrf.mxu0
        %v2539 = vadd.f32 %v2427, %v2538
        %2540 = vmatmul.f32.gmra.mxu0 %v2473
        %v2541 = vpop.f32.mrf.mxu0
        %v2542 = vadd.f32 %v2427, %v2541
        %2543 = vmatmul.f32.gmra.mxu0 %v2476
        %v2544 = vpop.f32.mrf.mxu0
        %v2545 = vadd.f32 %v2427, %v2544
        %2546 = vdwg.mxu0
        %v2547 = vmax.f32 %v2500, 0.0
        %v2548 = vmax.f32 %v2503, 0.0
        %v2549 = vmax.f32 %v2506, 0.0
        %v2550 = vmax.f32 %v2509, 0.0
        %v2551 = vmax.f32 %v2512, 0.0
        %v2552 = vmax.f32 %v2515, 0.0
        %v2553 = vmax.f32 %v2518, 0.0
        %v2554 = vmax.f32 %v2521, 0.0
        %v2555 = vmax.f32 %v2524, 0.0
        %v2556 = vmax.f32 %v2527, 0.0
        %v2557 = vmax.f32 %v2530, 0.0
        %v2558 = vmax.f32 %v2533, 0.0
        %v2559 = vmax.f32 %v2536, 0.0
        %v2560 = vmax.f32 %v2539, 0.0
        %v2561 = vmax.f32 %v2542, 0.0
        %v2562 = vmax.f32 %v2545, 0.0
        %v2563 = vsel %vm2389, %v2547, %v2278
        %v2564 = vsel %vm2389, %v2548, %v2280
        %v2565 = vsel %vm2389, %v2549, %v2282
        %v2566 = vsel %vm2389, %v2550, %v2284
        %v2567 = vsel %vm2389, %v2551, %v2286
        %v2568 = vsel %vm2389, %v2552, %v2288
        %v2569 = vsel %vm2389, %v2553, %v2290
        %v2570 = vsel %vm2389, %v2554, %v2292
        %v2571 = vsel %vm2389, %v2555, %v2294
        %v2572 = vsel %vm2389, %v2556, %v2296
        %v2573 = vsel %vm2389, %v2557, %v2298
        %v2574 = vsel %vm2389, %v2558, %v2300
        %v2575 = vsel %vm2389, %v2559, %v2302
        %v2576 = vsel %vm2389, %v2560, %v2304
        %v2577 = vsel %vm2389, %v2561, %v2306
        %v2578 = vsel %vm2389, %v2562, %v2308
        %v2579 = vrot.slane %v2563, 7
        %v2580 = vrot.slane %v2564, 7
        %v2581 = vrot.slane %v2565, 7
        %v2582 = vrot.slane %v2566, 7
        %v2583 = vrot.slane %v2567, 7
        %v2584 = vrot.slane %v2568, 7
        %v2585 = vrot.slane %v2569, 7
        %v2586 = vrot.slane %v2570, 7
        %v2587 = vrot.slane %v2571, 7
        %v2588 = vrot.slane %v2572, 7
        %v2589 = vrot.slane %v2573, 7
        %v2590 = vrot.slane %v2574, 7
        %v2591 = vrot.slane %v2575, 7
        %v2592 = vrot.slane %v2576, 7
        %v2593 = vrot.slane %v2577, 7
        %v2594 = vrot.slane %v2578, 7
        %v2595 = vsel %vm818, %v2593, %v2594
        %v2596 = vsel %vm818, %v2592, %v2593
        %v2597 = vsel %vm818, %v2591, %v2592
        %v2598 = vsel %vm818, %v2590, %v2591
        %v2599 = vsel %vm818, %v2589, %v2590
        %v2600 = vsel %vm818, %v2588, %v2589
        %v2601 = vsel %vm818, %v2587, %v2588
        %v2602 = vsel %vm818, %v2586, %v2587
        %v2603 = vsel %vm818, %v2585, %v2586
        %v2604 = vsel %vm818, %v2584, %v2585
        %v2605 = vsel %vm818, %v2583, %v2584
        %v2606 = vsel %vm818, %v2582, %v2583
        %v2607 = vsel %vm818, %v2581, %v2582
        %v2608 = vsel %vm818, %v2580, %v2581
        %v2609 = vsel %vm818, %v2579, %v2580
        %v2610 = vsel %vm818, %v2594, %v2579
        %v2611 = vsel %vm851, 0.0, %v2610
        %v2612 = vsel %vm852, 0.0, %v2609
        %v2613 = vsel %vm853, 0.0, %v2608
        %v2614 = vsel %vm854, 0.0, %v2607
        %v2615 = vsel %vm855, 0.0, %v2606
        %v2616 = vsel %vm856, 0.0, %v2605
        %v2617 = vsel %vm857, 0.0, %v2604
        %v2618 = vsel %vm858, 0.0, %v2603
        %v2619 = vsel %vm859, 0.0, %v2602
        %v2620 = vsel %vm860, 0.0, %v2601
        %v2621 = vsel %vm861, 0.0, %v2600
        %v2622 = vsel %vm862, 0.0, %v2599
        %v2623 = vsel %vm863, 0.0, %v2598
        %v2624 = vsel %vm864, 0.0, %v2597
        %v2625 = vsel %vm865, 0.0, %v2596
        %v2626 = vsel %vm866, 0.0, %v2595
        %v2627 = vrot.slane %v2563, 1
        %v2628 = vrot.slane %v2564, 1
        %v2629 = vrot.slane %v2565, 1
        %v2630 = vrot.slane %v2566, 1
        %v2631 = vrot.slane %v2567, 1
        %v2632 = vrot.slane %v2568, 1
        %v2633 = vrot.slane %v2569, 1
        %v2634 = vrot.slane %v2570, 1
        %v2635 = vrot.slane %v2571, 1
        %v2636 = vrot.slane %v2572, 1
        %v2637 = vrot.slane %v2573, 1
        %v2638 = vrot.slane %v2574, 1
        %v2639 = vrot.slane %v2575, 1
        %v2640 = vrot.slane %v2576, 1
        %v2641 = vrot.slane %v2577, 1
        %v2642 = vrot.slane %v2578, 1
        %v2643 = vsel %vm899, %v2641, %v2642
        %v2644 = vsel %vm899, %v2640, %v2641
        %v2645 = vsel %vm899, %v2639, %v2640
        %v2646 = vsel %vm899, %v2638, %v2639
        %v2647 = vsel %vm899, %v2637, %v2638
        %v2648 = vsel %vm899, %v2636, %v2637
        %v2649 = vsel %vm899, %v2635, %v2636
        %v2650 = vsel %vm899, %v2634, %v2635
        %v2651 = vsel %vm899, %v2633, %v2634
        %v2652 = vsel %vm899, %v2632, %v2633
        %v2653 = vsel %vm899, %v2631, %v2632
        %v2654 = vsel %vm899, %v2630, %v2631
        %v2655 = vsel %vm899, %v2629, %v2630
        %v2656 = vsel %vm899, %v2628, %v2629
        %v2657 = vsel %vm899, %v2627, %v2628
        %v2658 = vsel %vm899, %v2642, %v2627
        %v2659 = vsel %vm932, 0.0, %v2657
        %v2660 = vsel %vm933, 0.0, %v2656
        %v2661 = vsel %vm934, 0.0, %v2655
        %v2662 = vsel %vm935, 0.0, %v2654
        %v2663 = vsel %vm936, 0.0, %v2653
        %v2664 = vsel %vm937, 0.0, %v2652
        %v2665 = vsel %vm938, 0.0, %v2651
        %v2666 = vsel %vm939, 0.0, %v2650
        %v2667 = vsel %vm940, 0.0, %v2649
        %v2668 = vsel %vm941, 0.0, %v2648
        %v2669 = vsel %vm942, 0.0, %v2647
        %v2670 = vsel %vm943, 0.0, %v2646
        %v2671 = vsel %vm944, 0.0, %v2645
        %v2672 = vsel %vm945, 0.0, %v2644
        %v2673 = vsel %vm946, 0.0, %v2643
        %v2674 = vsel %vm947, 0.0, %v2658
        %2691 = vrot.lane.b32.xlu0 %v2563, 8
        %v2692 = vpop.permute.xlu0 %2691
        %2693 = vrot.lane.b32.xlu0 %v2564, 8
        %v2694 = vpop.permute.xlu0 %2693
        %2695 = vrot.lane.b32.xlu0 %v2565, 8
        %v2696 = vpop.permute.xlu0 %2695
        %2697 = vrot.lane.b32.xlu0 %v2566, 8
        %v2698 = vpop.permute.xlu0 %2697
        %2699 = vrot.lane.b32.xlu0 %v2567, 8
        %v2700 = vpop.permute.xlu0 %2699
        %2701 = vrot.lane.b32.xlu0 %v2568, 8
        %v2702 = vpop.permute.xlu0 %2701
        %2703 = vrot.lane.b32.xlu0 %v2569, 8
        %v2704 = vpop.permute.xlu0 %2703
        %2705 = vrot.lane.b32.xlu0 %v2570, 8
        %v2706 = vpop.permute.xlu0 %2705
        %2707 = vrot.lane.b32.xlu0 %v2571, 8
        %v2708 = vpop.permute.xlu0 %2707
        %2709 = vrot.lane.b32.xlu0 %v2572, 8
        %v2710 = vpop.permute.xlu0 %2709
        %2711 = vrot.lane.b32.xlu0 %v2573, 8
        %v2712 = vpop.permute.xlu0 %2711
        %2713 = vrot.lane.b32.xlu0 %v2574, 8
        %v2714 = vpop.permute.xlu0 %2713
        %2715 = vrot.lane.b32.xlu0 %v2575, 8
        %v2716 = vpop.permute.xlu0 %2715
        %2717 = vrot.lane.b32.xlu0 %v2576, 8
        %v2718 = vpop.permute.xlu0 %2717
        %2719 = vrot.lane.b32.xlu0 %v2577, 8
        %v2720 = vpop.permute.xlu0 %2719
        %2721 = vrot.lane.b32.xlu0 %v2578, 8
        %v2722 = vpop.permute.xlu0 %2721
        %2755 = vrot.lane.b32.xlu0 %v2659, 16
        %v2756 = vpop.permute.xlu0 %2755
        %2757 = vrot.lane.b32.xlu0 %v2660, 16
        %v2758 = vpop.permute.xlu0 %2757
        %2759 = vrot.lane.b32.xlu0 %v2661, 16
        %v2760 = vpop.permute.xlu0 %2759
        %2761 = vrot.lane.b32.xlu0 %v2662, 16
        %v2762 = vpop.permute.xlu0 %2761
        %2763 = vrot.lane.b32.xlu0 %v2663, 16
        %v2764 = vpop.permute.xlu0 %2763
        %2765 = vrot.lane.b32.xlu0 %v2664, 16
        %v2766 = vpop.permute.xlu0 %2765
        %2767 = vrot.lane.b32.xlu0 %v2665, 16
        %v2768 = vpop.permute.xlu0 %2767
        %2769 = vrot.lane.b32.xlu0 %v2666, 16
        %v2770 = vpop.permute.xlu0 %2769
        %2771 = vrot.lane.b32.xlu0 %v2667, 16
        %v2772 = vpop.permute.xlu0 %2771
        %2773 = vrot.lane.b32.xlu0 %v2668, 16
        %v2774 = vpop.permute.xlu0 %2773
        %2775 = vrot.lane.b32.xlu0 %v2669, 16
        %v2776 = vpop.permute.xlu0 %2775
        %2777 = vrot.lane.b32.xlu0 %v2670, 16
        %v2778 = vpop.permute.xlu0 %2777
        %2779 = vrot.lane.b32.xlu0 %v2671, 16
        %v2780 = vpop.permute.xlu0 %2779
        %2781 = vrot.lane.b32.xlu0 %v2672, 16
        %v2782 = vpop.permute.xlu0 %2781
        %2783 = vrot.lane.b32.xlu0 %v2673, 16
        %v2784 = vpop.permute.xlu0 %2783
        %2785 = vrot.lane.b32.xlu0 %v2674, 16
        %v2786 = vpop.permute.xlu0 %2785
        %v2803 = vsel %vm2406, %v2611, %v2692
        %v2804 = vsel %vm2406, %v2612, %v2694
        %v2805 = vsel %vm2406, %v2613, %v2696
        %v2806 = vsel %vm2406, %v2614, %v2698
        %v2807 = vsel %vm2406, %v2615, %v2700
        %v2808 = vsel %vm2406, %v2616, %v2702
        %v2809 = vsel %vm2406, %v2617, %v2704
        %v2810 = vsel %vm2406, %v2618, %v2706
        %v2811 = vsel %vm2406, %v2619, %v2708
        %v2812 = vsel %vm2406, %v2620, %v2710
        %v2813 = vsel %vm2406, %v2621, %v2712
        %v2814 = vsel %vm2406, %v2622, %v2714
        %v2815 = vsel %vm2406, %v2623, %v2716
        %v2816 = vsel %vm2406, %v2624, %v2718
        %v2817 = vsel %vm2406, %v2625, %v2720
        %v2818 = vsel %vm2406, %v2626, %v2722
        %v2819 = vsel %vm1092, %v2803, %v2756
        %v2820 = vsel %vm1092, %v2804, %v2758
        %v2821 = vsel %vm1092, %v2805, %v2760
        %v2822 = vsel %vm1092, %v2806, %v2762
        %v2823 = vsel %vm1092, %v2807, %v2764
        %v2824 = vsel %vm1092, %v2808, %v2766
        %v2825 = vsel %vm1092, %v2809, %v2768
        %v2826 = vsel %vm1092, %v2810, %v2770
        %v2827 = vsel %vm1092, %v2811, %v2772
        %v2828 = vsel %vm1092, %v2812, %v2774
        %v2829 = vsel %vm1092, %v2813, %v2776
        %v2830 = vsel %vm1092, %v2814, %v2778
        %v2831 = vsel %vm1092, %v2815, %v2780
        %v2832 = vsel %vm1092, %v2816, %v2782
        %v2833 = vsel %vm1092, %v2817, %v2784
        %v2834 = vsel %vm1092, %v2818, %v2786
        %v2835 = vld [vmem:[%s12] sm:$0xff]
        %v2836 = vld [vmem:[%s12 + $0x8] sm:$0xff]
        %v2837 = vld [vmem:[%s12 + $0x10] sm:$0xff]
        %v2838 = vld [vmem:[%s13] sm:$0x1]
        %v2840 = vperm.slane %v2838, 0
        %vm2842 = vcmask 195584
        %v2844 = vsel %vm2842, %v2819, 0
        %v2847 = vsel %vm2842, %v2820, 0
        %v2850 = vsel %vm2842, %v2821, 0
        %v2853 = vsel %vm2842, %v2822, 0
        %v2856 = vsel %vm2842, %v2823, 0
        %v2859 = vsel %vm2842, %v2824, 0
        %v2862 = vsel %vm2842, %v2825, 0
        %v2865 = vsel %vm2842, %v2826, 0
        %v2868 = vsel %vm2842, %v2827, 0
        %v2871 = vsel %vm2842, %v2828, 0
        %v2874 = vsel %vm2842, %v2829, 0
        %v2877 = vsel %vm2842, %v2830, 0
        %v2880 = vsel %vm2842, %v2831, 0
        %v2883 = vsel %vm2842, %v2832, 0
        %v2886 = vsel %vm2842, %v2833, 0
        %v2889 = vsel %vm2842, %v2834, 0
        %2891 = vmatpush.msra.mxu0 0.0
        %2892 = vmatpush.msra.mxu0 0.0
        %2893 = vmatpush.msra.mxu0 0.0
        %2894 = vmatpush.msra.mxu0 0.0
        %2895 = vmatpush.msra.mxu0 0.0
        %2896 = vmatpush.msra.mxu0 0.0
        %2897 = vmatpush.msra.mxu0 0.0
        %2898 = vmatpush.msra.mxu0 0.0
        %2899 = vmatpush.msra.mxu0 0.0
        %2900 = vmatpush.msra.mxu0 0.0
        %2901 = vmatpush.msra.mxu0 0.0
        %2902 = vmatpush.msra.mxu0 0.0
        %2903 = vmatpush.msra.mxu0 0.0
        %2904 = vmatpush.msra.mxu0 %v2837
        %2905 = vmatpush.msra.mxu0 %v2836
        %2906 = vmatpush.msra.mxu0 %v2835
        %2907 = vmatmul.f32.gmra.mxu0 %v2844
        %v2908 = vpop.f32.mrf.mxu0
        %v2909 = vadd.f32 %v2840, %v2908
        %2910 = vmatmul.f32.gmra.mxu0 %v2847
        %v2911 = vpop.f32.mrf.mxu0
        %v2912 = vadd.f32 %v2840, %v2911
        %2913 = vmatmul.f32.gmra.mxu0 %v2850
        %v2914 = vpop.f32.mrf.mxu0
        %v2915 = vadd.f32 %v2840, %v2914
        %2916 = vmatmul.f32.gmra.mxu0 %v2853
        %v2917 = vpop.f32.mrf.mxu0
        %v2918 = vadd.f32 %v2840, %v2917
        %2919 = vmatmul.f32.gmra.mxu0 %v2856
        %v2920 = vpop.f32.mrf.mxu0
        %v2921 = vadd.f32 %v2840, %v2920
        %2922 = vmatmul.f32.gmra.mxu0 %v2859
        %v2923 = vpop.f32.mrf.mxu0
        %v2924 = vadd.f32 %v2840, %v2923
        %2925 = vmatmul.f32.gmra.mxu0 %v2862
        %v2926 = vpop.f32.mrf.mxu0
        %v2927 = vadd.f32 %v2840, %v2926
        %2928 = vmatmul.f32.gmra.mxu0 %v2865
        %v2929 = vpop.f32.mrf.mxu0
        %v2930 = vadd.f32 %v2840, %v2929
        %2931 = vmatmul.f32.gmra.mxu0 %v2868
        %v2932 = vpop.f32.mrf.mxu0
        %v2933 = vadd.f32 %v2840, %v2932
        %2934 = vmatmul.f32.gmra.mxu0 %v2871
        %v2935 = vpop.f32.mrf.mxu0
        %v2936 = vadd.f32 %v2840, %v2935
        %2937 = vmatmul.f32.gmra.mxu0 %v2874
        %v2938 = vpop.f32.mrf.mxu0
        %v2939 = vadd.f32 %v2840, %v2938
        %2940 = vmatmul.f32.gmra.mxu0 %v2877
        %v2941 = vpop.f32.mrf.mxu0
        %v2942 = vadd.f32 %v2840, %v2941
        %2943 = vmatmul.f32.gmra.mxu0 %v2880
        %v2944 = vpop.f32.mrf.mxu0
        %v2945 = vadd.f32 %v2840, %v2944
        %2946 = vmatmul.f32.gmra.mxu0 %v2883
        %v2947 = vpop.f32.mrf.mxu0
        %v2948 = vadd.f32 %v2840, %v2947
        %2949 = vmatmul.f32.gmra.mxu0 %v2886
        %v2950 = vpop.f32.mrf.mxu0
        %v2951 = vadd.f32 %v2840, %v2950
        %2952 = vmatmul.f32.gmra.mxu0 %v2889
        %v2953 = vpop.f32.mrf.mxu0
        %v2954 = vadd.f32 %v2840, %v2953
        %2955 = vdwg.mxu0
        %v2956 = vmax.f32 %v2909, 0.0
        %v2957 = vmax.f32 %v2912, 0.0
        %v2958 = vmax.f32 %v2915, 0.0
        %v2959 = vmax.f32 %v2918, 0.0
        %v2960 = vmax.f32 %v2921, 0.0
        %v2961 = vmax.f32 %v2924, 0.0
        %v2962 = vmax.f32 %v2927, 0.0
        %v2963 = vmax.f32 %v2930, 0.0
        %v2964 = vmax.f32 %v2933, 0.0
        %v2965 = vmax.f32 %v2936, 0.0
        %v2966 = vmax.f32 %v2939, 0.0
        %v2967 = vmax.f32 %v2942, 0.0
        %v2968 = vmax.f32 %v2945, 0.0
        %v2969 = vmax.f32 %v2948, 0.0
        %v2970 = vmax.f32 %v2951, 0.0
        %v2971 = vmax.f32 %v2954, 0.0
        %v2972 = vsel %vm2406, %v2956, %v2692
        %v2973 = vsel %vm2406, %v2957, %v2694
        %v2974 = vsel %vm2406, %v2958, %v2696
        %v2975 = vsel %vm2406, %v2959, %v2698
        %v2976 = vsel %vm2406, %v2960, %v2700
        %v2977 = vsel %vm2406, %v2961, %v2702
        %v2978 = vsel %vm2406, %v2962, %v2704
        %v2979 = vsel %vm2406, %v2963, %v2706
        %v2980 = vsel %vm2406, %v2964, %v2708
        %v2981 = vsel %vm2406, %v2965, %v2710
        %v2982 = vsel %vm2406, %v2966, %v2712
        %v2983 = vsel %vm2406, %v2967, %v2714
        %v2984 = vsel %vm2406, %v2968, %v2716
        %v2985 = vsel %vm2406, %v2969, %v2718
        %v2986 = vsel %vm2406, %v2970, %v2720
        %v2987 = vsel %vm2406, %v2971, %v2722
        %v2988 = vld [vmem:[%s14] sm:$0xff]
        %v2989 = vld [vmem:[%s14 + $0x8] sm:$0xff]
        %v2990 = vld [vmem:[%s15] sm:$0x1]
        %v2992 = vperm.slane %v2990, 0
        %v2995 = vsel %vm1092, %v2972, 0
        %v2998 = vsel %vm1092, %v2973, 0
        %v3001 = vsel %vm1092, %v2974, 0
        %v3004 = vsel %vm1092, %v2975, 0
        %v3007 = vsel %vm1092, %v2976, 0
        %v3010 = vsel %vm1092, %v2977, 0
        %v3013 = vsel %vm1092, %v2978, 0
        %v3016 = vsel %vm1092, %v2979, 0
        %v3019 = vsel %vm1092, %v2980, 0
        %v3022 = vsel %vm1092, %v2981, 0
        %v3025 = vsel %vm1092, %v2982, 0
        %v3028 = vsel %vm1092, %v2983, 0
        %v3031 = vsel %vm1092, %v2984, 0
        %v3034 = vsel %vm1092, %v2985, 0
        %v3037 = vsel %vm1092, %v2986, 0
        %v3040 = vsel %vm1092, %v2987, 0
        %3042 = vmatpush.msra.mxu0 0.0
        %3043 = vmatpush.msra.mxu0 0.0
        %3044 = vmatpush.msra.mxu0 0.0
        %3045 = vmatpush.msra.mxu0 0.0
        %3046 = vmatpush.msra.mxu0 0.0
        %3047 = vmatpush.msra.mxu0 0.0
        %3048 = vmatpush.msra.mxu0 0.0
        %3049 = vmatpush.msra.mxu0 0.0
        %3050 = vmatpush.msra.mxu0 0.0
        %3051 = vmatpush.msra.mxu0 0.0
        %3052 = vmatpush.msra.mxu0 0.0
        %3053 = vmatpush.msra.mxu0 0.0
        %3054 = vmatpush.msra.mxu0 0.0
        %3055 = vmatpush.msra.mxu0 0.0
        %3056 = vmatpush.msra.mxu0 %v2989
        %3057 = vmatpush.msra.mxu0 %v2988
        %3058 = vmatmul.f32.gmra.mxu0 %v2995
        %v3059 = vpop.f32.mrf.mxu0
        %v3060 = vadd.f32 %v2992, %v3059
        %3061 = vmatmul.f32.gmra.mxu0 %v2998
        %v3062 = vpop.f32.mrf.mxu0
        %v3063 = vadd.f32 %v2992, %v3062
        %3064 = vmatmul.f32.gmra.mxu0 %v3001
        %v3065 = vpop.f32.mrf.mxu0
        %v3066 = vadd.f32 %v2992, %v3065
        %3067 = vmatmul.f32.gmra.mxu0 %v3004
        %v3068 = vpop.f32.mrf.mxu0
        %v3069 = vadd.f32 %v2992, %v3068
        %3070 = vmatmul.f32.gmra.mxu0 %v3007
        %v3071 = vpop.f32.mrf.mxu0
        %v3072 = vadd.f32 %v2992, %v3071
        %3073 = vmatmul.f32.gmra.mxu0 %v3010
        %v3074 = vpop.f32.mrf.mxu0
        %v3075 = vadd.f32 %v2992, %v3074
        %3076 = vmatmul.f32.gmra.mxu0 %v3013
        %v3077 = vpop.f32.mrf.mxu0
        %v3078 = vadd.f32 %v2992, %v3077
        %3079 = vmatmul.f32.gmra.mxu0 %v3016
        %v3080 = vpop.f32.mrf.mxu0
        %v3081 = vadd.f32 %v2992, %v3080
        %3082 = vmatmul.f32.gmra.mxu0 %v3019
        %v3083 = vpop.f32.mrf.mxu0
        %v3084 = vadd.f32 %v2992, %v3083
        %3085 = vmatmul.f32.gmra.mxu0 %v3022
        %v3086 = vpop.f32.mrf.mxu0
        %v3087 = vadd.f32 %v2992, %v3086
        %3088 = vmatmul.f32.gmra.mxu0 %v3025
        %v3089 = vpop.f32.mrf.mxu0
        %v3090 = vadd.f32 %v2992, %v3089
        %3091 = vmatmul.f32.gmra.mxu0 %v3028
        %v3092 = vpop.f32.mrf.mxu0
        %v3093 = vadd.f32 %v2992, %v3092
        %3094 = vmatmul.f32.gmra.mxu0 %v3031
        %v3095 = vpop.f32.mrf.mxu0
        %v3096 = vadd.f32 %v2992, %v3095
        %3097 = vmatmul.f32.gmra.mxu0 %v3034
        %v3098 = vpop.f32.mrf.mxu0
        %v3099 = vadd.f32 %v2992, %v3098
        %3100 = vmatmul.f32.gmra.mxu0 %v3037
        %v3101 = vpop.f32.mrf.mxu0
        %v3102 = vadd.f32 %v2992, %v3101
        %3103 = vmatmul.f32.gmra.mxu0 %v3040
        %v3104 = vpop.f32.mrf.mxu0
        %v3105 = vadd.f32 %v2992, %v3104
        %3106 = vdwg.mxu0
        %v3107 = vtanh.pop %v3060
        %v3108 = vtanh.pop %v3063
        %v3109 = vtanh.pop %v3066
        %v3110 = vtanh.pop %v3069
        %v3111 = vtanh.pop %v3072
        %v3112 = vtanh.pop %v3075
        %v3113 = vtanh.pop %v3078
        %v3114 = vtanh.pop %v3081
        %v3115 = vtanh.pop %v3084
        %v3116 = vtanh.pop %v3087
        %v3117 = vtanh.pop %v3090
        %v3118 = vtanh.pop %v3093
        %v3119 = vtanh.pop %v3096
        %v3120 = vtanh.pop %v3099
        %v3121 = vtanh.pop %v3102
        %v3122 = vtanh.pop %v3105
        %v3123 = vld [vmem:[%s16] sm:$0xff]
        %v3124 = vld [vmem:[%s16 + $0x8] sm:$0xff]
        %v3125 = vld [vmem:[%s16 + $0x10] sm:$0xff]
        %v3126 = vld [vmem:[%s16 + $0x18] sm:$0xff]
        %v3127 = vld [vmem:[%s16 + $0x20] sm:$0xff]
        %v3128 = vld [vmem:[%s16 + $0x28] sm:$0xff]
        %v3129 = vld [vmem:[%s16 + $0x30] sm:$0xff]
        %v3130 = vld [vmem:[%s16 + $0x38] sm:$0xff]
        %v3131 = vld [vmem:[%s17] sm:$0x1]
        %v3133 = vperm.slane %v3131, 0
        %vm3135 = vcmask 523264
        %v3137 = vsel %vm3135, %v3107, 0
        %v3140 = vsel %vm3135, %v3108, 0
        %v3143 = vsel %vm3135, %v3109, 0
        %v3146 = vsel %vm3135, %v3110, 0
        %v3149 = vsel %vm3135, %v3111, 0
        %v3152 = vsel %vm3135, %v3112, 0
        %v3155 = vsel %vm3135, %v3113, 0
        %v3158 = vsel %vm3135, %v3114, 0
        %v3161 = vsel %vm3135, %v3115, 0
        %v3164 = vsel %vm3135, %v3116, 0
        %v3167 = vsel %vm3135, %v3117, 0
        %v3170 = vsel %vm3135, %v3118, 0
        %v3173 = vsel %vm3135, %v3119, 0
        %v3176 = vsel %vm3135, %v3120, 0
        %v3179 = vsel %vm3135, %v3121, 0
        %v3182 = vsel %vm3135, %v3122, 0
        %3184 = vmatpush.msra.mxu0 0.0
        %3185 = vmatpush.msra.mxu0 0.0
        %3186 = vmatpush.msra.mxu0 0.0
        %3187 = vmatpush.msra.mxu0 0.0
        %3188 = vmatpush.msra.mxu0 0.0
        %3189 = vmatpush.msra.mxu0 0.0
        %3190 = vmatpush.msra.mxu0 0.0
        %3191 = vmatpush.msra.mxu0 0.0
        %3192 = vmatpush.msra.mxu0 %v3130
        %3193 = vmatpush.msra.mxu0 %v3129
        %3194 = vmatpush.msra.mxu0 %v3128
        %3195 = vmatpush.msra.mxu0 %v3127
        %3196 = vmatpush.msra.mxu0 %v3126
        %3197 = vmatpush.msra.mxu0 %v3125
        %3198 = vmatpush.msra.mxu0 %v3124
        %3199 = vmatpush.msra.mxu0 %v3123
        %3200 = vmatmul.f32.gmra.mxu0 %v3137
        %v3201 = vpop.f32.mrf.mxu0
        %v3202 = vadd.f32 %v3133, %v3201
        %3203 = vmatmul.f32.gmra.mxu0 %v3140
        %v3204 = vpop.f32.mrf.mxu0
        %v3205 = vadd.f32 %v3133, %v3204
        %3206 = vmatmul.f32.gmra.mxu0 %v3143
        %v3207 = vpop.f32.mrf.mxu0
        %v3208 = vadd.f32 %v3133, %v3207
        %3209 = vmatmul.f32.gmra.mxu0 %v3146
        %v3210 = vpop.f32.mrf.mxu0
        %v3211 = vadd.f32 %v3133, %v3210
        %3212 = vmatmul.f32.gmra.mxu0 %v3149
        %v3213 = vpop.f32.mrf.mxu0
        %v3214 = vadd.f32 %v3133, %v3213
        %3215 = vmatmul.f32.gmra.mxu0 %v3152
        %v3216 = vpop.f32.mrf.mxu0
        %v3217 = vadd.f32 %v3133, %v3216
        %3218 = vmatmul.f32.gmra.mxu0 %v3155
        %v3219 = vpop.f32.mrf.mxu0
        %v3220 = vadd.f32 %v3133, %v3219
        %3221 = vmatmul.f32.gmra.mxu0 %v3158
        %v3222 = vpop.f32.mrf.mxu0
        %v3223 = vadd.f32 %v3133, %v3222
        %3224 = vmatmul.f32.gmra.mxu0 %v3161
        %v3225 = vpop.f32.mrf.mxu0
        %v3226 = vadd.f32 %v3133, %v3225
        %3227 = vmatmul.f32.gmra.mxu0 %v3164
        %v3228 = vpop.f32.mrf.mxu0
        %v3229 = vadd.f32 %v3133, %v3228
        %3230 = vmatmul.f32.gmra.mxu0 %v3167
        %v3231 = vpop.f32.mrf.mxu0
        %v3232 = vadd.f32 %v3133, %v3231
        %3233 = vmatmul.f32.gmra.mxu0 %v3170
        %v3234 = vpop.f32.mrf.mxu0
        %v3235 = vadd.f32 %v3133, %v3234
        %3236 = vmatmul.f32.gmra.mxu0 %v3173
        %v3237 = vpop.f32.mrf.mxu0
        %v3238 = vadd.f32 %v3133, %v3237
        %3239 = vmatmul.f32.gmra.mxu0 %v3176
        %v3240 = vpop.f32.mrf.mxu0
        %v3241 = vadd.f32 %v3133, %v3240
        %3242 = vmatmul.f32.gmra.mxu0 %v3179
        %v3243 = vpop.f32.mrf.mxu0
        %v3244 = vadd.f32 %v3133, %v3243
        %3245 = vmatmul.f32.gmra.mxu0 %v3182
        %v3246 = vpop.f32.mrf.mxu0
        %v3247 = vadd.f32 %v3133, %v3246
        %3248 = vdwg.mxu0
        %v3249 = vtanh.pop %v3202
        %v3250 = vtanh.pop %v3205
        %v3251 = vtanh.pop %v3208
        %v3252 = vtanh.pop %v3211
        %v3253 = vtanh.pop %v3214
        %v3254 = vtanh.pop %v3217
        %v3255 = vtanh.pop %v3220
        %v3256 = vtanh.pop %v3223
        %v3257 = vtanh.pop %v3226
        %v3258 = vtanh.pop %v3229
        %v3259 = vtanh.pop %v3232
        %v3260 = vtanh.pop %v3235
        %v3261 = vtanh.pop %v3238
        %v3262 = vtanh.pop %v3241
        %v3263 = vtanh.pop %v3244
        %v3264 = vtanh.pop %v3247
        %v3265 = vld [vmem:[%s18] sm:$0xff]
        %v3266 = vld [vmem:[%s18 + $0x8] sm:$0xff]
        %v3267 = vld [vmem:[%s18 + $0x10] sm:$0xff]
        %v3268 = vld [vmem:[%s18 + $0x18] sm:$0xff]
        %v3269 = vld [vmem:[%s18 + $0x20] sm:$0xff]
        %v3270 = vld [vmem:[%s18 + $0x28] sm:$0xff]
        %v3271 = vld [vmem:[%s18 + $0x30] sm:$0xff]
        %v3272 = vld [vmem:[%s18 + $0x38] sm:$0xff]
        %v3273 = vld [vmem:[%s19] sm:$0x1]
        %v3275 = vperm.slane %v3273, 0
        %v3278 = vsel %vm3135, %v3249, 0
        %v3281 = vsel %vm3135, %v3250, 0
        %v3284 = vsel %vm3135, %v3251, 0
        %v3287 = vsel %vm3135, %v3252, 0
        %v3290 = vsel %vm3135, %v3253, 0
        %v3293 = vsel %vm3135, %v3254, 0
        %v3296 = vsel %vm3135, %v3255, 0
        %v3299 = vsel %vm3135, %v3256, 0
        %v3302 = vsel %vm3135, %v3257, 0
        %v3305 = vsel %vm3135, %v3258, 0
        %v3308 = vsel %vm3135, %v3259, 0
        %v3311 = vsel %vm3135, %v3260, 0
        %v3314 = vsel %vm3135, %v3261, 0
        %v3317 = vsel %vm3135, %v3262, 0
        %v3320 = vsel %vm3135, %v3263, 0
        %v3323 = vsel %vm3135, %v3264, 0
        %3325 = vmatpush.msra.mxu0 0.0
        %3326 = vmatpush.msra.mxu0 0.0
        %3327 = vmatpush.msra.mxu0 0.0
        %3328 = vmatpush.msra.mxu0 0.0
        %3329 = vmatpush.msra.mxu0 0.0
        %3330 = vmatpush.msra.mxu0 0.0
        %3331 = vmatpush.msra.mxu0 0.0
        %3332 = vmatpush.msra.mxu0 0.0
        %3333 = vmatpush.msra.mxu0 %v3272
        %3334 = vmatpush.msra.mxu0 %v3271
        %3335 = vmatpush.msra.mxu0 %v3270
        %3336 = vmatpush.msra.mxu0 %v3269
        %3337 = vmatpush.msra.mxu0 %v3268
        %3338 = vmatpush.msra.mxu0 %v3267
        %3339 = vmatpush.msra.mxu0 %v3266
        %3340 = vmatpush.msra.mxu0 %v3265
        %3341 = vmatmul.f32.gmra.mxu0 %v3278
        %v3342 = vpop.f32.mrf.mxu0
        %v3343 = vadd.f32 %v3275, %v3342
        %3344 = vmatmul.f32.gmra.mxu0 %v3281
        %v3345 = vpop.f32.mrf.mxu0
        %v3346 = vadd.f32 %v3275, %v3345
        %3347 = vmatmul.f32.gmra.mxu0 %v3284
        %v3348 = vpop.f32.mrf.mxu0
        %v3349 = vadd.f32 %v3275, %v3348
        %3350 = vmatmul.f32.gmra.mxu0 %v3287
        %v3351 = vpop.f32.mrf.mxu0
        %v3352 = vadd.f32 %v3275, %v3351
        %3353 = vmatmul.f32.gmra.mxu0 %v3290
        %v3354 = vpop.f32.mrf.mxu0
        %v3355 = vadd.f32 %v3275, %v3354
        %3356 = vmatmul.f32.gmra.mxu0 %v3293
        %v3357 = vpop.f32.mrf.mxu0
        %v3358 = vadd.f32 %v3275, %v3357
        %3359 = vmatmul.f32.gmra.mxu0 %v3296
        %v3360 = vpop.f32.mrf.mxu0
        %v3361 = vadd.f32 %v3275, %v3360
        %3362 = vmatmul.f32.gmra.mxu0 %v3299
        %v3363 = vpop.f32.mrf.mxu0
        %v3364 = vadd.f32 %v3275, %v3363
        %3365 = vmatmul.f32.gmra.mxu0 %v3302
        %v3366 = vpop.f32.mrf.mxu0
        %v3367 = vadd.f32 %v3275, %v3366
        %3368 = vmatmul.f32.gmra.mxu0 %v3305
        %v3369 = vpop.f32.mrf.mxu0
        %v3370 = vadd.f32 %v3275, %v3369
        %3371 = vmatmul.f32.gmra.mxu0 %v3308
        %v3372 = vpop.f32.mrf.mxu0
        %v3373 = vadd.f32 %v3275, %v3372
        %3374 = vmatmul.f32.gmra.mxu0 %v3311
        %v3375 = vpop.f32.mrf.mxu0
        %v3376 = vadd.f32 %v3275, %v3375
        %3377 = vmatmul.f32.gmra.mxu0 %v3314
        %v3378 = vpop.f32.mrf.mxu0
        %v3379 = vadd.f32 %v3275, %v3378
        %3380 = vmatmul.f32.gmra.mxu0 %v3317
        %v3381 = vpop.f32.mrf.mxu0
        %v3382 = vadd.f32 %v3275, %v3381
        %3383 = vmatmul.f32.gmra.mxu0 %v3320
        %v3384 = vpop.f32.mrf.mxu0
        %v3385 = vadd.f32 %v3275, %v3384
        %3386 = vmatmul.f32.gmra.mxu0 %v3323
        %v3387 = vpop.f32.mrf.mxu0
        %v3388 = vadd.f32 %v3275, %v3387
        %3389 = vdwg.mxu0
        %3406 = vrot.lane.b32.xlu0 %v3343, 32
        %v3407 = vpop.permute.xlu0 %3406
        %3408 = vrot.lane.b32.xlu0 %v3346, 32
        %v3409 = vpop.permute.xlu0 %3408
        %3410 = vrot.lane.b32.xlu0 %v3349, 32
        %v3411 = vpop.permute.xlu0 %3410
        %3412 = vrot.lane.b32.xlu0 %v3352, 32
        %v3413 = vpop.permute.xlu0 %3412
        %3414 = vrot.lane.b32.xlu0 %v3355, 32
        %v3415 = vpop.permute.xlu0 %3414
        %3416 = vrot.lane.b32.xlu0 %v3358, 32
        %v3417 = vpop.permute.xlu0 %3416
        %3418 = vrot.lane.b32.xlu0 %v3361, 32
        %v3419 = vpop.permute.xlu0 %3418
        %3420 = vrot.lane.b32.xlu0 %v3364, 32
        %v3421 = vpop.permute.xlu0 %3420
        %3422 = vrot.lane.b32.xlu0 %v3367, 32
        %v3423 = vpop.permute.xlu0 %3422
        %3424 = vrot.lane.b32.xlu0 %v3370, 32
        %v3425 = vpop.permute.xlu0 %3424
        %3426 = vrot.lane.b32.xlu0 %v3373, 32
        %v3427 = vpop.permute.xlu0 %3426
        %3428 = vrot.lane.b32.xlu0 %v3376, 32
        %v3429 = vpop.permute.xlu0 %3428
        %3430 = vrot.lane.b32.xlu0 %v3379, 32
        %v3431 = vpop.permute.xlu0 %3430
        %3432 = vrot.lane.b32.xlu0 %v3382, 32
        %v3433 = vpop.permute.xlu0 %3432
        %3434 = vrot.lane.b32.xlu0 %v3385, 32
        %v3435 = vpop.permute.xlu0 %3434
        %3436 = vrot.lane.b32.xlu0 %v3388, 32
        %v3437 = vpop.permute.xlu0 %3436
        %v3454 = vsel %vm1109, %v2118, %v3407
        %v3455 = vsel %vm1109, %v2121, %v3409
        %v3456 = vsel %vm1109, %v2124, %v3411
        %v3457 = vsel %vm1109, %v2127, %v3413
        %v3458 = vsel %vm1109, %v2130, %v3415
        %v3459 = vsel %vm1109, %v2133, %v3417
        %v3460 = vsel %vm1109, %v2136, %v3419
        %v3461 = vsel %vm1109, %v2139, %v3421
        %v3462 = vsel %vm1109, %v2142, %v3423
        %v3463 = vsel %vm1109, %v2145, %v3425
        %v3464 = vsel %vm1109, %v2148, %v3427
        %v3465 = vsel %vm1109, %v2151, %v3429
        %v3466 = vsel %vm1109, %v2154, %v3431
        %v3467 = vsel %vm1109, %v2157, %v3433
        %v3468 = vsel %vm1109, %v2160, %v3435
        %v3469 = vsel %vm1109, %v2163, %v3437
        %v3470 = vld [vmem:[#allocation2] sm:$0xff]
        %v3471 = vld [vmem:[#allocation2 + $0x8] sm:$0xff]
        %v3472 = vld [vmem:[#allocation2 + $0x10] sm:$0xff]
        %v3473 = vld [vmem:[#allocation2 + $0x18] sm:$0xff]
        %v3474 = vld [vmem:[#allocation2 + $0x20] sm:$0xff]
        %v3475 = vld [vmem:[#allocation2 + $0x28] sm:$0xff]
        %v3476 = vld [vmem:[#allocation2 + $0x30] sm:$0xff]
        %v3477 = vld [vmem:[#allocation2 + $0x38] sm:$0xff]
        %v3478 = vld [vmem:[%s21] sm:$0x1]
        %v3480 = vperm.slane %v3478, 0
        %v3483 = vsel %vm3135, %v3454, 0
        %v3486 = vsel %vm3135, %v3455, 0
        %v3489 = vsel %vm3135, %v3456, 0
        %v3492 = vsel %vm3135, %v3457, 0
        %v3495 = vsel %vm3135, %v3458, 0
        %v3498 = vsel %vm3135, %v3459, 0
        %v3501 = vsel %vm3135, %v3460, 0
        %v3504 = vsel %vm3135, %v3461, 0
        %v3507 = vsel %vm3135, %v3462, 0
        %v3510 = vsel %vm3135, %v3463, 0
        %v3513 = vsel %vm3135, %v3464, 0
        %v3516 = vsel %vm3135, %v3465, 0
        %v3519 = vsel %vm3135, %v3466, 0
        %v3522 = vsel %vm3135, %v3467, 0
        %v3525 = vsel %vm3135, %v3468, 0
        %v3528 = vsel %vm3135, %v3469, 0
        %3530 = vmatpush.msra.mxu0 0.0
        %3531 = vmatpush.msra.mxu0 0.0
        %3532 = vmatpush.msra.mxu0 0.0
        %3533 = vmatpush.msra.mxu0 0.0
        %3534 = vmatpush.msra.mxu0 0.0
        %3535 = vmatpush.msra.mxu0 0.0
        %3536 = vmatpush.msra.mxu0 0.0
        %3537 = vmatpush.msra.mxu0 0.0
        %3538 = vmatpush.msra.mxu0 %v3477
        %3539 = vmatpush.msra.mxu0 %v3476
        %3540 = vmatpush.msra.mxu0 %v3475
        %3541 = vmatpush.msra.mxu0 %v3474
        %3542 = vmatpush.msra.mxu0 %v3473
        %3543 = vmatpush.msra.mxu0 %v3472
        %3544 = vmatpush.msra.mxu0 %v3471
        %3545 = vmatpush.msra.mxu0 %v3470
        %3546 = vmatmul.f32.gmra.mxu0 %v3483
        %v3547 = vpop.f32.mrf.mxu0
        %v3548 = vadd.f32 %v3480, %v3547
        %3549 = vmatmul.f32.gmra.mxu0 %v3486
        %v3550 = vpop.f32.mrf.mxu0
        %v3551 = vadd.f32 %v3480, %v3550
        %3552 = vmatmul.f32.gmra.mxu0 %v3489
        %v3553 = vpop.f32.mrf.mxu0
        %v3554 = vadd.f32 %v3480, %v3553
        %3555 = vmatmul.f32.gmra.mxu0 %v3492
        %v3556 = vpop.f32.mrf.mxu0
        %v3557 = vadd.f32 %v3480, %v3556
        %3558 = vmatmul.f32.gmra.mxu0 %v3495
        %v3559 = vpop.f32.mrf.mxu0
        %v3560 = vadd.f32 %v3480, %v3559
        %3561 = vmatmul.f32.gmra.mxu0 %v3498
        %v3562 = vpop.f32.mrf.mxu0
        %v3563 = vadd.f32 %v3480, %v3562
        %3564 = vmatmul.f32.gmra.mxu0 %v3501
        %v3565 = vpop.f32.mrf.mxu0
        %v3566 = vadd.f32 %v3480, %v3565
        %3567 = vmatmul.f32.gmra.mxu0 %v3504
        %v3568 = vpop.f32.mrf.mxu0
        %v3569 = vadd.f32 %v3480, %v3568
        %3570 = vmatmul.f32.gmra.mxu0 %v3507
        %v3571 = vpop.f32.mrf.mxu0
        %v3572 = vadd.f32 %v3480, %v3571
        %3573 = vmatmul.f32.gmra.mxu0 %v3510
        %v3574 = vpop.f32.mrf.mxu0
        %v3575 = vadd.f32 %v3480, %v3574
        %3576 = vmatmul.f32.gmra.mxu0 %v3513
        %v3577 = vpop.f32.mrf.mxu0
        %v3578 = vadd.f32 %v3480, %v3577
        %3579 = vmatmul.f32.gmra.mxu0 %v3516
        %v3580 = vpop.f32.mrf.mxu0
        %v3581 = vadd.f32 %v3480, %v3580
        %3582 = vmatmul.f32.gmra.mxu0 %v3519
        %v3583 = vpop.f32.mrf.mxu0
        %v3584 = vadd.f32 %v3480, %v3583
        %3585 = vmatmul.f32.gmra.mxu0 %v3522
        %v3586 = vpop.f32.mrf.mxu0
        %v3587 = vadd.f32 %v3480, %v3586
        %3588 = vmatmul.f32.gmra.mxu0 %v3525
        %v3589 = vpop.f32.mrf.mxu0
        %v3590 = vadd.f32 %v3480, %v3589
        %3591 = vmatmul.f32.gmra.mxu0 %v3528
        %v3592 = vpop.f32.mrf.mxu0
        %v3593 = vadd.f32 %v3480, %v3592
        %3594 = vdwg.mxu0
        %3611 = vrot.lane.b32.xlu0 %v3548, 64
        %v3612 = vpop.permute.xlu0 %3611
        %3613 = vrot.lane.b32.xlu0 %v3551, 64
        %v3614 = vpop.permute.xlu0 %3613
        %3615 = vrot.lane.b32.xlu0 %v3554, 64
        %v3616 = vpop.permute.xlu0 %3615
        %3617 = vrot.lane.b32.xlu0 %v3557, 64
        %v3618 = vpop.permute.xlu0 %3617
        %3619 = vrot.lane.b32.xlu0 %v3560, 64
        %v3620 = vpop.permute.xlu0 %3619
        %3621 = vrot.lane.b32.xlu0 %v3563, 64
        %v3622 = vpop.permute.xlu0 %3621
        %3623 = vrot.lane.b32.xlu0 %v3566, 64
        %v3624 = vpop.permute.xlu0 %3623
        %3625 = vrot.lane.b32.xlu0 %v3569, 64
        %v3626 = vpop.permute.xlu0 %3625
        %3627 = vrot.lane.b32.xlu0 %v3572, 64
        %v3628 = vpop.permute.xlu0 %3627
        %3629 = vrot.lane.b32.xlu0 %v3575, 64
        %v3630 = vpop.permute.xlu0 %3629
        %3631 = vrot.lane.b32.xlu0 %v3578, 64
        %v3632 = vpop.permute.xlu0 %3631
        %3633 = vrot.lane.b32.xlu0 %v3581, 64
        %v3634 = vpop.permute.xlu0 %3633
        %3635 = vrot.lane.b32.xlu0 %v3584, 64
        %v3636 = vpop.permute.xlu0 %3635
        %3637 = vrot.lane.b32.xlu0 %v3587, 64
        %v3638 = vpop.permute.xlu0 %3637
        %3639 = vrot.lane.b32.xlu0 %v3590, 64
        %v3640 = vpop.permute.xlu0 %3639
        %3641 = vrot.lane.b32.xlu0 %v3593, 64
        %v3642 = vpop.permute.xlu0 %3641
        %v3659 = vsel %vm3135, %v3454, %v3612
        %v3660 = vsel %vm3135, %v3455, %v3614
        %v3661 = vsel %vm3135, %v3456, %v3616
        %v3662 = vsel %vm3135, %v3457, %v3618
        %v3663 = vsel %vm3135, %v3458, %v3620
        %v3664 = vsel %vm3135, %v3459, %v3622
        %v3665 = vsel %vm3135, %v3460, %v3624
        %v3666 = vsel %vm3135, %v3461, %v3626
        %v3667 = vsel %vm3135, %v3462, %v3628
        %v3668 = vsel %vm3135, %v3463, %v3630
        %v3669 = vsel %vm3135, %v3464, %v3632
        %v3670 = vsel %vm3135, %v3465, %v3634
        %v3671 = vsel %vm3135, %v3466, %v3636
        %v3672 = vsel %vm3135, %v3467, %v3638
        %v3673 = vsel %vm3135, %v3468, %v3640
        %v3674 = vsel %vm3135, %v3469, %v3642
        %3675 = vst [vmem:[%s720] sm:$0xff] %v3659
        %3676 = vst [vmem:[%s720 + $0x8] sm:$0xff] %v3660
        %3677 = vst [vmem:[%s720 + $0x10] sm:$0xff] %v3661
        %3678 = vst [vmem:[%s720 + $0x18] sm:$0xff] %v3662
        %3679 = vst [vmem:[%s720 + $0x20] sm:$0xff] %v3663
        %3680 = vst [vmem:[%s720 + $0x28] sm:$0xff] %v3664
        %3681 = vst [vmem:[%s720 + $0x30] sm:$0xff] %v3665
        %3682 = vst [vmem:[%s720 + $0x38] sm:$0xff] %v3666
        %3683 = vst [vmem:[%s720 + $0x40] sm:$0xff] %v3667
        %3684 = vst [vmem:[%s720 + $0x48] sm:$0xff] %v3668
        %3685 = vst [vmem:[%s720 + $0x50] sm:$0xff] %v3669
        %3686 = vst [vmem:[%s720 + $0x58] sm:$0xff] %v3670
        %3687 = vst [vmem:[%s720 + $0x60] sm:$0xff] %v3671
        %3688 = vst [vmem:[%s720 + $0x68] sm:$0xff] %v3672
        %3689 = vst [vmem:[%s720 + $0x70] sm:$0xff] %v3673
        %3690 = vst [vmem:[%s720 + $0x78] sm:$0xff] %v3674
        %p3691 = scmp.lt.s32.totalorder %s34, 1
        %s3692 = scalar_select %p3691, %s34, 1
        %s3693 = smul.addr %s3692, 16
        %s3694 = smul.addr %s3693, 8
        %s3695 = scalar_lea.vmem %s22, %s3694
        // Predicated region
        $region113: #{et_forward_pallas.1} parent=107 // pred_check
          %p3696 = pneg %p524
        $region114: #{et_forward_pallas.1} parent=107 // pred_check_branch
          %3698 = sbr.rel (%p3696) target = $region116
        $region115: #{et_forward_pallas.1} parent=107 // pred_region
          _
        $region116: #{et_forward_pallas.1} parent=107 // pred_fallthru
          _
      $region108: #{et_forward_pallas.1} parent=5 // pred_fallthru
        _
      %p3699 = scmp.le.s32.totalorder 2, %s29
      // Predicated region
      $region117: #{et_forward_pallas.1} parent=5 // pred_check
        %p3700 = pneg %p3699
      $region118: #{et_forward_pallas.1} parent=5 // pred_check_branch
        %3702 = sbr.rel (%p3700) target = $region120
      $region119: #{et_forward_pallas.1} parent=5 // pred_region
        %s3703 = ssub.s32 %s29, 2
        // Predicated region
        $region121: #{et_forward_pallas.1} parent=119 // pred_check
          %p3704 = pneg %p530
        $region122: #{et_forward_pallas.1} parent=119 // pred_check_branch
          %3706 = sbr.rel (%p3704) target = $region124
        $region123: #{et_forward_pallas.1} parent=119 // pred_region
          %p3707 = scmp.lt.s32.totalorder %s35, 1
          %s3708 = scalar_select %p3707, %s35, 1
          %s3709 = smul.addr %s3708, 16
          %s3710 = smul.addr %s3709, 8
          %s3711 = scalar_lea.vmem %s22, %s3710
        $region124: #{et_forward_pallas.1} parent=119 // pred_fallthru
          _
      $region120: #{et_forward_pallas.1} parent=5 // pred_fallthru
        _
    $region6: #{et_forward_pallas.1} parent=1 // loop_footer
      %s33 = sadd.s32 1, %s29
    $region7: #{et_forward_pallas.1} parent=1 // loop_footer_branch
      %28 = sbr.rel target = $region3
    $region8: #{et_forward_pallas.1} parent=1 // loop_exit
      _
    %3712 = vsyncpa [#allocation3], 1
    %s3713 = scalar_lea.sflag [#allocation3], 1
    %3714 = vsyncpa %s3713, 1

</llo_original>
